<compile_context>
chip_gen: v7x
topology: tpu7x:2x2x1
jax: 0.10.0
libtpu: 0.0.40
codegen_flags: <defaults>
</compile_context>

<pallas_src>
import jax
import jax.numpy as jnp
from jax.experimental import pallas as pl
from jax.experimental.pallas import tpu as pltpu

NUM_CLASSES = 20
OUTPUT_DIM = 32        # stand-in for the module default output_dim=200 (divisible by 8 heads)
NUM_HEADS = 8          # unused at runtime: with L=S=1 the per-head softmax is exactly 1
RESNET_FEATURES = 64   # stand-in for resnet50's 2048-dim penultimate feature size
K1D = 5                # audio Conv1d kernel size
STRIDE1D = 2           # audio Conv1d stride
KHW = 3                # image conv-stem kernel size


def _vmem():
    return pl.BlockSpec(memory_space=pltpu.MemorySpace.VMEM)


# ----------------------------- Pallas kernels ------------------------------

def _audio_branch_kernel(p1_ref, w1_ref, b1_ref,
                         sel2_ref, w2_ref, b2_ref,
                         sel3_ref, w3_ref, b3_ref,
                         pool_ref, wfc_ref, bfc_ref,
                         out_ref):
    """Whole AudioBranch in one kernel: conv1 -> conv2 -> conv3 -> GAP -> fc.

    Activations are kept as (batch*positions, channels) matrices (channels on
    the 128-lane axis).  Strided convs are computed as, per tap t,
        (S_t @ h) @ W_t
    where S_t is a precomputed block-diagonal 0/1 row-selection matrix, so the
    whole branch is a chain of MXU dots entirely in VMEM.
    """
    f32 = jnp.float32

    # conv1 (Cin=1): pre-extracted patches (B*L1, k) @ (k, 64) + bias, ReLU
    h1 = jnp.dot(p1_ref[...], w1_ref[...], preferred_element_type=f32) + b1_ref[...]
    h1 = jnp.maximum(h1, 0.0)                                   # (B*L1, 64)

    def conv_block(h_in, sel_ref, w_ref, b_ref):
        acc = None
        for t in range(K1D):                                    # k=5, unrolled
            h_sub = jnp.dot(sel_ref[t], h_in, preferred_element_type=f32)
            part = jnp.dot(h_sub.astype(jnp.bfloat16), w_ref[t],
                           preferred_element_type=f32)
            acc = part if acc is None else acc + part
        return jnp.maximum(acc + b_ref[...], 0.0)

    h2 = conv_block(h1, sel2_ref, w2_ref, b2_ref)               # (B*L2, 128)
    h3 = conv_block(h2, sel3_ref, w3_ref, b3_ref)               # (B*L3, 256)

    # AdaptiveAvgPool1d(1) as a block-averaging matmul (no (M,1) HBM tensor), then fc.
    pooled = jnp.dot(pool_ref[...], h3, preferred_element_type=f32)     # (B, 256)
    out_ref[...] = (jnp.dot(pooled, wfc_ref[...], preferred_element_type=f32)
                    + bfc_ref[...]).astype(out_ref.dtype)


def _resnet_branch_kernel(patch_ref, wstem_ref, bstem_ref,
                          pool_ref, wfc_ref, bfc_ref, out_ref):
    """Stand-in ResnetBranch: 3x3 conv stem (as patch matmul) + ReLU + GAP + fc,
    all fused in one kernel."""
    f32 = jnp.float32
    feat = jnp.dot(patch_ref[...], wstem_ref[...], preferred_element_type=f32) \
        + bstem_ref[...]
    feat = jnp.maximum(feat, 0.0)                               # (B*Ho*Wo, F)
    pooled = jnp.dot(pool_ref[...], feat, preferred_element_type=f32)   # (B, F)
    out_ref[...] = (jnp.dot(pooled, wfc_ref[...], preferred_element_type=f32)
                    + bfc_ref[...]).astype(out_ref.dtype)


def _head_kernel(audio_ref, tactile_ref, visual_ref,
                 wv_ref, bv_ref, wo_ref, bo_ref,
                 wjv_ref, wja_ref, bj_ref,
                 attn_ref, logits_ref):
    """MultiheadAttention (L=S=1) for both directions + joint fc, fused.

    With a single key/value position the softmax weight is exactly 1 for every
    head, so attn(Q, KV, KV) == out_proj(v_proj(KV)) — the Q/K projections and
    the softmax cancel exactly.  The two directions share the module, so by
    linearity (attn1 + attn2)/2 == out_proj(v_proj((tactile + audio)/2)).
    The joint fc is applied to the split weight so no concat is needed.
    """
    f32 = jnp.float32
    kv_mean = (audio_ref[...] + tactile_ref[...]) * 0.5
    v = jnp.dot(kv_mean, wv_ref[...], preferred_element_type=f32) + bv_ref[...]
    attn = jnp.dot(v, wo_ref[...], preferred_element_type=f32) + bo_ref[...]
    attn_ref[...] = attn.astype(attn_ref.dtype)
    logits = (jnp.dot(visual_ref[...], wjv_ref[...], preferred_element_type=f32)
              + jnp.dot(attn, wja_ref[...], preferred_element_type=f32)
              + bj_ref[...])
    logits_ref[...] = logits.astype(logits_ref.dtype)


# ------------------------------ branch wrappers -----------------------------

def audio_branch(x, p):
    """AudioBranch forward.  x: (B, 1, L).  One pallas_call."""
    B, _, L = x.shape
    L1 = (L - K1D) // STRIDE1D + 1
    # im2col for the first conv (Cin=1) via shifted strided slices — contiguous
    # XLA slices, no gather.
    x2 = x[:, 0, :]                                             # (B, L)
    taps = [x2[:, t::STRIDE1D][:, :L1] for t in range(K1D)]     # k x (B, L1)
    p1 = jnp.stack(taps, axis=-1).reshape(B * L1, K1D).astype(jnp.float32)
    return pl.pallas_call(
        _audio_branch_kernel,
        out_shape=jax.ShapeDtypeStruct((B, OUTPUT_DIM), jnp.float32),
        in_specs=[_vmem()] * 12,
        out_specs=_vmem(),
    )(p1, p['a_w1'], p['a_b1'],
      p['a_sel2'], p['a_w2'], p['a_b2'],
      p['a_sel3'], p['a_w3'], p['a_b3'],
      p['a_pool'], p['a_wfc'], p['a_bfc'])


def resnet_branch(x, wstem, bstem, pool, wfc, bfc):
    """ResnetBranch forward.  x: (B, C, H, W) NCHW.  One pallas_call.

    # TODO(synk): the pretrained torchvision resnet50 backbone is replaced by a
    # deterministic 3x3 conv stem + ReLU + global-average-pool stand-in
    # (checkpoint loading is out of scope); the trailing fc matches
    # ResnetBranch.fc exactly.
    """
    B, C, H, W = x.shape
    Ho, Wo = H - KHW + 1, W - KHW + 1
    # im2col via 9 shifted contiguous slices (no advanced-index gather).
    cols = [x[:, :, ki:ki + Ho, kj:kj + Wo]
            for ki in range(KHW) for kj in range(KHW)]          # 9 x (B, C, Ho, Wo)
    patches = jnp.stack(cols, axis=2).reshape(B, C * KHW * KHW, Ho * Wo)
    patches = jnp.transpose(patches, (0, 2, 1)).reshape(B * Ho * Wo, C * KHW * KHW)
    return pl.pallas_call(
        _resnet_branch_kernel,
        out_shape=jax.ShapeDtypeStruct((B, OUTPUT_DIM), jnp.float32),
        in_specs=[_vmem()] * 6,
        out_specs=_vmem(),
    )(patches.astype(jnp.float32), wstem, bstem, pool, wfc, bfc)


def attention_and_joint(audio_out, tactile_out, visual_out, p):
    """Both attention directions + combination + joint_fc in one pallas_call."""
    B = audio_out.shape[0]
    return pl.pallas_call(
        _head_kernel,
        out_shape=(jax.ShapeDtypeStruct((B, OUTPUT_DIM), jnp.float32),
                   jax.ShapeDtypeStruct((B, NUM_CLASSES), jnp.float32)),
        in_specs=[_vmem()] * 10,
        out_specs=(_vmem(), _vmem()),
    )(audio_out, tactile_out, visual_out,
      p['attn_wv'], p['attn_bv'], p['attn_wo'], p['attn_bo'],
      p['joint_wv'], p['joint_wa'], p['joint_b'])


def cross_sensory_forward(audio_input, tactile_input, visual_input, p):
    tactile_out = resnet_branch(tactile_input, p['t_wstem'], p['t_bstem'],
                                p['img_pool'], p['t_wfc'], p['t_bfc'])
    audio_out = audio_branch(audio_input, p)
    visual_out = resnet_branch(visual_input, p['v_wstem'], p['v_bstem'],
                               p['img_pool'], p['v_wfc'], p['v_bfc'])
    attn_combined, logits = attention_and_joint(audio_out, tactile_out, visual_out, p)
    return audio_out, tactile_out, visual_out, attn_combined, logits


# ------------------------------- parameters --------------------------------

def init_params(key):
    """Random parameters in PyTorch layout (Conv: (Cout,Cin,k...), Linear: (N,K))."""
    E, F = OUTPUT_DIM, RESNET_FEATURES
    ks = iter(jax.random.split(key, 32))

    def w(shape, scale=0.05):
        return scale * jax.random.normal(next(ks), shape, dtype=jnp.float32)

    return {
        # AudioBranch
        'a_c1_w': w((64, 1, 5)),    'a_c1_b': w((64,)),
        'a_c2_w': w((128, 64, 5)),  'a_c2_b': w((128,)),
        'a_c3_w': w((256, 128, 5)), 'a_c3_b': w((256,)),
        'a_fc_w': w((E, 256)),      'a_fc_b': w((E,)),
        # Tactile ResnetBranch (stand-in backbone + exact fc)
        't_stem_w': w((F, 3, 3, 3)), 't_stem_b': w((F,)),
        't_fc_w': w((E, F)),         't_fc_b': w((E,)),
        # Visual ResnetBranch
        'v_stem_w': w((F, 3, 3, 3)), 'v_stem_b': w((F,)),
        'v_fc_w': w((E, F)),         'v_fc_b': w((E,)),
        # Shared MultiheadAttention (one module used for both directions)
        'attn_in_w': w((3 * E, E)),  'attn_in_b': w((3 * E,)),
        'attn_out_w': w((E, E)),     'attn_out_b': w((E,)),
        # joint_fc: Linear(2*E, NUM_CLASSES)
        'joint_w': w((NUM_CLASSES, 2 * E)), 'joint_b': w((NUM_CLASSES,)),
    }


def prepare_params(raw, *, batch, audio_len, img_hw):
    """One-time conversion to kernel-ready layout: pre-transposed (K,N) weights,
    (1,N) biases, pre-sliced attention/joint weights, conv2/3 weights in bf16,
    and the structural selection / pooling matrices (built once, outside jit)."""
    E, F = OUTPUT_DIM, RESNET_FEATURES
    B, L = batch, audio_len
    H, W = img_hw
    L1 = (L - K1D) // STRIDE1D + 1
    L2 = (L1 - K1D) // STRIDE1D + 1
    L3 = (L2 - K1D) // STRIDE1D + 1
    Ho, Wo = H - KHW + 1, W - KHW + 1

    def sel_stack(lin, lout):
        # (k, B*lout, B*lin) block-diagonal 0/1 row-selection matrices:
        # sel[t] @ h picks rows (b, stride*l + t) of the (B*lin, C) activation.
        mats = []
        for t in range(K1D):
            onehot = jax.nn.one_hot(STRIDE1D * jnp.arange(lout) + t, lin,
                                    dtype=jnp.float32)
            mats.append(jnp.kron(jnp.eye(B, dtype=jnp.float32), onehot))
        return jnp.stack(mats, axis=0)

    def pool_mat(lred):
        # (B, B*lred) block row-averaging matrix == AdaptiveAvgPool(1) + flatten.
        return jnp.kron(jnp.eye(B, dtype=jnp.float32),
                        jnp.full((1, lred), 1.0 / lred, dtype=jnp.float32))

    p = {}
    # --- AudioBranch ---
    p['a_w1'] = jnp.transpose(raw['a_c1_w'][:, 0, :], (1, 0)).astype(jnp.float32)    # (5, 64)
    p['a_b1'] = raw['a_c1_b'].reshape(1, -1).astype(jnp.float32)
    p['a_w2'] = jnp.transpose(raw['a_c2_w'], (2, 1, 0)).astype(jnp.bfloat16)         # (5, 64, 128)
    p['a_b2'] = raw['a_c2_b'].reshape(1, -1).astype(jnp.float32)
    p['a_w3'] = jnp.transpose(raw['a_c3_w'], (2, 1, 0)).astype(jnp.bfloat16)         # (5, 128, 256)
    p['a_b3'] = raw['a_c3_b'].reshape(1, -1).astype(jnp.float32)
    p['a_wfc'] = raw['a_fc_w'].T.astype(jnp.float32)                                 # (256, E)
    p['a_bfc'] = raw['a_fc_b'].reshape(1, -1).astype(jnp.float32)
    p['a_sel2'] = sel_stack(L1, L2)                                                  # (5, B*L2, B*L1)
    p['a_sel3'] = sel_stack(L2, L3)                                                  # (5, B*L3, B*L2)
    p['a_pool'] = pool_mat(L3)                                                       # (B, B*L3)

    # --- Resnet branches (stand-in stem + exact fc) ---
    for pre in ('t', 'v'):
        p[f'{pre}_wstem'] = raw[f'{pre}_stem_w'].reshape(F, -1).T.astype(jnp.float32)  # (C*9, F)
        p[f'{pre}_bstem'] = raw[f'{pre}_stem_b'].reshape(1, -1).astype(jnp.float32)
        p[f'{pre}_wfc'] = raw[f'{pre}_fc_w'].T.astype(jnp.float32)                     # (F, E)
        p[f'{pre}_bfc'] = raw[f'{pre}_fc_b'].reshape(1, -1).astype(jnp.float32)
    p['img_pool'] = pool_mat(Ho * Wo)                                                  # (B, B*Ho*Wo)

    # --- Attention (only the value + output projections survive the L=S=1 identity) ---
    p['attn_wv'] = raw['attn_in_w'][2 * E:3 * E].T.astype(jnp.float32)                 # (E, E)
    p['attn_bv'] = raw['attn_in_b'][2 * E:3 * E].reshape(1, -1).astype(jnp.float32)
    p['attn_wo'] = raw['attn_out_w'].T.astype(jnp.float32)                             # (E, E)
    p['attn_bo'] = raw['attn_out_b'].reshape(1, -1).astype(jnp.float32)

    # --- joint_fc split so the kernel needs no concat ---
    p['joint_wv'] = raw['joint_w'][:, :E].T.astype(jnp.float32)                        # (E, NC)
    p['joint_wa'] = raw['joint_w'][:, E:].T.astype(jnp.float32)                        # (E, NC)
    p['joint_b'] = raw['joint_b'].reshape(1, -1).astype(jnp.float32)
    return p


# ---------------------------------- main ------------------------------------

if __name__ == "__main__":
    key = jax.random.PRNGKey(0)
    kp, ka, kt, kv = jax.random.split(key, 4)

    B, L, H, W = 2, 128, 16, 16
    raw_params = init_params(kp)
    params = prepare_params(raw_params, batch=B, audio_len=L, img_hw=(H, W))

    audio_input = jax.random.normal(ka, (B, 1, L), dtype=jnp.float32)        # (B, 1, L)
    tactile_input = jax.random.normal(kt, (B, 3, H, W), dtype=jnp.float32)   # NCHW
    visual_input = jax.random.normal(kv, (B, 3, H, W), dtype=jnp.float32)    # NCHW

    fwd = jax.jit(cross_sensory_forward)
    outs = fwd(audio_input, tactile_input, visual_input, params)
    jax.block_until_ready(outs)

    audio_out, tactile_out, visual_out, attn_combined, logits = outs
    assert audio_out.shape == (B, OUTPUT_DIM)
    assert tactile_out.shape == (B, OUTPUT_DIM)
    assert visual_out.shape == (B, OUTPUT_DIM)
    assert attn_combined.shape == (B, OUTPUT_DIM)
    assert logits.shape == (B, NUM_CLASSES)
    print("KERNEL_OK")
</pallas_src>

<mosaic_0001>
module attributes {stable_mosaic.version = 11 : i64} {
  func.func @_audio_branch_kernel(%arg0: memref<124x5xf32, #tpu.memory_space<vmem>>, %arg1: memref<5x64xf32, #tpu.memory_space<vmem>>, %arg2: memref<1x64xf32, #tpu.memory_space<vmem>>, %arg3: memref<5x58x124xf32, #tpu.memory_space<vmem>>, %arg4: memref<5x64x128xbf16, #tpu.memory_space<vmem>>, %arg5: memref<1x128xf32, #tpu.memory_space<vmem>>, %arg6: memref<5x26x58xf32, #tpu.memory_space<vmem>>, %arg7: memref<5x128x256xbf16, #tpu.memory_space<vmem>>, %arg8: memref<1x256xf32, #tpu.memory_space<vmem>>, %arg9: memref<2x26xf32, #tpu.memory_space<vmem>>, %arg10: memref<256x32xf32, #tpu.memory_space<vmem>>, %arg11: memref<1x32xf32, #tpu.memory_space<vmem>>, %arg12: memref<2x32xf32, #tpu.memory_space<vmem>>) attributes {dimension_semantics = [], scalar_prefetch = 0 : i64, scratch_operands = 0 : i64, tpu.core_type = #tpu.core_type<tc>} {
    %c0 = arith.constant 0 : index
    %c0_0 = arith.constant 0 : index
    %0 = vector.load %arg0[%c0, %c0_0] : memref<124x5xf32, #tpu.memory_space<vmem>>, vector<124x5xf32>
    %c0_1 = arith.constant 0 : index
    %c0_2 = arith.constant 0 : index
    %1 = vector.load %arg1[%c0_1, %c0_2] : memref<5x64xf32, #tpu.memory_space<vmem>>, vector<5x64xf32>
    %cst = arith.constant dense<0.000000e+00> : vector<124x64xf32>
    %2 = tpu.matmul %0, %1, %cst {dimension_numbers = #tpu.dot_dimension_numbers<[1], [0], [0], [1], [0, 0, 1, 1], [], []>} : vector<124x5xf32>, vector<5x64xf32>, vector<124x64xf32> -> vector<124x64xf32>
    %c0_3 = arith.constant 0 : index
    %c0_4 = arith.constant 0 : index
    %3 = vector.load %arg2[%c0_3, %c0_4] : memref<1x64xf32, #tpu.memory_space<vmem>>, vector<1x64xf32>
    %4 = vector.broadcast %3 : vector<1x64xf32> to vector<124x64xf32>
    %5 = arith.addf %2, %4 : vector<124x64xf32>
    %cst_5 = arith.constant 0.000000e+00 : f32
    %6 = vector.broadcast %cst_5 : f32 to vector<124x64xf32>
    %7 = arith.maximumf %5, %6 : vector<124x64xf32>
    %c0_6 = arith.constant 0 : index
    %c0_7 = arith.constant 0 : index
    %c0_8 = arith.constant 0 : index
    %8 = vector.load %arg3[%c0_6, %c0_7, %c0_8] : memref<5x58x124xf32, #tpu.memory_space<vmem>>, vector<1x58x124xf32>
    %9 = vector.shape_cast %8 : vector<1x58x124xf32> to vector<58x124xf32>
    %cst_9 = arith.constant dense<0.000000e+00> : vector<58x64xf32>
    %10 = tpu.matmul %9, %7, %cst_9 {dimension_numbers = #tpu.dot_dimension_numbers<[1], [0], [0], [1], [0, 0, 1, 1], [], []>} : vector<58x124xf32>, vector<124x64xf32>, vector<58x64xf32> -> vector<58x64xf32>
    %11 = arith.truncf %10 : vector<58x64xf32> to vector<58x64xbf16>
    %c0_10 = arith.constant 0 : index
    %c0_11 = arith.constant 0 : index
    %c0_12 = arith.constant 0 : index
    %12 = vector.load %arg4[%c0_10, %c0_11, %c0_12] : memref<5x64x128xbf16, #tpu.memory_space<vmem>>, vector<1x64x128xbf16>
    %13 = vector.shape_cast %12 : vector<1x64x128xbf16> to vector<64x128xbf16>
    %cst_13 = arith.constant dense<0.000000e+00> : vector<58x128xf32>
    %14 = tpu.matmul %11, %13, %cst_13 {dimension_numbers = #tpu.dot_dimension_numbers<[1], [0], [0], [1], [0, 0, 1, 1], [], []>} : vector<58x64xbf16>, vector<64x128xbf16>, vector<58x128xf32> -> vector<58x128xf32>
    %c1 = arith.constant 1 : index
    %c0_14 = arith.constant 0 : index
    %c0_15 = arith.constant 0 : index
    %15 = vector.load %arg3[%c1, %c0_14, %c0_15] : memref<5x58x124xf32, #tpu.memory_space<vmem>>, vector<1x58x124xf32>
    %16 = vector.shape_cast %15 : vector<1x58x124xf32> to vector<58x124xf32>
    %cst_16 = arith.constant dense<0.000000e+00> : vector<58x64xf32>
    %17 = tpu.matmul %16, %7, %cst_16 {dimension_numbers = #tpu.dot_dimension_numbers<[1], [0], [0], [1], [0, 0, 1, 1], [], []>} : vector<58x124xf32>, vector<124x64xf32>, vector<58x64xf32> -> vector<58x64xf32>
    %18 = arith.truncf %17 : vector<58x64xf32> to vector<58x64xbf16>
    %c1_17 = arith.constant 1 : index
    %c0_18 = arith.constant 0 : index
    %c0_19 = arith.constant 0 : index
    %19 = vector.load %arg4[%c1_17, %c0_18, %c0_19] : memref<5x64x128xbf16, #tpu.memory_space<vmem>>, vector<1x64x128xbf16>
    %20 = vector.shape_cast %19 : vector<1x64x128xbf16> to vector<64x128xbf16>
    %cst_20 = arith.constant dense<0.000000e+00> : vector<58x128xf32>
    %21 = tpu.matmul %18, %20, %cst_20 {dimension_numbers = #tpu.dot_dimension_numbers<[1], [0], [0], [1], [0, 0, 1, 1], [], []>} : vector<58x64xbf16>, vector<64x128xbf16>, vector<58x128xf32> -> vector<58x128xf32>
    %22 = arith.addf %14, %21 : vector<58x128xf32>
    %c2 = arith.constant 2 : index
    %c0_21 = arith.constant 0 : index
    %c0_22 = arith.constant 0 : index
    %23 = vector.load %arg3[%c2, %c0_21, %c0_22] : memref<5x58x124xf32, #tpu.memory_space<vmem>>, vector<1x58x124xf32>
    %24 = vector.shape_cast %23 : vector<1x58x124xf32> to vector<58x124xf32>
    %cst_23 = arith.constant dense<0.000000e+00> : vector<58x64xf32>
    %25 = tpu.matmul %24, %7, %cst_23 {dimension_numbers = #tpu.dot_dimension_numbers<[1], [0], [0], [1], [0, 0, 1, 1], [], []>} : vector<58x124xf32>, vector<124x64xf32>, vector<58x64xf32> -> vector<58x64xf32>
    %26 = arith.truncf %25 : vector<58x64xf32> to vector<58x64xbf16>
    %c2_24 = arith.constant 2 : index
    %c0_25 = arith.constant 0 : index
    %c0_26 = arith.constant 0 : index
    %27 = vector.load %arg4[%c2_24, %c0_25, %c0_26] : memref<5x64x128xbf16, #tpu.memory_space<vmem>>, vector<1x64x128xbf16>
    %28 = vector.shape_cast %27 : vector<1x64x128xbf16> to vector<64x128xbf16>
    %cst_27 = arith.constant dense<0.000000e+00> : vector<58x128xf32>
    %29 = tpu.matmul %26, %28, %cst_27 {dimension_numbers = #tpu.dot_dimension_numbers<[1], [0], [0], [1], [0, 0, 1, 1], [], []>} : vector<58x64xbf16>, vector<64x128xbf16>, vector<58x128xf32> -> vector<58x128xf32>
    %30 = arith.addf %22, %29 : vector<58x128xf32>
    %c3 = arith.constant 3 : index
    %c0_28 = arith.constant 0 : index
    %c0_29 = arith.constant 0 : index
    %31 = vector.load %arg3[%c3, %c0_28, %c0_29] : memref<5x58x124xf32, #tpu.memory_space<vmem>>, vector<1x58x124xf32>
    %32 = vector.shape_cast %31 : vector<1x58x124xf32> to vector<58x124xf32>
    %cst_30 = arith.constant dense<0.000000e+00> : vector<58x64xf32>
    %33 = tpu.matmul %32, %7, %cst_30 {dimension_numbers = #tpu.dot_dimension_numbers<[1], [0], [0], [1], [0, 0, 1, 1], [], []>} : vector<58x124xf32>, vector<124x64xf32>, vector<58x64xf32> -> vector<58x64xf32>
    %34 = arith.truncf %33 : vector<58x64xf32> to vector<58x64xbf16>
    %c3_31 = arith.constant 3 : index
    %c0_32 = arith.constant 0 : index
    %c0_33 = arith.constant 0 : index
    %35 = vector.load %arg4[%c3_31, %c0_32, %c0_33] : memref<5x64x128xbf16, #tpu.memory_space<vmem>>, vector<1x64x128xbf16>
    %36 = vector.shape_cast %35 : vector<1x64x128xbf16> to vector<64x128xbf16>
    %cst_34 = arith.constant dense<0.000000e+00> : vector<58x128xf32>
    %37 = tpu.matmul %34, %36, %cst_34 {dimension_numbers = #tpu.dot_dimension_numbers<[1], [0], [0], [1], [0, 0, 1, 1], [], []>} : vector<58x64xbf16>, vector<64x128xbf16>, vector<58x128xf32> -> vector<58x128xf32>
    %38 = arith.addf %30, %37 : vector<58x128xf32>
    %c4 = arith.constant 4 : index
    %c0_35 = arith.constant 0 : index
    %c0_36 = arith.constant 0 : index
    %39 = vector.load %arg3[%c4, %c0_35, %c0_36] : memref<5x58x124xf32, #tpu.memory_space<vmem>>, vector<1x58x124xf32>
    %40 = vector.shape_cast %39 : vector<1x58x124xf32> to vector<58x124xf32>
    %cst_37 = arith.constant dense<0.000000e+00> : vector<58x64xf32>
    %41 = tpu.matmul %40, %7, %cst_37 {dimension_numbers = #tpu.dot_dimension_numbers<[1], [0], [0], [1], [0, 0, 1, 1], [], []>} : vector<58x124xf32>, vector<124x64xf32>, vector<58x64xf32> -> vector<58x64xf32>
    %42 = arith.truncf %41 : vector<58x64xf32> to vector<58x64xbf16>
    %c4_38 = arith.constant 4 : index
    %c0_39 = arith.constant 0 : index
    %c0_40 = arith.constant 0 : index
    %43 = vector.load %arg4[%c4_38, %c0_39, %c0_40] : memref<5x64x128xbf16, #tpu.memory_space<vmem>>, vector<1x64x128xbf16>
    %44 = vector.shape_cast %43 : vector<1x64x128xbf16> to vector<64x128xbf16>
    %cst_41 = arith.constant dense<0.000000e+00> : vector<58x128xf32>
    %45 = tpu.matmul %42, %44, %cst_41 {dimension_numbers = #tpu.dot_dimension_numbers<[1], [0], [0], [1], [0, 0, 1, 1], [], []>} : vector<58x64xbf16>, vector<64x128xbf16>, vector<58x128xf32> -> vector<58x128xf32>
    %46 = arith.addf %38, %45 : vector<58x128xf32>
    %c0_42 = arith.constant 0 : index
    %c0_43 = arith.constant 0 : index
    %47 = vector.load %arg5[%c0_42, %c0_43] : memref<1x128xf32, #tpu.memory_space<vmem>>, vector<1x128xf32>
    %48 = vector.broadcast %47 : vector<1x128xf32> to vector<58x128xf32>
    %49 = arith.addf %46, %48 : vector<58x128xf32>
    %cst_44 = arith.constant 0.000000e+00 : f32
    %50 = vector.broadcast %cst_44 : f32 to vector<58x128xf32>
    %51 = arith.maximumf %49, %50 : vector<58x128xf32>
    %c0_45 = arith.constant 0 : index
    %c0_46 = arith.constant 0 : index
    %c0_47 = arith.constant 0 : index
    %52 = vector.load %arg6[%c0_45, %c0_46, %c0_47] : memref<5x26x58xf32, #tpu.memory_space<vmem>>, vector<1x26x58xf32>
    %53 = vector.shape_cast %52 : vector<1x26x58xf32> to vector<26x58xf32>
    %cst_48 = arith.constant dense<0.000000e+00> : vector<26x128xf32>
    %54 = tpu.matmul %53, %51, %cst_48 {dimension_numbers = #tpu.dot_dimension_numbers<[1], [0], [0], [1], [0, 0, 1, 1], [], []>} : vector<26x58xf32>, vector<58x128xf32>, vector<26x128xf32> -> vector<26x128xf32>
    %55 = arith.truncf %54 : vector<26x128xf32> to vector<26x128xbf16>
    %c0_49 = arith.constant 0 : index
    %c0_50 = arith.constant 0 : index
    %c0_51 = arith.constant 0 : index
    %56 = vector.load %arg7[%c0_49, %c0_50, %c0_51] : memref<5x128x256xbf16, #tpu.memory_space<vmem>>, vector<1x128x256xbf16>
    %57 = vector.shape_cast %56 : vector<1x128x256xbf16> to vector<128x256xbf16>
    %cst_52 = arith.constant dense<0.000000e+00> : vector<26x256xf32>
    %58 = tpu.matmul %55, %57, %cst_52 {dimension_numbers = #tpu.dot_dimension_numbers<[1], [0], [0], [1], [0, 0, 1, 1], [], []>} : vector<26x128xbf16>, vector<128x256xbf16>, vector<26x256xf32> -> vector<26x256xf32>
    %c1_53 = arith.constant 1 : index
    %c0_54 = arith.constant 0 : index
    %c0_55 = arith.constant 0 : index
    %59 = vector.load %arg6[%c1_53, %c0_54, %c0_55] : memref<5x26x58xf32, #tpu.memory_space<vmem>>, vector<1x26x58xf32>
    %60 = vector.shape_cast %59 : vector<1x26x58xf32> to vector<26x58xf32>
    %cst_56 = arith.constant dense<0.000000e+00> : vector<26x128xf32>
    %61 = tpu.matmul %60, %51, %cst_56 {dimension_numbers = #tpu.dot_dimension_numbers<[1], [0], [0], [1], [0, 0, 1, 1], [], []>} : vector<26x58xf32>, vector<58x128xf32>, vector<26x128xf32> -> vector<26x128xf32>
    %62 = arith.truncf %61 : vector<26x128xf32> to vector<26x128xbf16>
    %c1_57 = arith.constant 1 : index
    %c0_58 = arith.constant 0 : index
    %c0_59 = arith.constant 0 : index
    %63 = vector.load %arg7[%c1_57, %c0_58, %c0_59] : memref<5x128x256xbf16, #tpu.memory_space<vmem>>, vector<1x128x256xbf16>
    %64 = vector.shape_cast %63 : vector<1x128x256xbf16> to vector<128x256xbf16>
    %cst_60 = arith.constant dense<0.000000e+00> : vector<26x256xf32>
    %65 = tpu.matmul %62, %64, %cst_60 {dimension_numbers = #tpu.dot_dimension_numbers<[1], [0], [0], [1], [0, 0, 1, 1], [], []>} : vector<26x128xbf16>, vector<128x256xbf16>, vector<26x256xf32> -> vector<26x256xf32>
    %66 = arith.addf %58, %65 : vector<26x256xf32>
    %c2_61 = arith.constant 2 : index
    %c0_62 = arith.constant 0 : index
    %c0_63 = arith.constant 0 : index
    %67 = vector.load %arg6[%c2_61, %c0_62, %c0_63] : memref<5x26x58xf32, #tpu.memory_space<vmem>>, vector<1x26x58xf32>
    %68 = vector.shape_cast %67 : vector<1x26x58xf32> to vector<26x58xf32>
    %cst_64 = arith.constant dense<0.000000e+00> : vector<26x128xf32>
    %69 = tpu.matmul %68, %51, %cst_64 {dimension_numbers = #tpu.dot_dimension_numbers<[1], [0], [0], [1], [0, 0, 1, 1], [], []>} : vector<26x58xf32>, vector<58x128xf32>, vector<26x128xf32> -> vector<26x128xf32>
    %70 = arith.truncf %69 : vector<26x128xf32> to vector<26x128xbf16>
    %c2_65 = arith.constant 2 : index
    %c0_66 = arith.constant 0 : index
    %c0_67 = arith.constant 0 : index
    %71 = vector.load %arg7[%c2_65, %c0_66, %c0_67] : memref<5x128x256xbf16, #tpu.memory_space<vmem>>, vector<1x128x256xbf16>
    %72 = vector.shape_cast %71 : vector<1x128x256xbf16> to vector<128x256xbf16>
    %cst_68 = arith.constant dense<0.000000e+00> : vector<26x256xf32>
    %73 = tpu.matmul %70, %72, %cst_68 {dimension_numbers = #tpu.dot_dimension_numbers<[1], [0], [0], [1], [0, 0, 1, 1], [], []>} : vector<26x128xbf16>, vector<128x256xbf16>, vector<26x256xf32> -> vector<26x256xf32>
    %74 = arith.addf %66, %73 : vector<26x256xf32>
    %c3_69 = arith.constant 3 : index
    %c0_70 = arith.constant 0 : index
    %c0_71 = arith.constant 0 : index
    %75 = vector.load %arg6[%c3_69, %c0_70, %c0_71] : memref<5x26x58xf32, #tpu.memory_space<vmem>>, vector<1x26x58xf32>
    %76 = vector.shape_cast %75 : vector<1x26x58xf32> to vector<26x58xf32>
    %cst_72 = arith.constant dense<0.000000e+00> : vector<26x128xf32>
    %77 = tpu.matmul %76, %51, %cst_72 {dimension_numbers = #tpu.dot_dimension_numbers<[1], [0], [0], [1], [0, 0, 1, 1], [], []>} : vector<26x58xf32>, vector<58x128xf32>, vector<26x128xf32> -> vector<26x128xf32>
    %78 = arith.truncf %77 : vector<26x128xf32> to vector<26x128xbf16>
    %c3_73 = arith.constant 3 : index
    %c0_74 = arith.constant 0 : index
    %c0_75 = arith.constant 0 : index
    %79 = vector.load %arg7[%c3_73, %c0_74, %c0_75] : memref<5x128x256xbf16, #tpu.memory_space<vmem>>, vector<1x128x256xbf16>
    %80 = vector.shape_cast %79 : vector<1x128x256xbf16> to vector<128x256xbf16>
    %cst_76 = arith.constant dense<0.000000e+00> : vector<26x256xf32>
    %81 = tpu.matmul %78, %80, %cst_76 {dimension_numbers = #tpu.dot_dimension_numbers<[1], [0], [0], [1], [0, 0, 1, 1], [], []>} : vector<26x128xbf16>, vector<128x256xbf16>, vector<26x256xf32> -> vector<26x256xf32>
    %82 = arith.addf %74, %81 : vector<26x256xf32>
    %c4_77 = arith.constant 4 : index
    %c0_78 = arith.constant 0 : index
    %c0_79 = arith.constant 0 : index
    %83 = vector.load %arg6[%c4_77, %c0_78, %c0_79] : memref<5x26x58xf32, #tpu.memory_space<vmem>>, vector<1x26x58xf32>
    %84 = vector.shape_cast %83 : vector<1x26x58xf32> to vector<26x58xf32>
    %cst_80 = arith.constant dense<0.000000e+00> : vector<26x128xf32>
    %85 = tpu.matmul %84, %51, %cst_80 {dimension_numbers = #tpu.dot_dimension_numbers<[1], [0], [0], [1], [0, 0, 1, 1], [], []>} : vector<26x58xf32>, vector<58x128xf32>, vector<26x128xf32> -> vector<26x128xf32>
    %86 = arith.truncf %85 : vector<26x128xf32> to vector<26x128xbf16>
    %c4_81 = arith.constant 4 : index
    %c0_82 = arith.constant 0 : index
    %c0_83 = arith.constant 0 : index
    %87 = vector.load %arg7[%c4_81, %c0_82, %c0_83] : memref<5x128x256xbf16, #tpu.memory_space<vmem>>, vector<1x128x256xbf16>
    %88 = vector.shape_cast %87 : vector<1x128x256xbf16> to vector<128x256xbf16>
    %cst_84 = arith.constant dense<0.000000e+00> : vector<26x256xf32>
    %89 = tpu.matmul %86, %88, %cst_84 {dimension_numbers = #tpu.dot_dimension_numbers<[1], [0], [0], [1], [0, 0, 1, 1], [], []>} : vector<26x128xbf16>, vector<128x256xbf16>, vector<26x256xf32> -> vector<26x256xf32>
    %90 = arith.addf %82, %89 : vector<26x256xf32>
    %c0_85 = arith.constant 0 : index
    %c0_86 = arith.constant 0 : index
    %91 = vector.load %arg8[%c0_85, %c0_86] : memref<1x256xf32, #tpu.memory_space<vmem>>, vector<1x256xf32>
    %92 = vector.broadcast %91 : vector<1x256xf32> to vector<26x256xf32>
    %93 = arith.addf %90, %92 : vector<26x256xf32>
    %cst_87 = arith.constant 0.000000e+00 : f32
    %94 = vector.broadcast %cst_87 : f32 to vector<26x256xf32>
    %95 = arith.maximumf %93, %94 : vector<26x256xf32>
    %c0_88 = arith.constant 0 : index
    %c0_89 = arith.constant 0 : index
    %96 = vector.load %arg9[%c0_88, %c0_89] : memref<2x26xf32, #tpu.memory_space<vmem>>, vector<2x26xf32>
    %cst_90 = arith.constant dense<0.000000e+00> : vector<2x256xf32>
    %97 = tpu.matmul %96, %95, %cst_90 {dimension_numbers = #tpu.dot_dimension_numbers<[1], [0], [0], [1], [0, 0, 1, 1], [], []>} : vector<2x26xf32>, vector<26x256xf32>, vector<2x256xf32> -> vector<2x256xf32>
    %c0_91 = arith.constant 0 : index
    %c0_92 = arith.constant 0 : index
    %98 = vector.load %arg10[%c0_91, %c0_92] : memref<256x32xf32, #tpu.memory_space<vmem>>, vector<256x32xf32>
    %cst_93 = arith.constant dense<0.000000e+00> : vector<2x32xf32>
    %99 = tpu.matmul %97, %98, %cst_93 {dimension_numbers = #tpu.dot_dimension_numbers<[1], [0], [0], [1], [0, 0, 1, 1], [], []>} : vector<2x256xf32>, vector<256x32xf32>, vector<2x32xf32> -> vector<2x32xf32>
    %c0_94 = arith.constant 0 : index
    %c0_95 = arith.constant 0 : index
    %100 = vector.load %arg11[%c0_94, %c0_95] : memref<1x32xf32, #tpu.memory_space<vmem>>, vector<1x32xf32>
    %101 = vector.broadcast %100 : vector<1x32xf32> to vector<2x32xf32>
    %102 = arith.addf %99, %101 : vector<2x32xf32>
    %c0_96 = arith.constant 0 : index
    %c0_97 = arith.constant 0 : index
    %103 = vector.load %arg12[%c0_96, %c0_97] : memref<2x32xf32, #tpu.memory_space<vmem>>, vector<2x32xf32>
    tpu.vector_store %arg12[%c0_96, %c0_97], %102 {strides = array<i32>} : memref<2x32xf32, #tpu.memory_space<vmem>>, vector<2x32xf32>,
    return
  }
}

module attributes {stable_mosaic.version = 11 : i64} {
  func.func @_resnet_branch_kernel(%arg0: memref<392x27xf32, #tpu.memory_space<vmem>>, %arg1: memref<27x64xf32, #tpu.memory_space<vmem>>, %arg2: memref<1x64xf32, #tpu.memory_space<vmem>>, %arg3: memref<2x392xf32, #tpu.memory_space<vmem>>, %arg4: memref<64x32xf32, #tpu.memory_space<vmem>>, %arg5: memref<1x32xf32, #tpu.memory_space<vmem>>, %arg6: memref<2x32xf32, #tpu.memory_space<vmem>>) attributes {dimension_semantics = [], scalar_prefetch = 0 : i64, scratch_operands = 0 : i64, tpu.core_type = #tpu.core_type<tc>} {
    %c0 = arith.constant 0 : index
    %c0_0 = arith.constant 0 : index
    %0 = vector.load %arg0[%c0, %c0_0] : memref<392x27xf32, #tpu.memory_space<vmem>>, vector<392x27xf32>
    %c0_1 = arith.constant 0 : index
    %c0_2 = arith.constant 0 : index
    %1 = vector.load %arg1[%c0_1, %c0_2] : memref<27x64xf32, #tpu.memory_space<vmem>>, vector<27x64xf32>
    %cst = arith.constant dense<0.000000e+00> : vector<392x64xf32>
    %2 = tpu.matmul %0, %1, %cst {dimension_numbers = #tpu.dot_dimension_numbers<[1], [0], [0], [1], [0, 0, 1, 1], [], []>} : vector<392x27xf32>, vector<27x64xf32>, vector<392x64xf32> -> vector<392x64xf32>
    %c0_3 = arith.constant 0 : index
    %c0_4 = arith.constant 0 : index
    %3 = vector.load %arg2[%c0_3, %c0_4] : memref<1x64xf32, #tpu.memory_space<vmem>>, vector<1x64xf32>
    %4 = vector.broadcast %3 : vector<1x64xf32> to vector<392x64xf32>
    %5 = arith.addf %2, %4 : vector<392x64xf32>
    %cst_5 = arith.constant 0.000000e+00 : f32
    %6 = vector.broadcast %cst_5 : f32 to vector<392x64xf32>
    %7 = arith.maximumf %5, %6 : vector<392x64xf32>
    %c0_6 = arith.constant 0 : index
    %c0_7 = arith.constant 0 : index
    %8 = vector.load %arg3[%c0_6, %c0_7] : memref<2x392xf32, #tpu.memory_space<vmem>>, vector<2x392xf32>
    %cst_8 = arith.constant dense<0.000000e+00> : vector<2x64xf32>
    %9 = tpu.matmul %8, %7, %cst_8 {dimension_numbers = #tpu.dot_dimension_numbers<[1], [0], [0], [1], [0, 0, 1, 1], [], []>} : vector<2x392xf32>, vector<392x64xf32>, vector<2x64xf32> -> vector<2x64xf32>
    %c0_9 = arith.constant 0 : index
    %c0_10 = arith.constant 0 : index
    %10 = vector.load %arg4[%c0_9, %c0_10] : memref<64x32xf32, #tpu.memory_space<vmem>>, vector<64x32xf32>
    %cst_11 = arith.constant dense<0.000000e+00> : vector<2x32xf32>
    %11 = tpu.matmul %9, %10, %cst_11 {dimension_numbers = #tpu.dot_dimension_numbers<[1], [0], [0], [1], [0, 0, 1, 1], [], []>} : vector<2x64xf32>, vector<64x32xf32>, vector<2x32xf32> -> vector<2x32xf32>
    %c0_12 = arith.constant 0 : index
    %c0_13 = arith.constant 0 : index
    %12 = vector.load %arg5[%c0_12, %c0_13] : memref<1x32xf32, #tpu.memory_space<vmem>>, vector<1x32xf32>
    %13 = vector.broadcast %12 : vector<1x32xf32> to vector<2x32xf32>
    %14 = arith.addf %11, %13 : vector<2x32xf32>
    %c0_14 = arith.constant 0 : index
    %c0_15 = arith.constant 0 : index
    %15 = vector.load %arg6[%c0_14, %c0_15] : memref<2x32xf32, #tpu.memory_space<vmem>>, vector<2x32xf32>
    tpu.vector_store %arg6[%c0_14, %c0_15], %14 {strides = array<i32>} : memref<2x32xf32, #tpu.memory_space<vmem>>, vector<2x32xf32>,
    return
  }
}

module attributes {stable_mosaic.version = 11 : i64} {
  func.func @_head_kernel(%arg0: memref<2x32xf32, #tpu.memory_space<vmem>>, %arg1: memref<2x32xf32, #tpu.memory_space<vmem>>, %arg2: memref<2x32xf32, #tpu.memory_space<vmem>>, %arg3: memref<32x32xf32, #tpu.memory_space<vmem>>, %arg4: memref<1x32xf32, #tpu.memory_space<vmem>>, %arg5: memref<32x32xf32, #tpu.memory_space<vmem>>, %arg6: memref<1x32xf32, #tpu.memory_space<vmem>>, %arg7: memref<32x20xf32, #tpu.memory_space<vmem>>, %arg8: memref<32x20xf32, #tpu.memory_space<vmem>>, %arg9: memref<1x20xf32, #tpu.memory_space<vmem>>, %arg10: memref<2x32xf32, #tpu.memory_space<vmem>>, %arg11: memref<2x20xf32, #tpu.memory_space<vmem>>) attributes {dimension_semantics = [], scalar_prefetch = 0 : i64, scratch_operands = 0 : i64, tpu.core_type = #tpu.core_type<tc>} {
    %c0 = arith.constant 0 : index
    %c0_0 = arith.constant 0 : index
    %0 = vector.load %arg0[%c0, %c0_0] : memref<2x32xf32, #tpu.memory_space<vmem>>, vector<2x32xf32>
    %c0_1 = arith.constant 0 : index
    %c0_2 = arith.constant 0 : index
    %1 = vector.load %arg1[%c0_1, %c0_2] : memref<2x32xf32, #tpu.memory_space<vmem>>, vector<2x32xf32>
    %2 = arith.addf %0, %1 : vector<2x32xf32>
    %cst = arith.constant 5.000000e-01 : f32
    %3 = vector.broadcast %cst : f32 to vector<2x32xf32>
    %4 = arith.mulf %2, %3 : vector<2x32xf32>
    %c0_3 = arith.constant 0 : index
    %c0_4 = arith.constant 0 : index
    %5 = vector.load %arg3[%c0_3, %c0_4] : memref<32x32xf32, #tpu.memory_space<vmem>>, vector<32x32xf32>
    %cst_5 = arith.constant dense<0.000000e+00> : vector<2x32xf32>
    %6 = tpu.matmul %4, %5, %cst_5 {dimension_numbers = #tpu.dot_dimension_numbers<[1], [0], [0], [1], [0, 0, 1, 1], [], []>} : vector<2x32xf32>, vector<32x32xf32>, vector<2x32xf32> -> vector<2x32xf32>
    %c0_6 = arith.constant 0 : index
    %c0_7 = arith.constant 0 : index
    %7 = vector.load %arg4[%c0_6, %c0_7] : memref<1x32xf32, #tpu.memory_space<vmem>>, vector<1x32xf32>
    %8 = vector.broadcast %7 : vector<1x32xf32> to vector<2x32xf32>
    %9 = arith.addf %6, %8 : vector<2x32xf32>
    %c0_8 = arith.constant 0 : index
    %c0_9 = arith.constant 0 : index
    %10 = vector.load %arg5[%c0_8, %c0_9] : memref<32x32xf32, #tpu.memory_space<vmem>>, vector<32x32xf32>
    %cst_10 = arith.constant dense<0.000000e+00> : vector<2x32xf32>
    %11 = tpu.matmul %9, %10, %cst_10 {dimension_numbers = #tpu.dot_dimension_numbers<[1], [0], [0], [1], [0, 0, 1, 1], [], []>} : vector<2x32xf32>, vector<32x32xf32>, vector<2x32xf32> -> vector<2x32xf32>
    %c0_11 = arith.constant 0 : index
    %c0_12 = arith.constant 0 : index
    %12 = vector.load %arg6[%c0_11, %c0_12] : memref<1x32xf32, #tpu.memory_space<vmem>>, vector<1x32xf32>
    %13 = vector.broadcast %12 : vector<1x32xf32> to vector<2x32xf32>
    %14 = arith.addf %11, %13 : vector<2x32xf32>
    %c0_13 = arith.constant 0 : index
    %c0_14 = arith.constant 0 : index
    %15 = vector.load %arg10[%c0_13, %c0_14] : memref<2x32xf32, #tpu.memory_space<vmem>>, vector<2x32xf32>
    tpu.vector_store %arg10[%c0_13, %c0_14], %14 {strides = array<i32>} : memref<2x32xf32, #tpu.memory_space<vmem>>, vector<2x32xf32>,
    %c0_15 = arith.constant 0 : index
    %c0_16 = arith.constant 0 : index
    %16 = vector.load %arg2[%c0_15, %c0_16] : memref<2x32xf32, #tpu.memory_space<vmem>>, vector<2x32xf32>
    %c0_17 = arith.constant 0 : index
    %c0_18 = arith.constant 0 : index
    %17 = vector.load %arg7[%c0_17, %c0_18] : memref<32x20xf32, #tpu.memory_space<vmem>>, vector<32x20xf32>
    %cst_19 = arith.constant dense<0.000000e+00> : vector<2x20xf32>
    %18 = tpu.matmul %16, %17, %cst_19 {dimension_numbers = #tpu.dot_dimension_numbers<[1], [0], [0], [1], [0, 0, 1, 1], [], []>} : vector<2x32xf32>, vector<32x20xf32>, vector<2x20xf32> -> vector<2x20xf32>
    %c0_20 = arith.constant 0 : index
    %c0_21 = arith.constant 0 : index
    %19 = vector.load %arg8[%c0_20, %c0_21] : memref<32x20xf32, #tpu.memory_space<vmem>>, vector<32x20xf32>
    %cst_22 = arith.constant dense<0.000000e+00> : vector<2x20xf32>
    %20 = tpu.matmul %14, %19, %cst_22 {dimension_numbers = #tpu.dot_dimension_numbers<[1], [0], [0], [1], [0, 0, 1, 1], [], []>} : vector<2x32xf32>, vector<32x20xf32>, vector<2x20xf32> -> vector<2x20xf32>
    %21 = arith.addf %18, %20 : vector<2x20xf32>
    %c0_23 = arith.constant 0 : index
    %c0_24 = arith.constant 0 : index
    %22 = vector.load %arg9[%c0_23, %c0_24] : memref<1x20xf32, #tpu.memory_space<vmem>>, vector<1x20xf32>
    %23 = vector.broadcast %22 : vector<1x20xf32> to vector<2x20xf32>
    %24 = arith.addf %21, %23 : vector<2x20xf32>
    %c0_25 = arith.constant 0 : index
    %c0_26 = arith.constant 0 : index
    %25 = vector.load %arg11[%c0_25, %c0_26] : memref<2x20xf32, #tpu.memory_space<vmem>>, vector<2x20xf32>
    tpu.vector_store %arg11[%c0_25, %c0_26], %24 {strides = array<i32>} : memref<2x20xf32, #tpu.memory_space<vmem>>, vector<2x20xf32>,
    return
  }
}

</mosaic_0001>

<llo_original>
// kernel: cross_sensory_forward.7
$region0: #{cross_sensory_forward.7}
  #allocation0 [shape = 'u32[]', space=smem, size = 0x4, offset = 0x4, fixed_abs, tag = 'smem constant byte address 0x4 - core index']
  #allocation1 [shape = 'u32[144,128]{1,0:T(1,128)}', space=vmem, size = 0x12000, scoped, tag = 'internal scratch']
  %s0 = inlined_call_operand.vmem [shape: f32[2,32], index: 0, kind: input, shape index: {}]
  %s1 = inlined_call_operand.vmem [shape: f32[2,32], index: 1, kind: input, shape index: {}]
  %s2 = inlined_call_operand.vmem [shape: f32[2,32], index: 2, kind: input, shape index: {}]
  %s3 = inlined_call_operand.vmem [shape: f32[32,32], index: 3, kind: input, shape index: {}]
  %s4 = inlined_call_operand.vmem [shape: f32[1,32], index: 4, kind: input, shape index: {}]
  %s5 = inlined_call_operand.vmem [shape: f32[32,32], index: 5, kind: input, shape index: {}]
  %s6 = inlined_call_operand.vmem [shape: f32[1,32], index: 6, kind: input, shape index: {}]
  %s7 = inlined_call_operand.vmem [shape: f32[32,20], index: 7, kind: input, shape index: {}]
  %s8 = inlined_call_operand.vmem [shape: f32[32,20], index: 8, kind: input, shape index: {}]
  %s9 = inlined_call_operand.vmem [shape: f32[1,20], index: 9, kind: input, shape index: {}]
  %s10 = inlined_call_operand.hbm [shape: f32[2,32], index: 10, kind: output, shape index: {0}]
  %s11 = inlined_call_operand.hbm [shape: f32[2,20], index: 11, kind: output, shape index: {1}]
  %12 = xla_tuple %s10, %s11
  %s13 = sld [smem:[#allocation0]]
  $region58: #{cross_sensory_forward.7} parent=0
    _
  %s15 = ssub.s32 1, %s13
  %s16 = scalar_select 0, %s15, %s13
  $region1: #{cross_sensory_forward.7} parent=0
    #allocation2 [shape = 'u8[1024]{0}', space=vmem, size = 0x400, scoped, tag = 'output window, operand 0, single buffered']
    #allocation3 [shape = 's32[1]{0}', space=sflag, size = 0x4, scoped, tag = 'scoped memory for cross_sensory_forward.7']
    #allocation4 [shape = 'u8[1024]{0}', space=vmem, size = 0x400, scoped, tag = 'output window, operand 1, single buffered']
    #allocation5 [shape = 's32[1]{0}', space=sflag, size = 0x4, scoped, tag = 'scoped memory for cross_sensory_forward.7']
    %17 = vsyncpa [#allocation3], 0
    %18 = vsyncpa [#allocation5], 0
    // Predicated region
    $region2: #{cross_sensory_forward.7} parent=1 // pred_check
      _
    $region3: #{cross_sensory_forward.7} parent=1 // pred_check_branch
      %20 = sbr.rel (0) target = $region5
    $region4: #{cross_sensory_forward.7} parent=1 // pred_region
      _
    $region5: #{cross_sensory_forward.7} parent=1 // pred_fallthru
      _
    // Predicated region
    $region6: #{cross_sensory_forward.7} parent=1 // pred_check
      _
    $region7: #{cross_sensory_forward.7} parent=1 // pred_check_branch
      %22 = sbr.rel (0) target = $region9
    $region8: #{cross_sensory_forward.7} parent=1 // pred_region
      _
    $region9: #{cross_sensory_forward.7} parent=1 // pred_fallthru
      _
    // Predicated region
    $region10: #{cross_sensory_forward.7} parent=1 // pred_check
      _
    $region11: #{cross_sensory_forward.7} parent=1 // pred_check_branch
      %24 = sbr.rel (0) target = $region13
    $region12: #{cross_sensory_forward.7} parent=1 // pred_region
      _
    $region13: #{cross_sensory_forward.7} parent=1 // pred_fallthru
      _
    // Predicated region
    $region14: #{cross_sensory_forward.7} parent=1 // pred_check
      _
    $region15: #{cross_sensory_forward.7} parent=1 // pred_check_branch
      %26 = sbr.rel (0) target = $region17
    $region16: #{cross_sensory_forward.7} parent=1 // pred_region
      _
    $region17: #{cross_sensory_forward.7} parent=1 // pred_fallthru
      _
    // Predicated region
    $region18: #{cross_sensory_forward.7} parent=1 // pred_check
      _
    $region19: #{cross_sensory_forward.7} parent=1 // pred_check_branch
      %28 = sbr.rel (0) target = $region21
    $region20: #{cross_sensory_forward.7} parent=1 // pred_region
      _
    $region21: #{cross_sensory_forward.7} parent=1 // pred_fallthru
      _
    // Predicated region
    $region22: #{cross_sensory_forward.7} parent=1 // pred_check
      _
    $region23: #{cross_sensory_forward.7} parent=1 // pred_check_branch
      %30 = sbr.rel (0) target = $region25
    $region24: #{cross_sensory_forward.7} parent=1 // pred_region
      _
    $region25: #{cross_sensory_forward.7} parent=1 // pred_fallthru
      _
    // Predicated region
    $region26: #{cross_sensory_forward.7} parent=1 // pred_check
      _
    $region27: #{cross_sensory_forward.7} parent=1 // pred_check_branch
      %32 = sbr.rel (0) target = $region29
    $region28: #{cross_sensory_forward.7} parent=1 // pred_region
      _
    $region29: #{cross_sensory_forward.7} parent=1 // pred_fallthru
      _
    // Predicated region
    $region30: #{cross_sensory_forward.7} parent=1 // pred_check
      _
    $region31: #{cross_sensory_forward.7} parent=1 // pred_check_branch
      %34 = sbr.rel (0) target = $region33
    $region32: #{cross_sensory_forward.7} parent=1 // pred_region
      _
    $region33: #{cross_sensory_forward.7} parent=1 // pred_fallthru
      _
    // Predicated region
    $region34: #{cross_sensory_forward.7} parent=1 // pred_check
      _
    $region35: #{cross_sensory_forward.7} parent=1 // pred_check_branch
      %36 = sbr.rel (0) target = $region37
    $region36: #{cross_sensory_forward.7} parent=1 // pred_region
      _
    $region37: #{cross_sensory_forward.7} parent=1 // pred_fallthru
      _
    // Predicated region
    $region38: #{cross_sensory_forward.7} parent=1 // pred_check
      _
    $region39: #{cross_sensory_forward.7} parent=1 // pred_check_branch
      %38 = sbr.rel (0) target = $region41
    $region40: #{cross_sensory_forward.7} parent=1 // pred_region
      _
    $region41: #{cross_sensory_forward.7} parent=1 // pred_fallthru
      _
    %v39 = vld [vmem:[%s0] sm:$0x3]
    %v40 = vld [vmem:[%s1] sm:$0x3]
    %v41 = vadd.f32 %v39, %v40
    %v42 = vmul.f32 %v41, 0.5
    %v43 = vld [vmem:[%s3] sm:$0xff]
    %v44 = vld [vmem:[%s3 + $0x8] sm:$0xff]
    %v45 = vld [vmem:[%s3 + $0x10] sm:$0xff]
    %v46 = vld [vmem:[%s3 + $0x18] sm:$0xff]
    %v47 = vld [vmem:[%s4] sm:$0x1]
    %v49 = vlaneseq
    %v50 = vshrl.u32 %v49, 7
    %v51 = vsub.s32 0, %v50
    %v52 = vrot.slane %v47, %v51
    %vm54 = vcmask 261120
    %v56 = vsel %vm54, %v42, 0
    %58 = vmatprep.subr.mxu0 0.0
    %59 = vmatpush1.msra.mxu0 %v43
    %60 = vmatprep.subr.mxu0 0.0
    %61 = vmatpush1.msra.mxu0 %v44
    %62 = vmatprep.subr.mxu0 0.0
    %63 = vmatpush1.msra.mxu0 %v45
    %64 = vmatprep.subr.mxu0 0.0
    %65 = vmatpush1.msra.mxu0 %v46
    %66 = vmatprep.subr.mxu0 0.0
    %67 = vmatpush1.msra.mxu0 0.0
    %68 = vmatprep.subr.mxu0 0.0
    %69 = vmatpush1.msra.mxu0 0.0
    %70 = vmatprep.subr.mxu0 0.0
    %71 = vmatpush1.msra.mxu0 0.0
    %72 = vmatprep.subr.mxu0 0.0
    %73 = vmatpush1.msra.mxu0 0.0
    %74 = vmatprep.subr.mxu0 0.0
    %75 = vmatpush1.msra.mxu0 0.0
    %76 = vmatprep.subr.mxu0 0.0
    %77 = vmatpush1.msra.mxu0 0.0
    %78 = vmatprep.subr.mxu0 0.0
    %79 = vmatpush1.msra.mxu0 0.0
    %80 = vmatprep.subr.mxu0 0.0
    %81 = vmatpush1.msra.mxu0 0.0
    %82 = vmatprep.subr.mxu0 0.0
    %83 = vmatpush1.msra.mxu0 0.0
    %84 = vmatprep.subr.mxu0 0.0
    %85 = vmatpush1.msra.mxu0 0.0
    %86 = vmatprep.subr.mxu0 0.0
    %87 = vmatpush1.msra.mxu0 0.0
    %88 = vmatprep.subr.mxu0 0.0
    %89 = vmatpush1.msra.mxu0 0.0
    %90 = vmatprep.subr.mxu0 0.0
    %91 = vmatpush1.msra.mxu0 0.0
    %92 = vmatprep.subr.mxu0 0.0
    %93 = vmatpush1.msra.mxu0 0.0
    %94 = vmatprep.subr.mxu0 0.0
    %95 = vmatpush1.msra.mxu0 0.0
    %96 = vmatprep.subr.mxu0 0.0
    %97 = vmatpush1.msra.mxu0 0.0
    %98 = vmatprep.subr.mxu0 0.0
    %99 = vmatpush1.msra.mxu0 0.0
    %100 = vmatprep.subr.mxu0 0.0
    %101 = vmatpush1.msra.mxu0 0.0
    %102 = vmatprep.subr.mxu0 0.0
    %103 = vmatpush1.msra.mxu0 0.0
    %104 = vmatprep.subr.mxu0 0.0
    %105 = vmatpush1.msra.mxu0 0.0
    %106 = vmatprep.subr.mxu0 0.0
    %107 = vmatpush1.msra.mxu0 0.0
    %108 = vmatprep.subr.mxu0 0.0
    %109 = vmatpush1.msra.mxu0 0.0
    %110 = vmatprep.subr.mxu0 0.0
    %111 = vmatpush1.msra.mxu0 0.0
    %112 = vmatprep.subr.mxu0 0.0
    %113 = vmatpush1.msra.mxu0 0.0
    %114 = vmatprep.subr.mxu0 0.0
    %115 = vmatpush1.msra.mxu0 0.0
    %116 = vmatprep.subr.mxu0 0.0
    %117 = vmatpush1.msra.mxu0 0.0
    %118 = vmatprep.subr.mxu0 0.0
    %119 = vmatpush1.msra.mxu0 0.0
    %120 = vmatprep.subr.mxu0 0.0
    %121 = vmatpush1.msra.mxu0 0.0
    %122 = vmatprep.mubr.f32.mxu0 0.0
    %123 = vmatmul.mubr.f32.gmra.mrb[0].mxu0 %v56
    %v124 = vpop.f32.mrb[0].mxu0
    %v125 = vadd.f32 %v52, %v124
    %v126 = vpop.f32.mrb[0].mxu0
    %127 = vdwg.mxu0
    %v128 = vld [vmem:[%s5] sm:$0xff]
    %v129 = vld [vmem:[%s5 + $0x8] sm:$0xff]
    %v130 = vld [vmem:[%s5 + $0x10] sm:$0xff]
    %v131 = vld [vmem:[%s5 + $0x18] sm:$0xff]
    %v132 = vld [vmem:[%s6] sm:$0x1]
    %v134 = vlaneseq
    %v135 = vshrl.u32 %v134, 7
    %v136 = vsub.s32 0, %v135
    %v137 = vrot.slane %v132, %v136
    %v140 = vsel %vm54, %v125, 0
    %142 = vmatprep.subr.mxu0 0.0
    %143 = vmatpush1.msra.mxu0 %v128
    %144 = vmatprep.subr.mxu0 0.0
    %145 = vmatpush1.msra.mxu0 %v129
    %146 = vmatprep.subr.mxu0 0.0
    %147 = vmatpush1.msra.mxu0 %v130
    %148 = vmatprep.subr.mxu0 0.0
    %149 = vmatpush1.msra.mxu0 %v131
    %150 = vmatprep.subr.mxu0 0.0
    %151 = vmatpush1.msra.mxu0 0.0
    %152 = vmatprep.subr.mxu0 0.0
    %153 = vmatpush1.msra.mxu0 0.0
    %154 = vmatprep.subr.mxu0 0.0
    %155 = vmatpush1.msra.mxu0 0.0
    %156 = vmatprep.subr.mxu0 0.0
    %157 = vmatpush1.msra.mxu0 0.0
    %158 = vmatprep.subr.mxu0 0.0
    %159 = vmatpush1.msra.mxu0 0.0
    %160 = vmatprep.subr.mxu0 0.0
    %161 = vmatpush1.msra.mxu0 0.0
    %162 = vmatprep.subr.mxu0 0.0
    %163 = vmatpush1.msra.mxu0 0.0
    %164 = vmatprep.subr.mxu0 0.0
    %165 = vmatpush1.msra.mxu0 0.0
    %166 = vmatprep.subr.mxu0 0.0
    %167 = vmatpush1.msra.mxu0 0.0
    %168 = vmatprep.subr.mxu0 0.0
    %169 = vmatpush1.msra.mxu0 0.0
    %170 = vmatprep.subr.mxu0 0.0
    %171 = vmatpush1.msra.mxu0 0.0
    %172 = vmatprep.subr.mxu0 0.0
    %173 = vmatpush1.msra.mxu0 0.0
    %174 = vmatprep.subr.mxu0 0.0
    %175 = vmatpush1.msra.mxu0 0.0
    %176 = vmatprep.subr.mxu0 0.0
    %177 = vmatpush1.msra.mxu0 0.0
    %178 = vmatprep.subr.mxu0 0.0
    %179 = vmatpush1.msra.mxu0 0.0
    %180 = vmatprep.subr.mxu0 0.0
    %181 = vmatpush1.msra.mxu0 0.0
    %182 = vmatprep.subr.mxu0 0.0
    %183 = vmatpush1.msra.mxu0 0.0
    %184 = vmatprep.subr.mxu0 0.0
    %185 = vmatpush1.msra.mxu0 0.0
    %186 = vmatprep.subr.mxu0 0.0
    %187 = vmatpush1.msra.mxu0 0.0
    %188 = vmatprep.subr.mxu0 0.0
    %189 = vmatpush1.msra.mxu0 0.0
    %190 = vmatprep.subr.mxu0 0.0
    %191 = vmatpush1.msra.mxu0 0.0
    %192 = vmatprep.subr.mxu0 0.0
    %193 = vmatpush1.msra.mxu0 0.0
    %194 = vmatprep.subr.mxu0 0.0
    %195 = vmatpush1.msra.mxu0 0.0
    %196 = vmatprep.subr.mxu0 0.0
    %197 = vmatpush1.msra.mxu0 0.0
    %198 = vmatprep.subr.mxu0 0.0
    %199 = vmatpush1.msra.mxu0 0.0
    %200 = vmatprep.subr.mxu0 0.0
    %201 = vmatpush1.msra.mxu0 0.0
    %202 = vmatprep.subr.mxu0 0.0
    %203 = vmatpush1.msra.mxu0 0.0
    %204 = vmatprep.subr.mxu0 0.0
    %205 = vmatpush1.msra.mxu0 0.0
    %206 = vmatprep.mubr.f32.mxu0 0.0
    %207 = vmatmul.mubr.f32.gmra.mrb[0].mxu0 %v140
    %v208 = vpop.f32.mrb[0].mxu0
    %v209 = vadd.f32 %v137, %v208
    %v210 = vpop.f32.mrb[0].mxu0
    %211 = vdwg.mxu0
    %vm212 = vcmask 254976
    %213 = vst.msk [vmem:[#allocation2] sm:$0x3] %vm212, %v209
    %v214 = vld [vmem:[%s2] sm:$0x3]
    %v215 = vld [vmem:[%s7] sm:$0xff]
    %v216 = vld [vmem:[%s7 + $0x8] sm:$0xff]
    %v217 = vld [vmem:[%s7 + $0x10] sm:$0xff]
    %v218 = vld [vmem:[%s7 + $0x18] sm:$0xff]
    %v219 = vld [vmem:[%s8] sm:$0xff]
    %v220 = vld [vmem:[%s8 + $0x8] sm:$0xff]
    %v221 = vld [vmem:[%s8 + $0x10] sm:$0xff]
    %v222 = vld [vmem:[%s8 + $0x18] sm:$0xff]
    %v224 = vsel %vm54, %v209, 0
    %226 = vmatprep.subr.mxu0 0.0
    %227 = vmatpush1.msra.mxu0 %v219
    %228 = vmatprep.subr.mxu0 0.0
    %229 = vmatpush1.msra.mxu0 %v220
    %230 = vmatprep.subr.mxu0 0.0
    %231 = vmatpush1.msra.mxu0 %v221
    %232 = vmatprep.subr.mxu0 0.0
    %233 = vmatpush1.msra.mxu0 %v222
    %234 = vmatprep.subr.mxu0 0.0
    %235 = vmatpush1.msra.mxu0 0.0
    %236 = vmatprep.subr.mxu0 0.0
    %237 = vmatpush1.msra.mxu0 0.0
    %238 = vmatprep.subr.mxu0 0.0
    %239 = vmatpush1.msra.mxu0 0.0
    %240 = vmatprep.subr.mxu0 0.0
    %241 = vmatpush1.msra.mxu0 0.0
    %242 = vmatprep.subr.mxu0 0.0
    %243 = vmatpush1.msra.mxu0 0.0
    %244 = vmatprep.subr.mxu0 0.0
    %245 = vmatpush1.msra.mxu0 0.0
    %246 = vmatprep.subr.mxu0 0.0
    %247 = vmatpush1.msra.mxu0 0.0
    %248 = vmatprep.subr.mxu0 0.0
    %249 = vmatpush1.msra.mxu0 0.0
    %250 = vmatprep.subr.mxu0 0.0
    %251 = vmatpush1.msra.mxu0 0.0
    %252 = vmatprep.subr.mxu0 0.0
    %253 = vmatpush1.msra.mxu0 0.0
    %254 = vmatprep.subr.mxu0 0.0
    %255 = vmatpush1.msra.mxu0 0.0
    %256 = vmatprep.subr.mxu0 0.0
    %257 = vmatpush1.msra.mxu0 0.0
    %258 = vmatprep.subr.mxu0 0.0
    %259 = vmatpush1.msra.mxu0 0.0
    %260 = vmatprep.subr.mxu0 0.0
    %261 = vmatpush1.msra.mxu0 0.0
    %262 = vmatprep.subr.mxu0 0.0
    %263 = vmatpush1.msra.mxu0 0.0
    %264 = vmatprep.subr.mxu0 0.0
    %265 = vmatpush1.msra.mxu0 0.0
    %266 = vmatprep.subr.mxu0 0.0
    %267 = vmatpush1.msra.mxu0 0.0
    %268 = vmatprep.subr.mxu0 0.0
    %269 = vmatpush1.msra.mxu0 0.0
    %270 = vmatprep.subr.mxu0 0.0
    %271 = vmatpush1.msra.mxu0 0.0
    %272 = vmatprep.subr.mxu0 0.0
    %273 = vmatpush1.msra.mxu0 0.0
    %274 = vmatprep.subr.mxu0 0.0
    %275 = vmatpush1.msra.mxu0 0.0
    %276 = vmatprep.subr.mxu0 0.0
    %277 = vmatpush1.msra.mxu0 0.0
    %278 = vmatprep.subr.mxu0 0.0
    %279 = vmatpush1.msra.mxu0 0.0
    %280 = vmatprep.subr.mxu0 0.0
    %281 = vmatpush1.msra.mxu0 0.0
    %282 = vmatprep.subr.mxu0 0.0
    %283 = vmatpush1.msra.mxu0 0.0
    %284 = vmatprep.subr.mxu0 0.0
    %285 = vmatpush1.msra.mxu0 0.0
    %286 = vmatprep.subr.mxu0 0.0
    %287 = vmatpush1.msra.mxu0 0.0
    %288 = vmatprep.subr.mxu0 0.0
    %289 = vmatpush1.msra.mxu0 0.0
    %290 = vmatprep.mubr.f32.mxu0 0.0
    %291 = vmatmul.mubr.f32.gmra.mrb[0].mxu0 %v224
    %v292 = vpop.f32.mrb[0].mxu0
    %v293 = vadd.f32 0.0, %v292
    %v294 = vpop.f32.mrb[0].mxu0
    %295 = vdwg.mxu0
    %v297 = vsel %vm54, %v214, 0
    %299 = vmatprep.subr.mxu0 0.0
    %300 = vmatpush1.msra.mxu0 %v215
    %301 = vmatprep.subr.mxu0 0.0
    %302 = vmatpush1.msra.mxu0 %v216
    %303 = vmatprep.subr.mxu0 0.0
    %304 = vmatpush1.msra.mxu0 %v217
    %305 = vmatprep.subr.mxu0 0.0
    %306 = vmatpush1.msra.mxu0 %v218
    %307 = vmatprep.subr.mxu0 0.0
    %308 = vmatpush1.msra.mxu0 0.0
    %309 = vmatprep.subr.mxu0 0.0
    %310 = vmatpush1.msra.mxu0 0.0
    %311 = vmatprep.subr.mxu0 0.0
    %312 = vmatpush1.msra.mxu0 0.0
    %313 = vmatprep.subr.mxu0 0.0
    %314 = vmatpush1.msra.mxu0 0.0
    %315 = vmatprep.subr.mxu0 0.0
    %316 = vmatpush1.msra.mxu0 0.0
    %317 = vmatprep.subr.mxu0 0.0
    %318 = vmatpush1.msra.mxu0 0.0
    %319 = vmatprep.subr.mxu0 0.0
    %320 = vmatpush1.msra.mxu0 0.0
    %321 = vmatprep.subr.mxu0 0.0
    %322 = vmatpush1.msra.mxu0 0.0
    %323 = vmatprep.subr.mxu0 0.0
    %324 = vmatpush1.msra.mxu0 0.0
    %325 = vmatprep.subr.mxu0 0.0
    %326 = vmatpush1.msra.mxu0 0.0
    %327 = vmatprep.subr.mxu0 0.0
    %328 = vmatpush1.msra.mxu0 0.0
    %329 = vmatprep.subr.mxu0 0.0
    %330 = vmatpush1.msra.mxu0 0.0
    %331 = vmatprep.subr.mxu0 0.0
    %332 = vmatpush1.msra.mxu0 0.0
    %333 = vmatprep.subr.mxu0 0.0
    %334 = vmatpush1.msra.mxu0 0.0
    %335 = vmatprep.subr.mxu0 0.0
    %336 = vmatpush1.msra.mxu0 0.0
    %337 = vmatprep.subr.mxu0 0.0
    %338 = vmatpush1.msra.mxu0 0.0
    %339 = vmatprep.subr.mxu0 0.0
    %340 = vmatpush1.msra.mxu0 0.0
    %341 = vmatprep.subr.mxu0 0.0
    %342 = vmatpush1.msra.mxu0 0.0
    %343 = vmatprep.subr.mxu0 0.0
    %344 = vmatpush1.msra.mxu0 0.0
    %345 = vmatprep.subr.mxu0 0.0
    %346 = vmatpush1.msra.mxu0 0.0
    %347 = vmatprep.subr.mxu0 0.0
    %348 = vmatpush1.msra.mxu0 0.0
    %349 = vmatprep.subr.mxu0 0.0
    %350 = vmatpush1.msra.mxu0 0.0
    %351 = vmatprep.subr.mxu0 0.0
    %352 = vmatpush1.msra.mxu0 0.0
    %353 = vmatprep.subr.mxu0 0.0
    %354 = vmatpush1.msra.mxu0 0.0
    %355 = vmatprep.subr.mxu0 0.0
    %356 = vmatpush1.msra.mxu0 0.0
    %357 = vmatprep.subr.mxu0 0.0
    %358 = vmatpush1.msra.mxu0 0.0
    %359 = vmatprep.subr.mxu0 0.0
    %360 = vmatpush1.msra.mxu0 0.0
    %361 = vmatprep.subr.mxu0 0.0
    %362 = vmatpush1.msra.mxu0 0.0
    %363 = vmatprep.mubr.f32.mxu0 0.0
    %364 = vmatmul.mubr.f32.gmra.mrb[0].mxu0 %v297
    %v365 = vpop.f32.mrb[0].mxu0
    %v366 = vadd.f32 %v293, %v365
    %v367 = vpop.f32.mrb[0].mxu0
    %368 = vdwg.mxu0
    %v369 = vld [vmem:[%s9] sm:$0x1]
    %v371 = vlaneseq
    %v372 = vshrl.u32 %v371, 7
    %v373 = vsub.s32 0, %v372
    %v374 = vrot.slane %v369, %v373
    %v376 = vadd.f32 %v366, %v374
    %vm377 = vcmask 156672
    %378 = vst.msk [vmem:[#allocation4] sm:$0x3] %vm377, %v376
    // Predicated region
    $region42: #{cross_sensory_forward.7} parent=1 // pred_check
      _
    $region43: #{cross_sensory_forward.7} parent=1 // pred_check_branch
      %380 = sbr.rel (0) target = $region45
    $region44: #{cross_sensory_forward.7} parent=1 // pred_region
      %s382 = ssub.s32 32, 32
      %383 = vsyncadd [#allocation3], %s382
      %s385 = sshll.u32 [#allocation2], 4
      %s386 = int_to_ptr.vmem [resolvable:$true] %s385
      %388 = dma.vmem_to_hbm [thread:$0]  %s386, 32, %s10, [#allocation3]
    $region45: #{cross_sensory_forward.7} parent=1 // pred_fallthru
      _
    // Predicated region
    $region46: #{cross_sensory_forward.7} parent=1 // pred_check
      _
    $region47: #{cross_sensory_forward.7} parent=1 // pred_check_branch
      %390 = sbr.rel (0) target = $region49
    $region48: #{cross_sensory_forward.7} parent=1 // pred_region
      %s392 = ssub.s32 32, 32
      %393 = vsyncadd [#allocation5], %s392
      %s395 = sshll.u32 [#allocation4], 4
      %s396 = int_to_ptr.vmem [resolvable:$true] %s395
      %398 = dma.vmem_to_hbm [thread:$0]  %s396, 32, %s11, [#allocation5]
    $region49: #{cross_sensory_forward.7} parent=1 // pred_fallthru
      _
    // Predicated region
    $region50: #{cross_sensory_forward.7} parent=1 // pred_check
      _
    $region51: #{cross_sensory_forward.7} parent=1 // pred_check_branch
      %400 = sbr.rel (0) target = $region53
    $region52: #{cross_sensory_forward.7} parent=1 // pred_region
      %401 = dma.done [#allocation3], 32
    $region53: #{cross_sensory_forward.7} parent=1 // pred_fallthru
      _
    // Predicated region
    $region54: #{cross_sensory_forward.7} parent=1 // pred_check
      _
    $region55: #{cross_sensory_forward.7} parent=1 // pred_check_branch
      %403 = sbr.rel (0) target = $region57
    $region56: #{cross_sensory_forward.7} parent=1 // pred_region
      %404 = dma.done [#allocation5], 32
    $region57: #{cross_sensory_forward.7} parent=1 // pred_fallthru
      _
    %405 = vsyncpa [#allocation3], 1
    %406 = vsyncpa [#allocation5], 1

// kernel: cross_sensory_forward.4
$region0: #{cross_sensory_forward.4}
  #allocation0 [shape = 'u32[]', space=smem, size = 0x4, offset = 0x4, fixed_abs, tag = 'smem constant byte address 0x4 - core index']
  #allocation1 [shape = 'u32[144,128]{1,0:T(1,128)}', space=vmem, size = 0x12000, scoped, tag = 'internal scratch']
  %s0 = inlined_call_operand.vmem [shape: f32[392,27], index: 0, kind: input, shape index: {}]
  %s1 = inlined_call_operand.vmem [shape: f32[27,64], index: 1, kind: input, shape index: {}]
  %s2 = inlined_call_operand.vmem [shape: f32[1,64], index: 2, kind: input, shape index: {}]
  %s3 = inlined_call_operand.vmem [shape: f32[2,392], index: 3, kind: input, shape index: {}]
  %s4 = inlined_call_operand.vmem [shape: f32[64,32], index: 4, kind: input, shape index: {}]
  %s5 = inlined_call_operand.vmem [shape: f32[1,32], index: 5, kind: input, shape index: {}]
  %s6 = inlined_call_operand.vmem [shape: f32[2,32], index: 6, kind: output, shape index: {}]
  %s7 = sld [smem:[#allocation0]]
  $region34: #{cross_sensory_forward.4} parent=0
    _
  %s9 = ssub.s32 1, %s7
  %s10 = scalar_select 0, %s9, %s7
  // Predicated region
  $region2: #{cross_sensory_forward.4} parent=0 // pred_check
    _
  $region3: #{cross_sensory_forward.4} parent=0 // pred_check_branch
    %12 = sbr.rel (0) target = $region5
  $region4: #{cross_sensory_forward.4} parent=0 // pred_region
    _
  $region5: #{cross_sensory_forward.4} parent=0 // pred_fallthru
    _
  // Predicated region
  $region6: #{cross_sensory_forward.4} parent=0 // pred_check
    _
  $region7: #{cross_sensory_forward.4} parent=0 // pred_check_branch
    %14 = sbr.rel (0) target = $region9
  $region8: #{cross_sensory_forward.4} parent=0 // pred_region
    _
  $region9: #{cross_sensory_forward.4} parent=0 // pred_fallthru
    _
  // Predicated region
  $region10: #{cross_sensory_forward.4} parent=0 // pred_check
    _
  $region11: #{cross_sensory_forward.4} parent=0 // pred_check_branch
    %16 = sbr.rel (0) target = $region13
  $region12: #{cross_sensory_forward.4} parent=0 // pred_region
    _
  $region13: #{cross_sensory_forward.4} parent=0 // pred_fallthru
    _
  // Predicated region
  $region14: #{cross_sensory_forward.4} parent=0 // pred_check
    _
  $region15: #{cross_sensory_forward.4} parent=0 // pred_check_branch
    %18 = sbr.rel (0) target = $region17
  $region16: #{cross_sensory_forward.4} parent=0 // pred_region
    _
  $region17: #{cross_sensory_forward.4} parent=0 // pred_fallthru
    _
  // Predicated region
  $region18: #{cross_sensory_forward.4} parent=0 // pred_check
    _
  $region19: #{cross_sensory_forward.4} parent=0 // pred_check_branch
    %20 = sbr.rel (0) target = $region21
  $region20: #{cross_sensory_forward.4} parent=0 // pred_region
    _
  $region21: #{cross_sensory_forward.4} parent=0 // pred_fallthru
    _
  // Predicated region
  $region22: #{cross_sensory_forward.4} parent=0 // pred_check
    _
  $region23: #{cross_sensory_forward.4} parent=0 // pred_check_branch
    %22 = sbr.rel (0) target = $region25
  $region24: #{cross_sensory_forward.4} parent=0 // pred_region
    _
  $region25: #{cross_sensory_forward.4} parent=0 // pred_fallthru
    _
  %v23 = vld [vmem:[%s0] sm:$0xff]
  %v24 = vld [vmem:[%s0 + $0x8] sm:$0xff]
  %v25 = vld [vmem:[%s0 + $0x10] sm:$0xff]
  %v26 = vld [vmem:[%s0 + $0x18] sm:$0xff]
  %v27 = vld [vmem:[%s0 + $0x20] sm:$0xff]
  %v28 = vld [vmem:[%s0 + $0x28] sm:$0xff]
  %v29 = vld [vmem:[%s0 + $0x30] sm:$0xff]
  %v30 = vld [vmem:[%s0 + $0x38] sm:$0xff]
  %v31 = vld [vmem:[%s0 + $0x40] sm:$0xff]
  %v32 = vld [vmem:[%s0 + $0x48] sm:$0xff]
  %v33 = vld [vmem:[%s0 + $0x50] sm:$0xff]
  %v34 = vld [vmem:[%s0 + $0x58] sm:$0xff]
  %v35 = vld [vmem:[%s0 + $0x60] sm:$0xff]
  %v36 = vld [vmem:[%s0 + $0x68] sm:$0xff]
  %v37 = vld [vmem:[%s0 + $0x70] sm:$0xff]
  %v38 = vld [vmem:[%s0 + $0x78] sm:$0xff]
  %v39 = vld [vmem:[%s0 + $0x80] sm:$0xff]
  %v40 = vld [vmem:[%s0 + $0x88] sm:$0xff]
  %v41 = vld [vmem:[%s0 + $0x90] sm:$0xff]
  %v42 = vld [vmem:[%s0 + $0x98] sm:$0xff]
  %v43 = vld [vmem:[%s0 + $0xa0] sm:$0xff]
  %v44 = vld [vmem:[%s0 + $0xa8] sm:$0xff]
  %v45 = vld [vmem:[%s0 + $0xb0] sm:$0xff]
  %v46 = vld [vmem:[%s0 + $0xb8] sm:$0xff]
  %v47 = vld [vmem:[%s0 + $0xc0] sm:$0xff]
  %v48 = vld [vmem:[%s0 + $0xc8] sm:$0xff]
  %v49 = vld [vmem:[%s0 + $0xd0] sm:$0xff]
  %v50 = vld [vmem:[%s0 + $0xd8] sm:$0xff]
  %v51 = vld [vmem:[%s0 + $0xe0] sm:$0xff]
  %v52 = vld [vmem:[%s0 + $0xe8] sm:$0xff]
  %v53 = vld [vmem:[%s0 + $0xf0] sm:$0xff]
  %v54 = vld [vmem:[%s0 + $0xf8] sm:$0xff]
  %v55 = vld [vmem:[%s0 + $0x100] sm:$0xff]
  %v56 = vld [vmem:[%s0 + $0x108] sm:$0xff]
  %v57 = vld [vmem:[%s0 + $0x110] sm:$0xff]
  %v58 = vld [vmem:[%s0 + $0x118] sm:$0xff]
  %v59 = vld [vmem:[%s0 + $0x120] sm:$0xff]
  %v60 = vld [vmem:[%s0 + $0x128] sm:$0xff]
  %v61 = vld [vmem:[%s0 + $0x130] sm:$0xff]
  %v62 = vld [vmem:[%s0 + $0x138] sm:$0xff]
  %v63 = vld [vmem:[%s0 + $0x140] sm:$0xff]
  %v64 = vld [vmem:[%s0 + $0x148] sm:$0xff]
  %v65 = vld [vmem:[%s0 + $0x150] sm:$0xff]
  %v66 = vld [vmem:[%s0 + $0x158] sm:$0xff]
  %v67 = vld [vmem:[%s0 + $0x160] sm:$0xff]
  %v68 = vld [vmem:[%s0 + $0x168] sm:$0xff]
  %v69 = vld [vmem:[%s0 + $0x170] sm:$0xff]
  %v70 = vld [vmem:[%s0 + $0x178] sm:$0xff]
  %v71 = vld [vmem:[%s0 + $0x180] sm:$0xff]
  %v72 = vld [vmem:[%s1] sm:$0xff]
  %v73 = vld [vmem:[%s1 + $0x8] sm:$0xff]
  %v74 = vld [vmem:[%s1 + $0x10] sm:$0xff]
  %v75 = vld [vmem:[%s1 + $0x18] sm:$0x7]
  %v76 = vld [vmem:[%s2] sm:$0x1]
  %v78 = vlaneseq
  %v79 = vshrl.u32 %v78, 7
  %v80 = vsub.s32 0, %v79
  %v81 = vrot.slane %v76, %v80
  %vm83 = vcmask 220160
  %v85 = vsel %vm83, %v23, 0
  %v88 = vsel %vm83, %v24, 0
  %v91 = vsel %vm83, %v25, 0
  %v94 = vsel %vm83, %v26, 0
  %v97 = vsel %vm83, %v27, 0
  %v100 = vsel %vm83, %v28, 0
  %v103 = vsel %vm83, %v29, 0
  %v106 = vsel %vm83, %v30, 0
  %v109 = vsel %vm83, %v31, 0
  %v112 = vsel %vm83, %v32, 0
  %v115 = vsel %vm83, %v33, 0
  %v118 = vsel %vm83, %v34, 0
  %v121 = vsel %vm83, %v35, 0
  %v124 = vsel %vm83, %v36, 0
  %v127 = vsel %vm83, %v37, 0
  %v130 = vsel %vm83, %v38, 0
  %v133 = vsel %vm83, %v39, 0
  %v136 = vsel %vm83, %v40, 0
  %v139 = vsel %vm83, %v41, 0
  %v142 = vsel %vm83, %v42, 0
  %v145 = vsel %vm83, %v43, 0
  %v148 = vsel %vm83, %v44, 0
  %v151 = vsel %vm83, %v45, 0
  %v154 = vsel %vm83, %v46, 0
  %v157 = vsel %vm83, %v47, 0
  %v160 = vsel %vm83, %v48, 0
  %v163 = vsel %vm83, %v49, 0
  %v166 = vsel %vm83, %v50, 0
  %v169 = vsel %vm83, %v51, 0
  %v172 = vsel %vm83, %v52, 0
  %v175 = vsel %vm83, %v53, 0
  %v178 = vsel %vm83, %v54, 0
  %v181 = vsel %vm83, %v55, 0
  %v184 = vsel %vm83, %v56, 0
  %v187 = vsel %vm83, %v57, 0
  %v190 = vsel %vm83, %v58, 0
  %v193 = vsel %vm83, %v59, 0
  %v196 = vsel %vm83, %v60, 0
  %v199 = vsel %vm83, %v61, 0
  %v202 = vsel %vm83, %v62, 0
  %v205 = vsel %vm83, %v63, 0
  %v208 = vsel %vm83, %v64, 0
  %v211 = vsel %vm83, %v65, 0
  %v214 = vsel %vm83, %v66, 0
  %v217 = vsel %vm83, %v67, 0
  %v220 = vsel %vm83, %v68, 0
  %v223 = vsel %vm83, %v69, 0
  %v226 = vsel %vm83, %v70, 0
  %v229 = vsel %vm83, %v71, 0
  %vm231 = vcmask 1042432
  %v233 = vsel %vm231, %v75, 0
  %235 = vmatprep.subr.mxu0 0.0
  %236 = vmatpush1.msra.mxu0 %v72
  %237 = vmatprep.subr.mxu0 0.0
  %238 = vmatpush1.msra.mxu0 %v73
  %239 = vmatprep.subr.mxu0 0.0
  %240 = vmatpush1.msra.mxu0 %v74
  %241 = vmatprep.subr.mxu0 0.0
  %242 = vmatpush1.msra.mxu0 %v233
  %243 = vmatprep.subr.mxu0 0.0
  %244 = vmatpush1.msra.mxu0 0.0
  %245 = vmatprep.subr.mxu0 0.0
  %246 = vmatpush1.msra.mxu0 0.0
  %247 = vmatprep.subr.mxu0 0.0
  %248 = vmatpush1.msra.mxu0 0.0
  %249 = vmatprep.subr.mxu0 0.0
  %250 = vmatpush1.msra.mxu0 0.0
  %251 = vmatprep.subr.mxu0 0.0
  %252 = vmatpush1.msra.mxu0 0.0
  %253 = vmatprep.subr.mxu0 0.0
  %254 = vmatpush1.msra.mxu0 0.0
  %255 = vmatprep.subr.mxu0 0.0
  %256 = vmatpush1.msra.mxu0 0.0
  %257 = vmatprep.subr.mxu0 0.0
  %258 = vmatpush1.msra.mxu0 0.0
  %259 = vmatprep.subr.mxu0 0.0
  %260 = vmatpush1.msra.mxu0 0.0
  %261 = vmatprep.subr.mxu0 0.0
  %262 = vmatpush1.msra.mxu0 0.0
  %263 = vmatprep.subr.mxu0 0.0
  %264 = vmatpush1.msra.mxu0 0.0
  %265 = vmatprep.subr.mxu0 0.0
  %266 = vmatpush1.msra.mxu0 0.0
  %267 = vmatprep.subr.mxu0 0.0
  %268 = vmatpush1.msra.mxu0 0.0
  %269 = vmatprep.subr.mxu0 0.0
  %270 = vmatpush1.msra.mxu0 0.0
  %271 = vmatprep.subr.mxu0 0.0
  %272 = vmatpush1.msra.mxu0 0.0
  %273 = vmatprep.subr.mxu0 0.0
  %274 = vmatpush1.msra.mxu0 0.0
  %275 = vmatprep.subr.mxu0 0.0
  %276 = vmatpush1.msra.mxu0 0.0
  %277 = vmatprep.subr.mxu0 0.0
  %278 = vmatpush1.msra.mxu0 0.0
  %279 = vmatprep.subr.mxu0 0.0
  %280 = vmatpush1.msra.mxu0 0.0
  %281 = vmatprep.subr.mxu0 0.0
  %282 = vmatpush1.msra.mxu0 0.0
  %283 = vmatprep.subr.mxu0 0.0
  %284 = vmatpush1.msra.mxu0 0.0
  %285 = vmatprep.subr.mxu0 0.0
  %286 = vmatpush1.msra.mxu0 0.0
  %287 = vmatprep.subr.mxu0 0.0
  %288 = vmatpush1.msra.mxu0 0.0
  %289 = vmatprep.subr.mxu0 0.0
  %290 = vmatpush1.msra.mxu0 0.0
  %291 = vmatprep.subr.mxu0 0.0
  %292 = vmatpush1.msra.mxu0 0.0
  %293 = vmatprep.subr.mxu0 0.0
  %294 = vmatpush1.msra.mxu0 0.0
  %295 = vmatprep.subr.mxu0 0.0
  %296 = vmatpush1.msra.mxu0 0.0
  %297 = vmatprep.subr.mxu0 0.0
  %298 = vmatpush1.msra.mxu0 0.0
  %299 = vmatprep.mubr.f32.mxu0 0.0
  %300 = vmatmul.mubr.f32.gmra.mrb[0].mxu0 %v85
  %v301 = vpop.f32.mrb[0].mxu0
  %v302 = vadd.f32 %v81, %v301
  %v303 = vpop.f32.mrb[0].mxu0
  %304 = vmatprep.mubr.f32.mxu0 0.0
  %305 = vmatmul.mubr.f32.gmra.mrb[0].mxu0 %v88
  %v306 = vpop.f32.mrb[0].mxu0
  %v307 = vadd.f32 %v81, %v306
  %v308 = vpop.f32.mrb[0].mxu0
  %309 = vmatprep.mubr.f32.mxu0 0.0
  %310 = vmatmul.mubr.f32.gmra.mrb[0].mxu0 %v91
  %v311 = vpop.f32.mrb[0].mxu0
  %v312 = vadd.f32 %v81, %v311
  %v313 = vpop.f32.mrb[0].mxu0
  %314 = vmatprep.mubr.f32.mxu0 0.0
  %315 = vmatmul.mubr.f32.gmra.mrb[0].mxu0 %v94
  %v316 = vpop.f32.mrb[0].mxu0
  %v317 = vadd.f32 %v81, %v316
  %v318 = vpop.f32.mrb[0].mxu0
  %319 = vmatprep.mubr.f32.mxu0 0.0
  %320 = vmatmul.mubr.f32.gmra.mrb[0].mxu0 %v97
  %v321 = vpop.f32.mrb[0].mxu0
  %v322 = vadd.f32 %v81, %v321
  %v323 = vpop.f32.mrb[0].mxu0
  %324 = vmatprep.mubr.f32.mxu0 0.0
  %325 = vmatmul.mubr.f32.gmra.mrb[0].mxu0 %v100
  %v326 = vpop.f32.mrb[0].mxu0
  %v327 = vadd.f32 %v81, %v326
  %v328 = vpop.f32.mrb[0].mxu0
  %329 = vmatprep.mubr.f32.mxu0 0.0
  %330 = vmatmul.mubr.f32.gmra.mrb[0].mxu0 %v103
  %v331 = vpop.f32.mrb[0].mxu0
  %v332 = vadd.f32 %v81, %v331
  %v333 = vpop.f32.mrb[0].mxu0
  %334 = vmatprep.mubr.f32.mxu0 0.0
  %335 = vmatmul.mubr.f32.gmra.mrb[0].mxu0 %v106
  %v336 = vpop.f32.mrb[0].mxu0
  %v337 = vadd.f32 %v81, %v336
  %v338 = vpop.f32.mrb[0].mxu0
  %339 = vmatprep.mubr.f32.mxu0 0.0
  %340 = vmatmul.mubr.f32.gmra.mrb[0].mxu0 %v109
  %v341 = vpop.f32.mrb[0].mxu0
  %v342 = vadd.f32 %v81, %v341
  %v343 = vpop.f32.mrb[0].mxu0
  %344 = vmatprep.mubr.f32.mxu0 0.0
  %345 = vmatmul.mubr.f32.gmra.mrb[0].mxu0 %v112
  %v346 = vpop.f32.mrb[0].mxu0
  %v347 = vadd.f32 %v81, %v346
  %v348 = vpop.f32.mrb[0].mxu0
  %349 = vmatprep.mubr.f32.mxu0 0.0
  %350 = vmatmul.mubr.f32.gmra.mrb[0].mxu0 %v115
  %v351 = vpop.f32.mrb[0].mxu0
  %v352 = vadd.f32 %v81, %v351
  %v353 = vpop.f32.mrb[0].mxu0
  %354 = vmatprep.mubr.f32.mxu0 0.0
  %355 = vmatmul.mubr.f32.gmra.mrb[0].mxu0 %v118
  %v356 = vpop.f32.mrb[0].mxu0
  %v357 = vadd.f32 %v81, %v356
  %v358 = vpop.f32.mrb[0].mxu0
  %359 = vmatprep.mubr.f32.mxu0 0.0
  %360 = vmatmul.mubr.f32.gmra.mrb[0].mxu0 %v121
  %v361 = vpop.f32.mrb[0].mxu0
  %v362 = vadd.f32 %v81, %v361
  %v363 = vpop.f32.mrb[0].mxu0
  %364 = vmatprep.mubr.f32.mxu0 0.0
  %365 = vmatmul.mubr.f32.gmra.mrb[0].mxu0 %v124
  %v366 = vpop.f32.mrb[0].mxu0
  %v367 = vadd.f32 %v81, %v366
  %v368 = vpop.f32.mrb[0].mxu0
  %369 = vmatprep.mubr.f32.mxu0 0.0
  %370 = vmatmul.mubr.f32.gmra.mrb[0].mxu0 %v127
  %v371 = vpop.f32.mrb[0].mxu0
  %v372 = vadd.f32 %v81, %v371
  %v373 = vpop.f32.mrb[0].mxu0
  %374 = vmatprep.mubr.f32.mxu0 0.0
  %375 = vmatmul.mubr.f32.gmra.mrb[0].mxu0 %v130
  %v376 = vpop.f32.mrb[0].mxu0
  %v377 = vadd.f32 %v81, %v376
  %v378 = vpop.f32.mrb[0].mxu0
  %379 = vmatprep.mubr.f32.mxu0 0.0
  %380 = vmatmul.mubr.f32.gmra.mrb[0].mxu0 %v133
  %v381 = vpop.f32.mrb[0].mxu0
  %v382 = vadd.f32 %v81, %v381
  %v383 = vpop.f32.mrb[0].mxu0
  %384 = vmatprep.mubr.f32.mxu0 0.0
  %385 = vmatmul.mubr.f32.gmra.mrb[0].mxu0 %v136
  %v386 = vpop.f32.mrb[0].mxu0
  %v387 = vadd.f32 %v81, %v386
  %v388 = vpop.f32.mrb[0].mxu0
  %389 = vmatprep.mubr.f32.mxu0 0.0
  %390 = vmatmul.mubr.f32.gmra.mrb[0].mxu0 %v139
  %v391 = vpop.f32.mrb[0].mxu0
  %v392 = vadd.f32 %v81, %v391
  %v393 = vpop.f32.mrb[0].mxu0
  %394 = vmatprep.mubr.f32.mxu0 0.0
  %395 = vmatmul.mubr.f32.gmra.mrb[0].mxu0 %v142
  %v396 = vpop.f32.mrb[0].mxu0
  %v397 = vadd.f32 %v81, %v396
  %v398 = vpop.f32.mrb[0].mxu0
  %399 = vmatprep.mubr.f32.mxu0 0.0
  %400 = vmatmul.mubr.f32.gmra.mrb[0].mxu0 %v145
  %v401 = vpop.f32.mrb[0].mxu0
  %v402 = vadd.f32 %v81, %v401
  %v403 = vpop.f32.mrb[0].mxu0
  %404 = vmatprep.mubr.f32.mxu0 0.0
  %405 = vmatmul.mubr.f32.gmra.mrb[0].mxu0 %v148
  %v406 = vpop.f32.mrb[0].mxu0
  %v407 = vadd.f32 %v81, %v406
  %v408 = vpop.f32.mrb[0].mxu0
  %409 = vmatprep.mubr.f32.mxu0 0.0
  %410 = vmatmul.mubr.f32.gmra.mrb[0].mxu0 %v151
  %v411 = vpop.f32.mrb[0].mxu0
  %v412 = vadd.f32 %v81, %v411
  %v413 = vpop.f32.mrb[0].mxu0
  %414 = vmatprep.mubr.f32.mxu0 0.0
  %415 = vmatmul.mubr.f32.gmra.mrb[0].mxu0 %v154
  %v416 = vpop.f32.mrb[0].mxu0
  %v417 = vadd.f32 %v81, %v416
  %v418 = vpop.f32.mrb[0].mxu0
  %419 = vmatprep.mubr.f32.mxu0 0.0
  %420 = vmatmul.mubr.f32.gmra.mrb[0].mxu0 %v157
  %v421 = vpop.f32.mrb[0].mxu0
  %v422 = vadd.f32 %v81, %v421
  %v423 = vpop.f32.mrb[0].mxu0
  %424 = vmatprep.mubr.f32.mxu0 0.0
  %425 = vmatmul.mubr.f32.gmra.mrb[0].mxu0 %v160
  %v426 = vpop.f32.mrb[0].mxu0
  %v427 = vadd.f32 %v81, %v426
  %v428 = vpop.f32.mrb[0].mxu0
  %429 = vmatprep.mubr.f32.mxu0 0.0
  %430 = vmatmul.mubr.f32.gmra.mrb[0].mxu0 %v163
  %v431 = vpop.f32.mrb[0].mxu0
  %v432 = vadd.f32 %v81, %v431
  %v433 = vpop.f32.mrb[0].mxu0
  %434 = vmatprep.mubr.f32.mxu0 0.0
  %435 = vmatmul.mubr.f32.gmra.mrb[0].mxu0 %v166
  %v436 = vpop.f32.mrb[0].mxu0
  %v437 = vadd.f32 %v81, %v436
  %v438 = vpop.f32.mrb[0].mxu0
  %439 = vmatprep.mubr.f32.mxu0 0.0
  %440 = vmatmul.mubr.f32.gmra.mrb[0].mxu0 %v169
  %v441 = vpop.f32.mrb[0].mxu0
  %v442 = vadd.f32 %v81, %v441
  %v443 = vpop.f32.mrb[0].mxu0
  %444 = vmatprep.mubr.f32.mxu0 0.0
  %445 = vmatmul.mubr.f32.gmra.mrb[0].mxu0 %v172
  %v446 = vpop.f32.mrb[0].mxu0
  %v447 = vadd.f32 %v81, %v446
  %v448 = vpop.f32.mrb[0].mxu0
  %449 = vmatprep.mubr.f32.mxu0 0.0
  %450 = vmatmul.mubr.f32.gmra.mrb[0].mxu0 %v175
  %v451 = vpop.f32.mrb[0].mxu0
  %v452 = vadd.f32 %v81, %v451
  %v453 = vpop.f32.mrb[0].mxu0
  %454 = vmatprep.mubr.f32.mxu0 0.0
  %455 = vmatmul.mubr.f32.gmra.mrb[0].mxu0 %v178
  %v456 = vpop.f32.mrb[0].mxu0
  %v457 = vadd.f32 %v81, %v456
  %v458 = vpop.f32.mrb[0].mxu0
  %459 = vmatprep.mubr.f32.mxu0 0.0
  %460 = vmatmul.mubr.f32.gmra.mrb[0].mxu0 %v181
  %v461 = vpop.f32.mrb[0].mxu0
  %v462 = vadd.f32 %v81, %v461
  %v463 = vpop.f32.mrb[0].mxu0
  %464 = vmatprep.mubr.f32.mxu0 0.0
  %465 = vmatmul.mubr.f32.gmra.mrb[0].mxu0 %v184
  %v466 = vpop.f32.mrb[0].mxu0
  %v467 = vadd.f32 %v81, %v466
  %v468 = vpop.f32.mrb[0].mxu0
  %469 = vmatprep.mubr.f32.mxu0 0.0
  %470 = vmatmul.mubr.f32.gmra.mrb[0].mxu0 %v187
  %v471 = vpop.f32.mrb[0].mxu0
  %v472 = vadd.f32 %v81, %v471
  %v473 = vpop.f32.mrb[0].mxu0
  %474 = vmatprep.mubr.f32.mxu0 0.0
  %475 = vmatmul.mubr.f32.gmra.mrb[0].mxu0 %v190
  %v476 = vpop.f32.mrb[0].mxu0
  %v477 = vadd.f32 %v81, %v476
  %v478 = vpop.f32.mrb[0].mxu0
  %479 = vmatprep.mubr.f32.mxu0 0.0
  %480 = vmatmul.mubr.f32.gmra.mrb[0].mxu0 %v193
  %v481 = vpop.f32.mrb[0].mxu0
  %v482 = vadd.f32 %v81, %v481
  %v483 = vpop.f32.mrb[0].mxu0
  %484 = vmatprep.mubr.f32.mxu0 0.0
  %485 = vmatmul.mubr.f32.gmra.mrb[0].mxu0 %v196
  %v486 = vpop.f32.mrb[0].mxu0
  %v487 = vadd.f32 %v81, %v486
  %v488 = vpop.f32.mrb[0].mxu0
  %489 = vmatprep.mubr.f32.mxu0 0.0
  %490 = vmatmul.mubr.f32.gmra.mrb[0].mxu0 %v199
  %v491 = vpop.f32.mrb[0].mxu0
  %v492 = vadd.f32 %v81, %v491
  %v493 = vpop.f32.mrb[0].mxu0
  %494 = vmatprep.mubr.f32.mxu0 0.0
  %495 = vmatmul.mubr.f32.gmra.mrb[0].mxu0 %v202
  %v496 = vpop.f32.mrb[0].mxu0
  %v497 = vadd.f32 %v81, %v496
  %v498 = vpop.f32.mrb[0].mxu0
  %499 = vmatprep.mubr.f32.mxu0 0.0
  %500 = vmatmul.mubr.f32.gmra.mrb[0].mxu0 %v205
  %v501 = vpop.f32.mrb[0].mxu0
  %v502 = vadd.f32 %v81, %v501
  %v503 = vpop.f32.mrb[0].mxu0
  %504 = vmatprep.mubr.f32.mxu0 0.0
  %505 = vmatmul.mubr.f32.gmra.mrb[0].mxu0 %v208
  %v506 = vpop.f32.mrb[0].mxu0
  %v507 = vadd.f32 %v81, %v506
  %v508 = vpop.f32.mrb[0].mxu0
  %509 = vmatprep.mubr.f32.mxu0 0.0
  %510 = vmatmul.mubr.f32.gmra.mrb[0].mxu0 %v211
  %v511 = vpop.f32.mrb[0].mxu0
  %v512 = vadd.f32 %v81, %v511
  %v513 = vpop.f32.mrb[0].mxu0
  %514 = vmatprep.mubr.f32.mxu0 0.0
  %515 = vmatmul.mubr.f32.gmra.mrb[0].mxu0 %v214
  %v516 = vpop.f32.mrb[0].mxu0
  %v517 = vadd.f32 %v81, %v516
  %v518 = vpop.f32.mrb[0].mxu0
  %519 = vmatprep.mubr.f32.mxu0 0.0
  %520 = vmatmul.mubr.f32.gmra.mrb[0].mxu0 %v217
  %v521 = vpop.f32.mrb[0].mxu0
  %v522 = vadd.f32 %v81, %v521
  %v523 = vpop.f32.mrb[0].mxu0
  %524 = vmatprep.mubr.f32.mxu0 0.0
  %525 = vmatmul.mubr.f32.gmra.mrb[0].mxu0 %v220
  %v526 = vpop.f32.mrb[0].mxu0
  %v527 = vadd.f32 %v81, %v526
  %v528 = vpop.f32.mrb[0].mxu0
  %529 = vmatprep.mubr.f32.mxu0 0.0
  %530 = vmatmul.mubr.f32.gmra.mrb[0].mxu0 %v223
  %v531 = vpop.f32.mrb[0].mxu0
  %v532 = vadd.f32 %v81, %v531
  %v533 = vpop.f32.mrb[0].mxu0
  %534 = vmatprep.mubr.f32.mxu0 0.0
  %535 = vmatmul.mubr.f32.gmra.mrb[0].mxu0 %v226
  %v536 = vpop.f32.mrb[0].mxu0
  %v537 = vadd.f32 %v81, %v536
  %v538 = vpop.f32.mrb[0].mxu0
  %539 = vmatprep.mubr.f32.mxu0 0.0
  %540 = vmatmul.mubr.f32.gmra.mrb[0].mxu0 %v229
  %v541 = vpop.f32.mrb[0].mxu0
  %v542 = vadd.f32 %v81, %v541
  %v543 = vpop.f32.mrb[0].mxu0
  %544 = vdwg.mxu0
  %v545 = vmax.f32 %v302, 0.0
  %v546 = vmax.f32 %v307, 0.0
  %v547 = vmax.f32 %v312, 0.0
  %v548 = vmax.f32 %v317, 0.0
  %v549 = vmax.f32 %v322, 0.0
  %v550 = vmax.f32 %v327, 0.0
  %v551 = vmax.f32 %v332, 0.0
  %v552 = vmax.f32 %v337, 0.0
  %v553 = vmax.f32 %v342, 0.0
  %v554 = vmax.f32 %v347, 0.0
  %v555 = vmax.f32 %v352, 0.0
  %v556 = vmax.f32 %v357, 0.0
  %v557 = vmax.f32 %v362, 0.0
  %v558 = vmax.f32 %v367, 0.0
  %v559 = vmax.f32 %v372, 0.0
  %v560 = vmax.f32 %v377, 0.0
  %v561 = vmax.f32 %v382, 0.0
  %v562 = vmax.f32 %v387, 0.0
  %v563 = vmax.f32 %v392, 0.0
  %v564 = vmax.f32 %v397, 0.0
  %v565 = vmax.f32 %v402, 0.0
  %v566 = vmax.f32 %v407, 0.0
  %v567 = vmax.f32 %v412, 0.0
  %v568 = vmax.f32 %v417, 0.0
  %v569 = vmax.f32 %v422, 0.0
  %v570 = vmax.f32 %v427, 0.0
  %v571 = vmax.f32 %v432, 0.0
  %v572 = vmax.f32 %v437, 0.0
  %v573 = vmax.f32 %v442, 0.0
  %v574 = vmax.f32 %v447, 0.0
  %v575 = vmax.f32 %v452, 0.0
  %v576 = vmax.f32 %v457, 0.0
  %v577 = vmax.f32 %v462, 0.0
  %v578 = vmax.f32 %v467, 0.0
  %v579 = vmax.f32 %v472, 0.0
  %v580 = vmax.f32 %v477, 0.0
  %v581 = vmax.f32 %v482, 0.0
  %v582 = vmax.f32 %v487, 0.0
  %v583 = vmax.f32 %v492, 0.0
  %v584 = vmax.f32 %v497, 0.0
  %v585 = vmax.f32 %v502, 0.0
  %v586 = vmax.f32 %v507, 0.0
  %v587 = vmax.f32 %v512, 0.0
  %v588 = vmax.f32 %v517, 0.0
  %v589 = vmax.f32 %v522, 0.0
  %v590 = vmax.f32 %v527, 0.0
  %v591 = vmax.f32 %v532, 0.0
  %v592 = vmax.f32 %v537, 0.0
  %v593 = vmax.f32 %v542, 0.0
  %v594 = vld [vmem:[%s3] sm:$0xff]
  %v596 = vcombine.high %v594, %v594
  %v598 = vunpack.c.l.s4 1983009808
  %v599 = vunpack.c.0.s8 %v598
  %v600 = vlaneseq
  %v601 = vshrl.u32 %v600, 7
  %v602 = vsub.s32 %v599, %v601
  %v603 = vrot.slane %v594, %v602
  %v605 = vunpack.c.l.s4 1983009808
  %v606 = vunpack.c.0.s8 %v605
  %v607 = vlaneseq
  %v608 = vshrl.u32 %v607, 7
  %v609 = vsub.s32 %v606, %v608
  %v610 = vrot.slane %v596, %v609
  %v611 = vcombine.high %v603, %v603
  %v612 = vcombine.high %v610, %v610
  %vm616 = vcmask 64512
  %v617 = vsel %vm616, %v612, 0
  %619 = vmatprep.subr.mxu0 0.0
  %620 = vmatpush1.msra.mxu0 %v545
  %621 = vmatprep.subr.mxu0 0.0
  %622 = vmatpush1.msra.mxu0 %v546
  %623 = vmatprep.subr.mxu0 0.0
  %624 = vmatpush1.msra.mxu0 %v547
  %625 = vmatprep.subr.mxu0 0.0
  %626 = vmatpush1.msra.mxu0 %v548
  %627 = vmatprep.subr.mxu0 0.0
  %628 = vmatpush1.msra.mxu0 %v549
  %629 = vmatprep.subr.mxu0 0.0
  %630 = vmatpush1.msra.mxu0 %v550
  %631 = vmatprep.subr.mxu0 0.0
  %632 = vmatpush1.msra.mxu0 %v551
  %633 = vmatprep.subr.mxu0 0.0
  %634 = vmatpush1.msra.mxu0 %v552
  %635 = vmatprep.subr.mxu0 0.0
  %636 = vmatpush1.msra.mxu0 %v553
  %637 = vmatprep.subr.mxu0 0.0
  %638 = vmatpush1.msra.mxu0 %v554
  %639 = vmatprep.subr.mxu0 0.0
  %640 = vmatpush1.msra.mxu0 %v555
  %641 = vmatprep.subr.mxu0 0.0
  %642 = vmatpush1.msra.mxu0 %v556
  %643 = vmatprep.subr.mxu0 0.0
  %644 = vmatpush1.msra.mxu0 %v557
  %645 = vmatprep.subr.mxu0 0.0
  %646 = vmatpush1.msra.mxu0 %v558
  %647 = vmatprep.subr.mxu0 0.0
  %648 = vmatpush1.msra.mxu0 %v559
  %649 = vmatprep.subr.mxu0 0.0
  %650 = vmatpush1.msra.mxu0 %v560
  %651 = vmatprep.subr.mxu0 0.0
  %652 = vmatpush1.msra.mxu0 %v561
  %653 = vmatprep.subr.mxu0 0.0
  %654 = vmatpush1.msra.mxu0 %v562
  %655 = vmatprep.subr.mxu0 0.0
  %656 = vmatpush1.msra.mxu0 %v563
  %657 = vmatprep.subr.mxu0 0.0
  %658 = vmatpush1.msra.mxu0 %v564
  %659 = vmatprep.subr.mxu0 0.0
  %660 = vmatpush1.msra.mxu0 %v565
  %661 = vmatprep.subr.mxu0 0.0
  %662 = vmatpush1.msra.mxu0 %v566
  %663 = vmatprep.subr.mxu0 0.0
  %664 = vmatpush1.msra.mxu0 %v567
  %665 = vmatprep.subr.mxu0 0.0
  %666 = vmatpush1.msra.mxu0 %v568
  %667 = vmatprep.subr.mxu0 0.0
  %668 = vmatpush1.msra.mxu0 %v569
  %669 = vmatprep.subr.mxu0 0.0
  %670 = vmatpush1.msra.mxu0 %v570
  %671 = vmatprep.subr.mxu0 0.0
  %672 = vmatpush1.msra.mxu0 %v571
  %673 = vmatprep.subr.mxu0 0.0
  %674 = vmatpush1.msra.mxu0 %v572
  %675 = vmatprep.subr.mxu0 0.0
  %676 = vmatpush1.msra.mxu0 %v573
  %677 = vmatprep.subr.mxu0 0.0
  %678 = vmatpush1.msra.mxu0 %v574
  %679 = vmatprep.subr.mxu0 0.0
  %680 = vmatpush1.msra.mxu0 %v575
  %681 = vmatprep.subr.mxu0 0.0
  %682 = vmatpush1.msra.mxu0 %v576
  %683 = vmatprep.mubr.f32.mxu0 %v611
  %684 = vmatmul.mubr.f32.gmra.mrb[0].mxu0 %v603
  %v685 = vpop.f32.mrb[0].mxu0
  %v686 = vadd.f32 0.0, %v685
  %v687 = vpop.f32.mrb[0].mxu0
  %688 = vdwg.mxu0
  %689 = vmatprep.subr.mxu0 0.0
  %690 = vmatpush1.msra.mxu0 %v577
  %691 = vmatprep.subr.mxu0 0.0
  %692 = vmatpush1.msra.mxu0 %v578
  %693 = vmatprep.subr.mxu0 0.0
  %694 = vmatpush1.msra.mxu0 %v579
  %695 = vmatprep.subr.mxu0 0.0
  %696 = vmatpush1.msra.mxu0 %v580
  %697 = vmatprep.subr.mxu0 0.0
  %698 = vmatpush1.msra.mxu0 %v581
  %699 = vmatprep.subr.mxu0 0.0
  %700 = vmatpush1.msra.mxu0 %v582
  %701 = vmatprep.subr.mxu0 0.0
  %702 = vmatpush1.msra.mxu0 %v583
  %703 = vmatprep.subr.mxu0 0.0
  %704 = vmatpush1.msra.mxu0 %v584
  %705 = vmatprep.subr.mxu0 0.0
  %706 = vmatpush1.msra.mxu0 %v585
  %707 = vmatprep.subr.mxu0 0.0
  %708 = vmatpush1.msra.mxu0 %v586
  %709 = vmatprep.subr.mxu0 0.0
  %710 = vmatpush1.msra.mxu0 %v587
  %711 = vmatprep.subr.mxu0 0.0
  %712 = vmatpush1.msra.mxu0 %v588
  %713 = vmatprep.subr.mxu0 0.0
  %714 = vmatpush1.msra.mxu0 %v589
  %715 = vmatprep.subr.mxu0 0.0
  %716 = vmatpush1.msra.mxu0 %v590
  %717 = vmatprep.subr.mxu0 0.0
  %718 = vmatpush1.msra.mxu0 %v591
  %719 = vmatprep.subr.mxu0 0.0
  %720 = vmatpush1.msra.mxu0 %v592
  %721 = vmatprep.subr.mxu0 0.0
  %722 = vmatpush1.msra.mxu0 %v593
  %723 = vmatprep.subr.mxu0 0.0
  %724 = vmatpush1.msra.mxu0 0.0
  %725 = vmatprep.subr.mxu0 0.0
  %726 = vmatpush1.msra.mxu0 0.0
  %727 = vmatprep.subr.mxu0 0.0
  %728 = vmatpush1.msra.mxu0 0.0
  %729 = vmatprep.subr.mxu0 0.0
  %730 = vmatpush1.msra.mxu0 0.0
  %731 = vmatprep.subr.mxu0 0.0
  %732 = vmatpush1.msra.mxu0 0.0
  %733 = vmatprep.subr.mxu0 0.0
  %734 = vmatpush1.msra.mxu0 0.0
  %735 = vmatprep.subr.mxu0 0.0
  %736 = vmatpush1.msra.mxu0 0.0
  %737 = vmatprep.subr.mxu0 0.0
  %738 = vmatpush1.msra.mxu0 0.0
  %739 = vmatprep.subr.mxu0 0.0
  %740 = vmatpush1.msra.mxu0 0.0
  %741 = vmatprep.subr.mxu0 0.0
  %742 = vmatpush1.msra.mxu0 0.0
  %743 = vmatprep.subr.mxu0 0.0
  %744 = vmatpush1.msra.mxu0 0.0
  %745 = vmatprep.subr.mxu0 0.0
  %746 = vmatpush1.msra.mxu0 0.0
  %747 = vmatprep.subr.mxu0 0.0
  %748 = vmatpush1.msra.mxu0 0.0
  %749 = vmatprep.subr.mxu0 0.0
  %750 = vmatpush1.msra.mxu0 0.0
  %751 = vmatprep.subr.mxu0 0.0
  %752 = vmatpush1.msra.mxu0 0.0
  %753 = vmatprep.mubr.f32.mxu0 %v617
  %754 = vmatmul.mubr.f32.gmra.mrb[0].mxu0 %v610
  %v755 = vpop.f32.mrb[0].mxu0
  %v756 = vadd.f32 %v686, %v755
  %v757 = vpop.f32.mrb[0].mxu0
  %758 = vdwg.mxu0
  %v759 = vld [vmem:[%s4] sm:$0xff]
  %v760 = vld [vmem:[%s4 + $0x8] sm:$0xff]
  %v761 = vld [vmem:[%s4 + $0x10] sm:$0xff]
  %v762 = vld [vmem:[%s4 + $0x18] sm:$0xff]
  %v763 = vld [vmem:[%s4 + $0x20] sm:$0xff]
  %v764 = vld [vmem:[%s4 + $0x28] sm:$0xff]
  %v765 = vld [vmem:[%s4 + $0x30] sm:$0xff]
  %v766 = vld [vmem:[%s4 + $0x38] sm:$0xff]
  %v767 = vld [vmem:[%s5] sm:$0x1]
  %v769 = vlaneseq
  %v770 = vshrl.u32 %v769, 7
  %v771 = vsub.s32 0, %v770
  %v772 = vrot.slane %v767, %v771
  %vm774 = vcmask 523264
  %v776 = vsel %vm774, %v756, 0
  %778 = vmatprep.subr.mxu0 0.0
  %779 = vmatpush1.msra.mxu0 %v759
  %780 = vmatprep.subr.mxu0 0.0
  %781 = vmatpush1.msra.mxu0 %v760
  %782 = vmatprep.subr.mxu0 0.0
  %783 = vmatpush1.msra.mxu0 %v761
  %784 = vmatprep.subr.mxu0 0.0
  %785 = vmatpush1.msra.mxu0 %v762
  %786 = vmatprep.subr.mxu0 0.0
  %787 = vmatpush1.msra.mxu0 %v763
  %788 = vmatprep.subr.mxu0 0.0
  %789 = vmatpush1.msra.mxu0 %v764
  %790 = vmatprep.subr.mxu0 0.0
  %791 = vmatpush1.msra.mxu0 %v765
  %792 = vmatprep.subr.mxu0 0.0
  %793 = vmatpush1.msra.mxu0 %v766
  %794 = vmatprep.subr.mxu0 0.0
  %795 = vmatpush1.msra.mxu0 0.0
  %796 = vmatprep.subr.mxu0 0.0
  %797 = vmatpush1.msra.mxu0 0.0
  %798 = vmatprep.subr.mxu0 0.0
  %799 = vmatpush1.msra.mxu0 0.0
  %800 = vmatprep.subr.mxu0 0.0
  %801 = vmatpush1.msra.mxu0 0.0
  %802 = vmatprep.subr.mxu0 0.0
  %803 = vmatpush1.msra.mxu0 0.0
  %804 = vmatprep.subr.mxu0 0.0
  %805 = vmatpush1.msra.mxu0 0.0
  %806 = vmatprep.subr.mxu0 0.0
  %807 = vmatpush1.msra.mxu0 0.0
  %808 = vmatprep.subr.mxu0 0.0
  %809 = vmatpush1.msra.mxu0 0.0
  %810 = vmatprep.subr.mxu0 0.0
  %811 = vmatpush1.msra.mxu0 0.0
  %812 = vmatprep.subr.mxu0 0.0
  %813 = vmatpush1.msra.mxu0 0.0
  %814 = vmatprep.subr.mxu0 0.0
  %815 = vmatpush1.msra.mxu0 0.0
  %816 = vmatprep.subr.mxu0 0.0
  %817 = vmatpush1.msra.mxu0 0.0
  %818 = vmatprep.subr.mxu0 0.0
  %819 = vmatpush1.msra.mxu0 0.0
  %820 = vmatprep.subr.mxu0 0.0
  %821 = vmatpush1.msra.mxu0 0.0
  %822 = vmatprep.subr.mxu0 0.0
  %823 = vmatpush1.msra.mxu0 0.0
  %824 = vmatprep.subr.mxu0 0.0
  %825 = vmatpush1.msra.mxu0 0.0
  %826 = vmatprep.subr.mxu0 0.0
  %827 = vmatpush1.msra.mxu0 0.0
  %828 = vmatprep.subr.mxu0 0.0
  %829 = vmatpush1.msra.mxu0 0.0
  %830 = vmatprep.subr.mxu0 0.0
  %831 = vmatpush1.msra.mxu0 0.0
  %832 = vmatprep.subr.mxu0 0.0
  %833 = vmatpush1.msra.mxu0 0.0
  %834 = vmatprep.subr.mxu0 0.0
  %835 = vmatpush1.msra.mxu0 0.0
  %836 = vmatprep.subr.mxu0 0.0
  %837 = vmatpush1.msra.mxu0 0.0
  %838 = vmatprep.subr.mxu0 0.0
  %839 = vmatpush1.msra.mxu0 0.0
  %840 = vmatprep.subr.mxu0 0.0
  %841 = vmatpush1.msra.mxu0 0.0
  %842 = vmatprep.mubr.f32.mxu0 0.0
  %843 = vmatmul.mubr.f32.gmra.mrb[0].mxu0 %v776
  %v844 = vpop.f32.mrb[0].mxu0
  %v845 = vadd.f32 %v772, %v844
  %v846 = vpop.f32.mrb[0].mxu0
  %847 = vdwg.mxu0
  %vm848 = vcmask 254976
  %849 = vst.msk [vmem:[%s6] sm:$0x3] %vm848, %v845
  // Predicated region
  $region26: #{cross_sensory_forward.4} parent=0 // pred_check
    _
  $region27: #{cross_sensory_forward.4} parent=0 // pred_check_branch
    %851 = sbr.rel (0) target = $region29
  $region28: #{cross_sensory_forward.4} parent=0 // pred_region
    _
  $region29: #{cross_sensory_forward.4} parent=0 // pred_fallthru
    _
  // Predicated region
  $region30: #{cross_sensory_forward.4} parent=0 // pred_check
    _
  $region31: #{cross_sensory_forward.4} parent=0 // pred_check_branch
    %853 = sbr.rel (0) target = $region33
  $region32: #{cross_sensory_forward.4} parent=0 // pred_region
    _
  $region33: #{cross_sensory_forward.4} parent=0 // pred_fallthru
    _

// kernel: cross_sensory_forward.5
$region0: #{cross_sensory_forward.5}
  #allocation0 [shape = 'u32[]', space=smem, size = 0x4, offset = 0x4, fixed_abs, tag = 'smem constant byte address 0x4 - core index']
  #allocation1 [shape = 'u32[144,128]{1,0:T(1,128)}', space=vmem, size = 0x12000, scoped, tag = 'internal scratch']
  %s0 = inlined_call_operand.vmem [shape: f32[124,5], index: 0, kind: input, shape index: {}]
  %s1 = inlined_call_operand.vmem [shape: f32[5,64], index: 1, kind: input, shape index: {}]
  %s2 = inlined_call_operand.vmem [shape: f32[1,64], index: 2, kind: input, shape index: {}]
  %s3 = inlined_call_operand.vmem [shape: f32[5,58,124], index: 3, kind: input, shape index: {}]
  %s4 = inlined_call_operand.vmem [shape: bf16[5,64,128], index: 4, kind: input, shape index: {}]
  %s5 = inlined_call_operand.vmem [shape: f32[1,128], index: 5, kind: input, shape index: {}]
  %s6 = inlined_call_operand.hbm [shape: f32[5,26,58], index: 6, kind: input, shape index: {}]
  %s7 = inlined_call_operand.hbm [shape: bf16[5,128,256], index: 7, kind: input, shape index: {}]
  %s8 = inlined_call_operand.vmem [shape: f32[1,256], index: 8, kind: input, shape index: {}]
  %s9 = inlined_call_operand.vmem [shape: f32[2,26], index: 9, kind: input, shape index: {}]
  %s10 = inlined_call_operand.vmem [shape: f32[256,32], index: 10, kind: input, shape index: {}]
  %s11 = inlined_call_operand.vmem [shape: f32[1,32], index: 11, kind: input, shape index: {}]
  %s12 = inlined_call_operand.vmem [shape: f32[2,32], index: 12, kind: output, shape index: {}]
  %s13 = sld [smem:[#allocation0]]
  $region66: #{cross_sensory_forward.5} parent=0
    _
  %s15 = ssub.s32 1, %s13
  %s16 = scalar_select 0, %s15, %s13
  $region1: #{cross_sensory_forward.5} parent=0
    #allocation2 [shape = 'u8[81920]{0}', space=vmem, size = 0x14000, scoped, tag = 'input window, operand 6, single buffered']
    #allocation3 [shape = 's32[1]{0}', space=sflag, size = 0x4, scoped, tag = 'scoped memory for cross_sensory_forward.5']
    #allocation4 [shape = 'u8[327680]{0}', space=vmem, size = 0x50000, scoped, tag = 'input window, operand 7, single buffered']
    #allocation5 [shape = 's32[1]{0}', space=sflag, size = 0x4, scoped, tag = 'scoped memory for cross_sensory_forward.5']
    %17 = vsyncpa [#allocation3], 0
    %18 = vsyncpa [#allocation5], 0
    // Predicated region
    $region2: #{cross_sensory_forward.5} parent=1 // pred_check
      _
    $region3: #{cross_sensory_forward.5} parent=1 // pred_check_branch
      %20 = sbr.rel (0) target = $region5
    $region4: #{cross_sensory_forward.5} parent=1 // pred_region
      _
    $region5: #{cross_sensory_forward.5} parent=1 // pred_fallthru
      _
    // Predicated region
    $region6: #{cross_sensory_forward.5} parent=1 // pred_check
      _
    $region7: #{cross_sensory_forward.5} parent=1 // pred_check_branch
      %22 = sbr.rel (0) target = $region9
    $region8: #{cross_sensory_forward.5} parent=1 // pred_region
      _
    $region9: #{cross_sensory_forward.5} parent=1 // pred_fallthru
      _
    // Predicated region
    $region10: #{cross_sensory_forward.5} parent=1 // pred_check
      _
    $region11: #{cross_sensory_forward.5} parent=1 // pred_check_branch
      %24 = sbr.rel (0) target = $region13
    $region12: #{cross_sensory_forward.5} parent=1 // pred_region
      _
    $region13: #{cross_sensory_forward.5} parent=1 // pred_fallthru
      _
    // Predicated region
    $region14: #{cross_sensory_forward.5} parent=1 // pred_check
      _
    $region15: #{cross_sensory_forward.5} parent=1 // pred_check_branch
      %26 = sbr.rel (0) target = $region17
    $region16: #{cross_sensory_forward.5} parent=1 // pred_region
      _
    $region17: #{cross_sensory_forward.5} parent=1 // pred_fallthru
      _
    // Predicated region
    $region18: #{cross_sensory_forward.5} parent=1 // pred_check
      _
    $region19: #{cross_sensory_forward.5} parent=1 // pred_check_branch
      %28 = sbr.rel (0) target = $region21
    $region20: #{cross_sensory_forward.5} parent=1 // pred_region
      _
    $region21: #{cross_sensory_forward.5} parent=1 // pred_fallthru
      _
    // Predicated region
    $region22: #{cross_sensory_forward.5} parent=1 // pred_check
      _
    $region23: #{cross_sensory_forward.5} parent=1 // pred_check_branch
      %30 = sbr.rel (0) target = $region25
    $region24: #{cross_sensory_forward.5} parent=1 // pred_region
      _
    $region25: #{cross_sensory_forward.5} parent=1 // pred_fallthru
      _
    // Predicated region
    $region26: #{cross_sensory_forward.5} parent=1 // pred_check
      _
    $region27: #{cross_sensory_forward.5} parent=1 // pred_check_branch
      %32 = sbr.rel (0) target = $region29
    $region28: #{cross_sensory_forward.5} parent=1 // pred_region
      %s34 = ssub.s32 2560, 2560
      %35 = vsyncadd [#allocation3], %s34
      %s36 = sshll.u32 [#allocation2], 4
      %s37 = int_to_ptr.vmem [resolvable:$true] %s36
      %42 = dma.hbm_to_vmem [thread:$0]  %s6, 2560, %s37, [#allocation3], 128, 128, 8
    $region29: #{cross_sensory_forward.5} parent=1 // pred_fallthru
      _
    // Predicated region
    $region30: #{cross_sensory_forward.5} parent=1 // pred_check
      _
    $region31: #{cross_sensory_forward.5} parent=1 // pred_check_branch
      %44 = sbr.rel (0) target = $region33
    $region32: #{cross_sensory_forward.5} parent=1 // pred_region
      %s46 = ssub.s32 10240, 10240
      %47 = vsyncadd [#allocation5], %s46
      %s48 = sshll.u32 [#allocation4], 4
      %s49 = int_to_ptr.vmem [resolvable:$true] %s48
      %54 = dma.hbm_to_vmem [thread:$0]  %s7, 10240, %s49, [#allocation5], 128, 128, 8
    $region33: #{cross_sensory_forward.5} parent=1 // pred_fallthru
      _
    // Predicated region
    $region34: #{cross_sensory_forward.5} parent=1 // pred_check
      _
    $region35: #{cross_sensory_forward.5} parent=1 // pred_check_branch
      %56 = sbr.rel (0) target = $region37
    $region36: #{cross_sensory_forward.5} parent=1 // pred_region
      _
    $region37: #{cross_sensory_forward.5} parent=1 // pred_fallthru
      _
    // Predicated region
    $region38: #{cross_sensory_forward.5} parent=1 // pred_check
      _
    $region39: #{cross_sensory_forward.5} parent=1 // pred_check_branch
      %58 = sbr.rel (0) target = $region41
    $region40: #{cross_sensory_forward.5} parent=1 // pred_region
      _
    $region41: #{cross_sensory_forward.5} parent=1 // pred_fallthru
      _
    // Predicated region
    $region42: #{cross_sensory_forward.5} parent=1 // pred_check
      _
    $region43: #{cross_sensory_forward.5} parent=1 // pred_check_branch
      %60 = sbr.rel (0) target = $region45
    $region44: #{cross_sensory_forward.5} parent=1 // pred_region
      _
    $region45: #{cross_sensory_forward.5} parent=1 // pred_fallthru
      _
    // Predicated region
    $region46: #{cross_sensory_forward.5} parent=1 // pred_check
      _
    $region47: #{cross_sensory_forward.5} parent=1 // pred_check_branch
      %62 = sbr.rel (0) target = $region49
    $region48: #{cross_sensory_forward.5} parent=1 // pred_region
      _
    $region49: #{cross_sensory_forward.5} parent=1 // pred_fallthru
      _
    // Predicated region
    $region50: #{cross_sensory_forward.5} parent=1 // pred_check
      _
    $region51: #{cross_sensory_forward.5} parent=1 // pred_check_branch
      %64 = sbr.rel (0) target = $region53
    $region52: #{cross_sensory_forward.5} parent=1 // pred_region
      %65 = dma.done [#allocation3], 2560
    $region53: #{cross_sensory_forward.5} parent=1 // pred_fallthru
      _
    // Predicated region
    $region54: #{cross_sensory_forward.5} parent=1 // pred_check
      _
    $region55: #{cross_sensory_forward.5} parent=1 // pred_check_branch
      %67 = sbr.rel (0) target = $region57
    $region56: #{cross_sensory_forward.5} parent=1 // pred_region
      %68 = dma.done [#allocation5], 10240
    $region57: #{cross_sensory_forward.5} parent=1 // pred_fallthru
      _
    %v70 = vld [vmem:[%s0] sm:$0xff]
    %v71 = vld [vmem:[%s0 + $0x8] sm:$0xff]
    %v72 = vld [vmem:[%s0 + $0x10] sm:$0xff]
    %v73 = vld [vmem:[%s0 + $0x18] sm:$0xff]
    %v74 = vld [vmem:[%s0 + $0x20] sm:$0xff]
    %v75 = vld [vmem:[%s0 + $0x28] sm:$0xff]
    %v76 = vld [vmem:[%s0 + $0x30] sm:$0xff]
    %v77 = vld [vmem:[%s0 + $0x38] sm:$0xff]
    %v78 = vld [vmem:[%s0 + $0x40] sm:$0xff]
    %v79 = vld [vmem:[%s0 + $0x48] sm:$0xff]
    %v80 = vld [vmem:[%s0 + $0x50] sm:$0xff]
    %v81 = vld [vmem:[%s0 + $0x58] sm:$0xff]
    %v82 = vld [vmem:[%s0 + $0x60] sm:$0xff]
    %v83 = vld [vmem:[%s0 + $0x68] sm:$0xff]
    %v84 = vld [vmem:[%s0 + $0x70] sm:$0xff]
    %v85 = vld [vmem:[%s0 + $0x78] sm:$0xf]
    %v86 = vld [vmem:[%s1] sm:$0x1f]
    %v87 = vld [vmem:[%s2] sm:$0x1]
    %v89 = vlaneseq
    %v90 = vshrl.u32 %v89, 7
    %v91 = vsub.s32 0, %v90
    %v92 = vrot.slane %v87, %v91
    %vm94 = vcmask 39936
    %v96 = vsel %vm94, %v70, 0
    %v99 = vsel %vm94, %v71, 0
    %v102 = vsel %vm94, %v72, 0
    %v105 = vsel %vm94, %v73, 0
    %v108 = vsel %vm94, %v74, 0
    %v111 = vsel %vm94, %v75, 0
    %v114 = vsel %vm94, %v76, 0
    %v117 = vsel %vm94, %v77, 0
    %v120 = vsel %vm94, %v78, 0
    %v123 = vsel %vm94, %v79, 0
    %v126 = vsel %vm94, %v80, 0
    %v129 = vsel %vm94, %v81, 0
    %v132 = vsel %vm94, %v82, 0
    %v135 = vsel %vm94, %v83, 0
    %v138 = vsel %vm94, %v84, 0
    %v141 = vsel %vm94, %v85, 0
    %vm143 = vcmask 1044480
    %v145 = vsel %vm143, %v86, 0
    %147 = vmatprep.subr.mxu0 0.0
    %148 = vmatpush1.msra.mxu0 %v145
    %149 = vmatprep.subr.mxu0 0.0
    %150 = vmatpush1.msra.mxu0 0.0
    %151 = vmatprep.subr.mxu0 0.0
    %152 = vmatpush1.msra.mxu0 0.0
    %153 = vmatprep.subr.mxu0 0.0
    %154 = vmatpush1.msra.mxu0 0.0
    %155 = vmatprep.subr.mxu0 0.0
    %156 = vmatpush1.msra.mxu0 0.0
    %157 = vmatprep.subr.mxu0 0.0
    %158 = vmatpush1.msra.mxu0 0.0
    %159 = vmatprep.subr.mxu0 0.0
    %160 = vmatpush1.msra.mxu0 0.0
    %161 = vmatprep.subr.mxu0 0.0
    %162 = vmatpush1.msra.mxu0 0.0
    %163 = vmatprep.subr.mxu0 0.0
    %164 = vmatpush1.msra.mxu0 0.0
    %165 = vmatprep.subr.mxu0 0.0
    %166 = vmatpush1.msra.mxu0 0.0
    %167 = vmatprep.subr.mxu0 0.0
    %168 = vmatpush1.msra.mxu0 0.0
    %169 = vmatprep.subr.mxu0 0.0
    %170 = vmatpush1.msra.mxu0 0.0
    %171 = vmatprep.subr.mxu0 0.0
    %172 = vmatpush1.msra.mxu0 0.0
    %173 = vmatprep.subr.mxu0 0.0
    %174 = vmatpush1.msra.mxu0 0.0
    %175 = vmatprep.subr.mxu0 0.0
    %176 = vmatpush1.msra.mxu0 0.0
    %177 = vmatprep.subr.mxu0 0.0
    %178 = vmatpush1.msra.mxu0 0.0
    %179 = vmatprep.subr.mxu0 0.0
    %180 = vmatpush1.msra.mxu0 0.0
    %181 = vmatprep.subr.mxu0 0.0
    %182 = vmatpush1.msra.mxu0 0.0
    %183 = vmatprep.subr.mxu0 0.0
    %184 = vmatpush1.msra.mxu0 0.0
    %185 = vmatprep.subr.mxu0 0.0
    %186 = vmatpush1.msra.mxu0 0.0
    %187 = vmatprep.subr.mxu0 0.0
    %188 = vmatpush1.msra.mxu0 0.0
    %189 = vmatprep.subr.mxu0 0.0
    %190 = vmatpush1.msra.mxu0 0.0
    %191 = vmatprep.subr.mxu0 0.0
    %192 = vmatpush1.msra.mxu0 0.0
    %193 = vmatprep.subr.mxu0 0.0
    %194 = vmatpush1.msra.mxu0 0.0
    %195 = vmatprep.subr.mxu0 0.0
    %196 = vmatpush1.msra.mxu0 0.0
    %197 = vmatprep.subr.mxu0 0.0
    %198 = vmatpush1.msra.mxu0 0.0
    %199 = vmatprep.subr.mxu0 0.0
    %200 = vmatpush1.msra.mxu0 0.0
    %201 = vmatprep.subr.mxu0 0.0
    %202 = vmatpush1.msra.mxu0 0.0
    %203 = vmatprep.subr.mxu0 0.0
    %204 = vmatpush1.msra.mxu0 0.0
    %205 = vmatprep.subr.mxu0 0.0
    %206 = vmatpush1.msra.mxu0 0.0
    %207 = vmatprep.subr.mxu0 0.0
    %208 = vmatpush1.msra.mxu0 0.0
    %209 = vmatprep.subr.mxu0 0.0
    %210 = vmatpush1.msra.mxu0 0.0
    %211 = vmatprep.mubr.f32.mxu0 0.0
    %212 = vmatmul.mubr.f32.gmra.mrb[0].mxu0 %v96
    %v213 = vpop.f32.mrb[0].mxu0
    %v214 = vadd.f32 %v92, %v213
    %v215 = vpop.f32.mrb[0].mxu0
    %216 = vmatprep.mubr.f32.mxu0 0.0
    %217 = vmatmul.mubr.f32.gmra.mrb[0].mxu0 %v99
    %v218 = vpop.f32.mrb[0].mxu0
    %v219 = vadd.f32 %v92, %v218
    %v220 = vpop.f32.mrb[0].mxu0
    %221 = vmatprep.mubr.f32.mxu0 0.0
    %222 = vmatmul.mubr.f32.gmra.mrb[0].mxu0 %v102
    %v223 = vpop.f32.mrb[0].mxu0
    %v224 = vadd.f32 %v92, %v223
    %v225 = vpop.f32.mrb[0].mxu0
    %226 = vmatprep.mubr.f32.mxu0 0.0
    %227 = vmatmul.mubr.f32.gmra.mrb[0].mxu0 %v105
    %v228 = vpop.f32.mrb[0].mxu0
    %v229 = vadd.f32 %v92, %v228
    %v230 = vpop.f32.mrb[0].mxu0
    %231 = vmatprep.mubr.f32.mxu0 0.0
    %232 = vmatmul.mubr.f32.gmra.mrb[0].mxu0 %v108
    %v233 = vpop.f32.mrb[0].mxu0
    %v234 = vadd.f32 %v92, %v233
    %v235 = vpop.f32.mrb[0].mxu0
    %236 = vmatprep.mubr.f32.mxu0 0.0
    %237 = vmatmul.mubr.f32.gmra.mrb[0].mxu0 %v111
    %v238 = vpop.f32.mrb[0].mxu0
    %v239 = vadd.f32 %v92, %v238
    %v240 = vpop.f32.mrb[0].mxu0
    %241 = vmatprep.mubr.f32.mxu0 0.0
    %242 = vmatmul.mubr.f32.gmra.mrb[0].mxu0 %v114
    %v243 = vpop.f32.mrb[0].mxu0
    %v244 = vadd.f32 %v92, %v243
    %v245 = vpop.f32.mrb[0].mxu0
    %246 = vmatprep.mubr.f32.mxu0 0.0
    %247 = vmatmul.mubr.f32.gmra.mrb[0].mxu0 %v117
    %v248 = vpop.f32.mrb[0].mxu0
    %v249 = vadd.f32 %v92, %v248
    %v250 = vpop.f32.mrb[0].mxu0
    %251 = vmatprep.mubr.f32.mxu0 0.0
    %252 = vmatmul.mubr.f32.gmra.mrb[0].mxu0 %v120
    %v253 = vpop.f32.mrb[0].mxu0
    %v254 = vadd.f32 %v92, %v253
    %v255 = vpop.f32.mrb[0].mxu0
    %256 = vmatprep.mubr.f32.mxu0 0.0
    %257 = vmatmul.mubr.f32.gmra.mrb[0].mxu0 %v123
    %v258 = vpop.f32.mrb[0].mxu0
    %v259 = vadd.f32 %v92, %v258
    %v260 = vpop.f32.mrb[0].mxu0
    %261 = vmatprep.mubr.f32.mxu0 0.0
    %262 = vmatmul.mubr.f32.gmra.mrb[0].mxu0 %v126
    %v263 = vpop.f32.mrb[0].mxu0
    %v264 = vadd.f32 %v92, %v263
    %v265 = vpop.f32.mrb[0].mxu0
    %266 = vmatprep.mubr.f32.mxu0 0.0
    %267 = vmatmul.mubr.f32.gmra.mrb[0].mxu0 %v129
    %v268 = vpop.f32.mrb[0].mxu0
    %v269 = vadd.f32 %v92, %v268
    %v270 = vpop.f32.mrb[0].mxu0
    %271 = vmatprep.mubr.f32.mxu0 0.0
    %272 = vmatmul.mubr.f32.gmra.mrb[0].mxu0 %v132
    %v273 = vpop.f32.mrb[0].mxu0
    %v274 = vadd.f32 %v92, %v273
    %v275 = vpop.f32.mrb[0].mxu0
    %276 = vmatprep.mubr.f32.mxu0 0.0
    %277 = vmatmul.mubr.f32.gmra.mrb[0].mxu0 %v135
    %v278 = vpop.f32.mrb[0].mxu0
    %v279 = vadd.f32 %v92, %v278
    %v280 = vpop.f32.mrb[0].mxu0
    %281 = vmatprep.mubr.f32.mxu0 0.0
    %282 = vmatmul.mubr.f32.gmra.mrb[0].mxu0 %v138
    %v283 = vpop.f32.mrb[0].mxu0
    %v284 = vadd.f32 %v92, %v283
    %v285 = vpop.f32.mrb[0].mxu0
    %286 = vmatprep.mubr.f32.mxu0 0.0
    %287 = vmatmul.mubr.f32.gmra.mrb[0].mxu0 %v141
    %v288 = vpop.f32.mrb[0].mxu0
    %v289 = vadd.f32 %v92, %v288
    %v290 = vpop.f32.mrb[0].mxu0
    %291 = vdwg.mxu0
    %v292 = vmax.f32 %v214, 0.0
    %v293 = vmax.f32 %v219, 0.0
    %v294 = vmax.f32 %v224, 0.0
    %v295 = vmax.f32 %v229, 0.0
    %v296 = vmax.f32 %v234, 0.0
    %v297 = vmax.f32 %v239, 0.0
    %v298 = vmax.f32 %v244, 0.0
    %v299 = vmax.f32 %v249, 0.0
    %v300 = vmax.f32 %v254, 0.0
    %v301 = vmax.f32 %v259, 0.0
    %v302 = vmax.f32 %v264, 0.0
    %v303 = vmax.f32 %v269, 0.0
    %v304 = vmax.f32 %v274, 0.0
    %v305 = vmax.f32 %v279, 0.0
    %v306 = vmax.f32 %v284, 0.0
    %v307 = vmax.f32 %v289, 0.0
    %v308 = vld [vmem:[%s3] sm:$0xff]
    %v309 = vld [vmem:[%s3 + $0x8] sm:$0xff]
    %v310 = vld [vmem:[%s3 + $0x10] sm:$0xff]
    %v311 = vld [vmem:[%s3 + $0x18] sm:$0xff]
    %v312 = vld [vmem:[%s3 + $0x20] sm:$0xff]
    %v313 = vld [vmem:[%s3 + $0x28] sm:$0xff]
    %v314 = vld [vmem:[%s3 + $0x30] sm:$0xff]
    %v315 = vld [vmem:[%s3 + $0x38] sm:$0x3]
    %vm316 = vcmask 1014784
    %v318 = vsel %vm316, %v308, 0
    %v321 = vsel %vm316, %v309, 0
    %v324 = vsel %vm316, %v310, 0
    %v327 = vsel %vm316, %v311, 0
    %v330 = vsel %vm316, %v312, 0
    %v333 = vsel %vm316, %v313, 0
    %v336 = vsel %vm316, %v314, 0
    %v339 = vsel %vm316, %v315, 0
    %vm341 = vcmask 1043456
    %v343 = vsel %vm341, %v307, 0
    %345 = vmatprep.subr.mxu0 0.0
    %346 = vmatpush1.msra.mxu0 %v292
    %347 = vmatprep.subr.mxu0 0.0
    %348 = vmatpush1.msra.mxu0 %v293
    %349 = vmatprep.subr.mxu0 0.0
    %350 = vmatpush1.msra.mxu0 %v294
    %351 = vmatprep.subr.mxu0 0.0
    %352 = vmatpush1.msra.mxu0 %v295
    %353 = vmatprep.subr.mxu0 0.0
    %354 = vmatpush1.msra.mxu0 %v296
    %355 = vmatprep.subr.mxu0 0.0
    %356 = vmatpush1.msra.mxu0 %v297
    %357 = vmatprep.subr.mxu0 0.0
    %358 = vmatpush1.msra.mxu0 %v298
    %359 = vmatprep.subr.mxu0 0.0
    %360 = vmatpush1.msra.mxu0 %v299
    %361 = vmatprep.subr.mxu0 0.0
    %362 = vmatpush1.msra.mxu0 %v300
    %363 = vmatprep.subr.mxu0 0.0
    %364 = vmatpush1.msra.mxu0 %v301
    %365 = vmatprep.subr.mxu0 0.0
    %366 = vmatpush1.msra.mxu0 %v302
    %367 = vmatprep.subr.mxu0 0.0
    %368 = vmatpush1.msra.mxu0 %v303
    %369 = vmatprep.subr.mxu0 0.0
    %370 = vmatpush1.msra.mxu0 %v304
    %371 = vmatprep.subr.mxu0 0.0
    %372 = vmatpush1.msra.mxu0 %v305
    %373 = vmatprep.subr.mxu0 0.0
    %374 = vmatpush1.msra.mxu0 %v306
    %375 = vmatprep.subr.mxu0 0.0
    %376 = vmatpush1.msra.mxu0 %v343
    %377 = vmatprep.subr.mxu0 0.0
    %378 = vmatpush1.msra.mxu0 0.0
    %379 = vmatprep.subr.mxu0 0.0
    %380 = vmatpush1.msra.mxu0 0.0
    %381 = vmatprep.subr.mxu0 0.0
    %382 = vmatpush1.msra.mxu0 0.0
    %383 = vmatprep.subr.mxu0 0.0
    %384 = vmatpush1.msra.mxu0 0.0
    %385 = vmatprep.subr.mxu0 0.0
    %386 = vmatpush1.msra.mxu0 0.0
    %387 = vmatprep.subr.mxu0 0.0
    %388 = vmatpush1.msra.mxu0 0.0
    %389 = vmatprep.subr.mxu0 0.0
    %390 = vmatpush1.msra.mxu0 0.0
    %391 = vmatprep.subr.mxu0 0.0
    %392 = vmatpush1.msra.mxu0 0.0
    %393 = vmatprep.subr.mxu0 0.0
    %394 = vmatpush1.msra.mxu0 0.0
    %395 = vmatprep.subr.mxu0 0.0
    %396 = vmatpush1.msra.mxu0 0.0
    %397 = vmatprep.subr.mxu0 0.0
    %398 = vmatpush1.msra.mxu0 0.0
    %399 = vmatprep.subr.mxu0 0.0
    %400 = vmatpush1.msra.mxu0 0.0
    %401 = vmatprep.subr.mxu0 0.0
    %402 = vmatpush1.msra.mxu0 0.0
    %403 = vmatprep.subr.mxu0 0.0
    %404 = vmatpush1.msra.mxu0 0.0
    %405 = vmatprep.subr.mxu0 0.0
    %406 = vmatpush1.msra.mxu0 0.0
    %407 = vmatprep.subr.mxu0 0.0
    %408 = vmatpush1.msra.mxu0 0.0
    %409 = vmatprep.mubr.f32.mxu0 0.0
    %410 = vmatmul.mubr.f32.gmra.mrb[0].mxu0 %v318
    %v411 = vpop.f32.mrb[0].mxu0
    %v412 = vadd.f32 0.0, %v411
    %v413 = vpop.f32.mrb[0].mxu0
    %414 = vmatprep.mubr.f32.mxu0 0.0
    %415 = vmatmul.mubr.f32.gmra.mrb[0].mxu0 %v321
    %v416 = vpop.f32.mrb[0].mxu0
    %v417 = vadd.f32 0.0, %v416
    %v418 = vpop.f32.mrb[0].mxu0
    %419 = vmatprep.mubr.f32.mxu0 0.0
    %420 = vmatmul.mubr.f32.gmra.mrb[0].mxu0 %v324
    %v421 = vpop.f32.mrb[0].mxu0
    %v422 = vadd.f32 0.0, %v421
    %v423 = vpop.f32.mrb[0].mxu0
    %424 = vmatprep.mubr.f32.mxu0 0.0
    %425 = vmatmul.mubr.f32.gmra.mrb[0].mxu0 %v327
    %v426 = vpop.f32.mrb[0].mxu0
    %v427 = vadd.f32 0.0, %v426
    %v428 = vpop.f32.mrb[0].mxu0
    %429 = vmatprep.mubr.f32.mxu0 0.0
    %430 = vmatmul.mubr.f32.gmra.mrb[0].mxu0 %v330
    %v431 = vpop.f32.mrb[0].mxu0
    %v432 = vadd.f32 0.0, %v431
    %v433 = vpop.f32.mrb[0].mxu0
    %434 = vmatprep.mubr.f32.mxu0 0.0
    %435 = vmatmul.mubr.f32.gmra.mrb[0].mxu0 %v333
    %v436 = vpop.f32.mrb[0].mxu0
    %v437 = vadd.f32 0.0, %v436
    %v438 = vpop.f32.mrb[0].mxu0
    %439 = vmatprep.mubr.f32.mxu0 0.0
    %440 = vmatmul.mubr.f32.gmra.mrb[0].mxu0 %v336
    %v441 = vpop.f32.mrb[0].mxu0
    %v442 = vadd.f32 0.0, %v441
    %v443 = vpop.f32.mrb[0].mxu0
    %444 = vmatprep.mubr.f32.mxu0 0.0
    %445 = vmatmul.mubr.f32.gmra.mrb[0].mxu0 %v339
    %v446 = vpop.f32.mrb[0].mxu0
    %v447 = vadd.f32 0.0, %v446
    %v448 = vpop.f32.mrb[0].mxu0
    %449 = vdwg.mxu0
    %v450 = vpack.c.bf16 %v417, %v412
    %v451 = vpack.c.bf16 %v427, %v422
    %v452 = vpack.c.bf16 %v437, %v432
    %v453 = vpack.c.bf16 %v447, %v442
    %v454 = vld [vmem:[%s4] sm:$0xf]
    %v455 = vld [vmem:[%s4 + $0x4] sm:$0xf]
    %v456 = vld [vmem:[%s4 + $0x8] sm:$0xf]
    %v457 = vld [vmem:[%s4 + $0xc] sm:$0xf]
    %v458 = vld [vmem:[%s4 + $0x10] sm:$0xf]
    %v459 = vld [vmem:[%s4 + $0x14] sm:$0xf]
    %v460 = vld [vmem:[%s4 + $0x18] sm:$0xf]
    %v461 = vld [vmem:[%s4 + $0x1c] sm:$0xf]
    %s462 = scalar_lea.vmem %s3, 64
    %v463 = vld [vmem:[%s462] sm:$0xff]
    %v464 = vld [vmem:[%s462 + $0x8] sm:$0xff]
    %v465 = vld [vmem:[%s462 + $0x10] sm:$0xff]
    %v466 = vld [vmem:[%s462 + $0x18] sm:$0xff]
    %v467 = vld [vmem:[%s462 + $0x20] sm:$0xff]
    %v468 = vld [vmem:[%s462 + $0x28] sm:$0xff]
    %v469 = vld [vmem:[%s462 + $0x30] sm:$0xff]
    %v470 = vld [vmem:[%s462 + $0x38] sm:$0x3]
    %v472 = vsel %vm316, %v463, 0
    %v475 = vsel %vm316, %v464, 0
    %v478 = vsel %vm316, %v465, 0
    %v481 = vsel %vm316, %v466, 0
    %v484 = vsel %vm316, %v467, 0
    %v487 = vsel %vm316, %v468, 0
    %v490 = vsel %vm316, %v469, 0
    %v493 = vsel %vm316, %v470, 0
    %495 = vmatprep.subr.mxu0 0.0
    %496 = vmatpush1.msra.mxu0 %v292
    %497 = vmatprep.subr.mxu0 0.0
    %498 = vmatpush1.msra.mxu0 %v293
    %499 = vmatprep.subr.mxu0 0.0
    %500 = vmatpush1.msra.mxu0 %v294
    %501 = vmatprep.subr.mxu0 0.0
    %502 = vmatpush1.msra.mxu0 %v295
    %503 = vmatprep.subr.mxu0 0.0
    %504 = vmatpush1.msra.mxu0 %v296
    %505 = vmatprep.subr.mxu0 0.0
    %506 = vmatpush1.msra.mxu0 %v297
    %507 = vmatprep.subr.mxu0 0.0
    %508 = vmatpush1.msra.mxu0 %v298
    %509 = vmatprep.subr.mxu0 0.0
    %510 = vmatpush1.msra.mxu0 %v299
    %511 = vmatprep.subr.mxu0 0.0
    %512 = vmatpush1.msra.mxu0 %v300
    %513 = vmatprep.subr.mxu0 0.0
    %514 = vmatpush1.msra.mxu0 %v301
    %515 = vmatprep.subr.mxu0 0.0
    %516 = vmatpush1.msra.mxu0 %v302
    %517 = vmatprep.subr.mxu0 0.0
    %518 = vmatpush1.msra.mxu0 %v303
    %519 = vmatprep.subr.mxu0 0.0
    %520 = vmatpush1.msra.mxu0 %v304
    %521 = vmatprep.subr.mxu0 0.0
    %522 = vmatpush1.msra.mxu0 %v305
    %523 = vmatprep.subr.mxu0 0.0
    %524 = vmatpush1.msra.mxu0 %v306
    %525 = vmatprep.subr.mxu0 0.0
    %526 = vmatpush1.msra.mxu0 %v343
    %527 = vmatprep.subr.mxu0 0.0
    %528 = vmatpush1.msra.mxu0 0.0
    %529 = vmatprep.subr.mxu0 0.0
    %530 = vmatpush1.msra.mxu0 0.0
    %531 = vmatprep.subr.mxu0 0.0
    %532 = vmatpush1.msra.mxu0 0.0
    %533 = vmatprep.subr.mxu0 0.0
    %534 = vmatpush1.msra.mxu0 0.0
    %535 = vmatprep.subr.mxu0 0.0
    %536 = vmatpush1.msra.mxu0 0.0
    %537 = vmatprep.subr.mxu0 0.0
    %538 = vmatpush1.msra.mxu0 0.0
    %539 = vmatprep.subr.mxu0 0.0
    %540 = vmatpush1.msra.mxu0 0.0
    %541 = vmatprep.subr.mxu0 0.0
    %542 = vmatpush1.msra.mxu0 0.0
    %543 = vmatprep.subr.mxu0 0.0
    %544 = vmatpush1.msra.mxu0 0.0
    %545 = vmatprep.subr.mxu0 0.0
    %546 = vmatpush1.msra.mxu0 0.0
    %547 = vmatprep.subr.mxu0 0.0
    %548 = vmatpush1.msra.mxu0 0.0
    %549 = vmatprep.subr.mxu0 0.0
    %550 = vmatpush1.msra.mxu0 0.0
    %551 = vmatprep.subr.mxu0 0.0
    %552 = vmatpush1.msra.mxu0 0.0
    %553 = vmatprep.subr.mxu0 0.0
    %554 = vmatpush1.msra.mxu0 0.0
    %555 = vmatprep.subr.mxu0 0.0
    %556 = vmatpush1.msra.mxu0 0.0
    %557 = vmatprep.subr.mxu0 0.0
    %558 = vmatpush1.msra.mxu0 0.0
    %559 = vmatprep.mubr.f32.mxu0 0.0
    %560 = vmatmul.mubr.f32.gmra.mrb[0].mxu0 %v472
    %v561 = vpop.f32.mrb[0].mxu0
    %v562 = vadd.f32 0.0, %v561
    %v563 = vpop.f32.mrb[0].mxu0
    %564 = vmatprep.mubr.f32.mxu0 0.0
    %565 = vmatmul.mubr.f32.gmra.mrb[0].mxu0 %v475
    %v566 = vpop.f32.mrb[0].mxu0
    %v567 = vadd.f32 0.0, %v566
    %v568 = vpop.f32.mrb[0].mxu0
    %569 = vmatprep.mubr.f32.mxu0 0.0
    %570 = vmatmul.mubr.f32.gmra.mrb[0].mxu0 %v478
    %v571 = vpop.f32.mrb[0].mxu0
    %v572 = vadd.f32 0.0, %v571
    %v573 = vpop.f32.mrb[0].mxu0
    %574 = vmatprep.mubr.f32.mxu0 0.0
    %575 = vmatmul.mubr.f32.gmra.mrb[0].mxu0 %v481
    %v576 = vpop.f32.mrb[0].mxu0
    %v577 = vadd.f32 0.0, %v576
    %v578 = vpop.f32.mrb[0].mxu0
    %579 = vmatprep.mubr.f32.mxu0 0.0
    %580 = vmatmul.mubr.f32.gmra.mrb[0].mxu0 %v484
    %v581 = vpop.f32.mrb[0].mxu0
    %v582 = vadd.f32 0.0, %v581
    %v583 = vpop.f32.mrb[0].mxu0
    %584 = vmatprep.mubr.f32.mxu0 0.0
    %585 = vmatmul.mubr.f32.gmra.mrb[0].mxu0 %v487
    %v586 = vpop.f32.mrb[0].mxu0
    %v587 = vadd.f32 0.0, %v586
    %v588 = vpop.f32.mrb[0].mxu0
    %589 = vmatprep.mubr.f32.mxu0 0.0
    %590 = vmatmul.mubr.f32.gmra.mrb[0].mxu0 %v490
    %v591 = vpop.f32.mrb[0].mxu0
    %v592 = vadd.f32 0.0, %v591
    %v593 = vpop.f32.mrb[0].mxu0
    %594 = vmatprep.mubr.f32.mxu0 0.0
    %595 = vmatmul.mubr.f32.gmra.mrb[0].mxu0 %v493
    %v596 = vpop.f32.mrb[0].mxu0
    %v597 = vadd.f32 0.0, %v596
    %v598 = vpop.f32.mrb[0].mxu0
    %599 = vdwg.mxu0
    %v600 = vpack.c.bf16 %v567, %v562
    %v601 = vpack.c.bf16 %v577, %v572
    %v602 = vpack.c.bf16 %v587, %v582
    %v603 = vpack.c.bf16 %v597, %v592
    %s604 = scalar_lea.vmem %s4, 32
    %v605 = vld [vmem:[%s604] sm:$0xf]
    %v606 = vld [vmem:[%s604 + $0x4] sm:$0xf]
    %v607 = vld [vmem:[%s604 + $0x8] sm:$0xf]
    %v608 = vld [vmem:[%s604 + $0xc] sm:$0xf]
    %v609 = vld [vmem:[%s604 + $0x10] sm:$0xf]
    %v610 = vld [vmem:[%s604 + $0x14] sm:$0xf]
    %v611 = vld [vmem:[%s604 + $0x18] sm:$0xf]
    %v612 = vld [vmem:[%s604 + $0x1c] sm:$0xf]
    %v621 = vunpack.c.l.b16 %v605
    %v622 = vunpack.c.l.b16 %v606
    %v623 = vunpack.c.l.b16 %v607
    %v624 = vunpack.c.l.b16 %v608
    %v625 = vunpack.c.l.b16 %v609
    %v626 = vunpack.c.l.b16 %v610
    %v627 = vunpack.c.l.b16 %v611
    %v628 = vunpack.c.l.b16 %v612
    %v629 = vpack.c.b16 %v622, %v621
    %v630 = vpack.c.b16 %v624, %v623
    %v631 = vpack.c.b16 %v626, %v625
    %v632 = vpack.c.b16 %v628, %v627
    %vm637 = vcmask 523264
    %v639 = vsel %vm637, %v600, 0
    %v642 = vsel %vm637, %v601, 0
    %v645 = vsel %vm637, %v602, 0
    %v648 = vsel %vm637, %v603, 0
    %650 = vmatprep.subr.bf16.mxu0 0
    %651 = vmatpush1.bf16.msra.mxu0 %v629
    %652 = vmatprep.subr.bf16.mxu0 0
    %653 = vmatpush1.bf16.msra.mxu0 %v630
    %654 = vmatprep.subr.bf16.mxu0 0
    %655 = vmatpush1.bf16.msra.mxu0 %v631
    %656 = vmatprep.subr.bf16.mxu0 0
    %657 = vmatpush1.bf16.msra.mxu0 %v632
    %658 = vmatprep.subr.bf16.mxu0 0
    %659 = vmatpush1.bf16.msra.mxu0 0
    %660 = vmatprep.subr.bf16.mxu0 0
    %661 = vmatpush1.bf16.msra.mxu0 0
    %662 = vmatprep.subr.bf16.mxu0 0
    %663 = vmatpush1.bf16.msra.mxu0 0
    %664 = vmatprep.subr.bf16.mxu0 0
    %665 = vmatpush1.bf16.msra.mxu0 0
    %666 = vmatprep.subr.bf16.mxu0 0
    %667 = vmatpush1.bf16.msra.mxu0 0
    %668 = vmatprep.subr.bf16.mxu0 0
    %669 = vmatpush1.bf16.msra.mxu0 0
    %670 = vmatprep.subr.bf16.mxu0 0
    %671 = vmatpush1.bf16.msra.mxu0 0
    %672 = vmatprep.subr.bf16.mxu0 0
    %673 = vmatpush1.bf16.msra.mxu0 0
    %674 = vmatprep.subr.bf16.mxu0 0
    %675 = vmatpush1.bf16.msra.mxu0 0
    %676 = vmatprep.subr.bf16.mxu0 0
    %677 = vmatpush1.bf16.msra.mxu0 0
    %678 = vmatprep.subr.bf16.mxu0 0
    %679 = vmatpush1.bf16.msra.mxu0 0
    %680 = vmatprep.subr.bf16.mxu0 0
    %681 = vmatpush1.bf16.msra.mxu0 0
    %682 = vmatprep.mubr.bf16.mxu0 0
    %683 = vmatmul.mubr.bf16.gmra.mrb[0].mxu0 %v639
    %v684 = vpop.f32.mrb[0].mxu0
    %v685 = vadd.f32 0.0, %v684
    %v686 = vpop.f32.mrb[0].mxu0
    %v687 = vpop.f32.mrb[0].mxu0
    %v688 = vadd.f32 0.0, %v687
    %v689 = vpop.f32.mrb[0].mxu0
    %690 = vmatprep.mubr.bf16.mxu0 0
    %691 = vmatmul.mubr.bf16.gmra.mrb[0].mxu0 %v642
    %v692 = vpop.f32.mrb[0].mxu0
    %v693 = vadd.f32 0.0, %v692
    %v694 = vpop.f32.mrb[0].mxu0
    %v695 = vpop.f32.mrb[0].mxu0
    %v696 = vadd.f32 0.0, %v695
    %v697 = vpop.f32.mrb[0].mxu0
    %698 = vmatprep.mubr.bf16.mxu0 0
    %699 = vmatmul.mubr.bf16.gmra.mrb[0].mxu0 %v645
    %v700 = vpop.f32.mrb[0].mxu0
    %v701 = vadd.f32 0.0, %v700
    %v702 = vpop.f32.mrb[0].mxu0
    %v703 = vpop.f32.mrb[0].mxu0
    %v704 = vadd.f32 0.0, %v703
    %v705 = vpop.f32.mrb[0].mxu0
    %706 = vmatprep.mubr.bf16.mxu0 0
    %707 = vmatmul.mubr.bf16.gmra.mrb[0].mxu0 %v648
    %v708 = vpop.f32.mrb[0].mxu0
    %v709 = vadd.f32 0.0, %v708
    %v710 = vpop.f32.mrb[0].mxu0
    %v711 = vpop.f32.mrb[0].mxu0
    %v712 = vadd.f32 0.0, %v711
    %v713 = vpop.f32.mrb[0].mxu0
    %714 = vdwg.mxu0
    %v723 = vunpack.c.l.b16 %v454
    %v724 = vunpack.c.l.b16 %v455
    %v725 = vunpack.c.l.b16 %v456
    %v726 = vunpack.c.l.b16 %v457
    %v727 = vunpack.c.l.b16 %v458
    %v728 = vunpack.c.l.b16 %v459
    %v729 = vunpack.c.l.b16 %v460
    %v730 = vunpack.c.l.b16 %v461
    %v731 = vpack.c.b16 %v724, %v723
    %v732 = vpack.c.b16 %v726, %v725
    %v733 = vpack.c.b16 %v728, %v727
    %v734 = vpack.c.b16 %v730, %v729
    %v740 = vsel %vm637, %v450, 0
    %v743 = vsel %vm637, %v451, 0
    %v746 = vsel %vm637, %v452, 0
    %v749 = vsel %vm637, %v453, 0
    %751 = vmatprep.subr.bf16.mxu0 0
    %752 = vmatpush1.bf16.msra.mxu0 %v731
    %753 = vmatprep.subr.bf16.mxu0 0
    %754 = vmatpush1.bf16.msra.mxu0 %v732
    %755 = vmatprep.subr.bf16.mxu0 0
    %756 = vmatpush1.bf16.msra.mxu0 %v733
    %757 = vmatprep.subr.bf16.mxu0 0
    %758 = vmatpush1.bf16.msra.mxu0 %v734
    %759 = vmatprep.subr.bf16.mxu0 0
    %760 = vmatpush1.bf16.msra.mxu0 0
    %761 = vmatprep.subr.bf16.mxu0 0
    %762 = vmatpush1.bf16.msra.mxu0 0
    %763 = vmatprep.subr.bf16.mxu0 0
    %764 = vmatpush1.bf16.msra.mxu0 0
    %765 = vmatprep.subr.bf16.mxu0 0
    %766 = vmatpush1.bf16.msra.mxu0 0
    %767 = vmatprep.subr.bf16.mxu0 0
    %768 = vmatpush1.bf16.msra.mxu0 0
    %769 = vmatprep.subr.bf16.mxu0 0
    %770 = vmatpush1.bf16.msra.mxu0 0
    %771 = vmatprep.subr.bf16.mxu0 0
    %772 = vmatpush1.bf16.msra.mxu0 0
    %773 = vmatprep.subr.bf16.mxu0 0
    %774 = vmatpush1.bf16.msra.mxu0 0
    %775 = vmatprep.subr.bf16.mxu0 0
    %776 = vmatpush1.bf16.msra.mxu0 0
    %777 = vmatprep.subr.bf16.mxu0 0
    %778 = vmatpush1.bf16.msra.mxu0 0
    %779 = vmatprep.subr.bf16.mxu0 0
    %780 = vmatpush1.bf16.msra.mxu0 0
    %781 = vmatprep.subr.bf16.mxu0 0
    %782 = vmatpush1.bf16.msra.mxu0 0
    %783 = vmatprep.mubr.bf16.mxu0 0
    %784 = vmatmul.mubr.bf16.gmra.mrb[0].mxu0 %v740
    %v785 = vpop.f32.mrb[0].mxu0
    %v786 = vadd.f32 %v685, %v785
    %v787 = vpop.f32.mrb[0].mxu0
    %v788 = vpop.f32.mrb[0].mxu0
    %v789 = vadd.f32 %v688, %v788
    %v790 = vpop.f32.mrb[0].mxu0
    %791 = vmatprep.mubr.bf16.mxu0 0
    %792 = vmatmul.mubr.bf16.gmra.mrb[0].mxu0 %v743
    %v793 = vpop.f32.mrb[0].mxu0
    %v794 = vadd.f32 %v693, %v793
    %v795 = vpop.f32.mrb[0].mxu0
    %v796 = vpop.f32.mrb[0].mxu0
    %v797 = vadd.f32 %v696, %v796
    %v798 = vpop.f32.mrb[0].mxu0
    %799 = vmatprep.mubr.bf16.mxu0 0
    %800 = vmatmul.mubr.bf16.gmra.mrb[0].mxu0 %v746
    %v801 = vpop.f32.mrb[0].mxu0
    %v802 = vadd.f32 %v701, %v801
    %v803 = vpop.f32.mrb[0].mxu0
    %v804 = vpop.f32.mrb[0].mxu0
    %v805 = vadd.f32 %v704, %v804
    %v806 = vpop.f32.mrb[0].mxu0
    %807 = vmatprep.mubr.bf16.mxu0 0
    %808 = vmatmul.mubr.bf16.gmra.mrb[0].mxu0 %v749
    %v809 = vpop.f32.mrb[0].mxu0
    %v810 = vadd.f32 %v709, %v809
    %v811 = vpop.f32.mrb[0].mxu0
    %v812 = vpop.f32.mrb[0].mxu0
    %v813 = vadd.f32 %v712, %v812
    %v814 = vpop.f32.mrb[0].mxu0
    %815 = vdwg.mxu0
    %s816 = scalar_lea.vmem %s3, 128
    %v817 = vld [vmem:[%s816] sm:$0xff]
    %v818 = vld [vmem:[%s816 + $0x8] sm:$0xff]
    %v819 = vld [vmem:[%s816 + $0x10] sm:$0xff]
    %v820 = vld [vmem:[%s816 + $0x18] sm:$0xff]
    %v821 = vld [vmem:[%s816 + $0x20] sm:$0xff]
    %v822 = vld [vmem:[%s816 + $0x28] sm:$0xff]
    %v823 = vld [vmem:[%s816 + $0x30] sm:$0xff]
    %v824 = vld [vmem:[%s816 + $0x38] sm:$0x3]
    %v826 = vsel %vm316, %v817, 0
    %v829 = vsel %vm316, %v818, 0
    %v832 = vsel %vm316, %v819, 0
    %v835 = vsel %vm316, %v820, 0
    %v838 = vsel %vm316, %v821, 0
    %v841 = vsel %vm316, %v822, 0
    %v844 = vsel %vm316, %v823, 0
    %v847 = vsel %vm316, %v824, 0
    %849 = vmatprep.subr.mxu0 0.0
    %850 = vmatpush1.msra.mxu0 %v292
    %851 = vmatprep.subr.mxu0 0.0
    %852 = vmatpush1.msra.mxu0 %v293
    %853 = vmatprep.subr.mxu0 0.0
    %854 = vmatpush1.msra.mxu0 %v294
    %855 = vmatprep.subr.mxu0 0.0
    %856 = vmatpush1.msra.mxu0 %v295
    %857 = vmatprep.subr.mxu0 0.0
    %858 = vmatpush1.msra.mxu0 %v296
    %859 = vmatprep.subr.mxu0 0.0
    %860 = vmatpush1.msra.mxu0 %v297
    %861 = vmatprep.subr.mxu0 0.0
    %862 = vmatpush1.msra.mxu0 %v298
    %863 = vmatprep.subr.mxu0 0.0
    %864 = vmatpush1.msra.mxu0 %v299
    %865 = vmatprep.subr.mxu0 0.0
    %866 = vmatpush1.msra.mxu0 %v300
    %867 = vmatprep.subr.mxu0 0.0
    %868 = vmatpush1.msra.mxu0 %v301
    %869 = vmatprep.subr.mxu0 0.0
    %870 = vmatpush1.msra.mxu0 %v302
    %871 = vmatprep.subr.mxu0 0.0
    %872 = vmatpush1.msra.mxu0 %v303
    %873 = vmatprep.subr.mxu0 0.0
    %874 = vmatpush1.msra.mxu0 %v304
    %875 = vmatprep.subr.mxu0 0.0
    %876 = vmatpush1.msra.mxu0 %v305
    %877 = vmatprep.subr.mxu0 0.0
    %878 = vmatpush1.msra.mxu0 %v306
    %879 = vmatprep.subr.mxu0 0.0
    %880 = vmatpush1.msra.mxu0 %v343
    %881 = vmatprep.subr.mxu0 0.0
    %882 = vmatpush1.msra.mxu0 0.0
    %883 = vmatprep.subr.mxu0 0.0
    %884 = vmatpush1.msra.mxu0 0.0
    %885 = vmatprep.subr.mxu0 0.0
    %886 = vmatpush1.msra.mxu0 0.0
    %887 = vmatprep.subr.mxu0 0.0
    %888 = vmatpush1.msra.mxu0 0.0
    %889 = vmatprep.subr.mxu0 0.0
    %890 = vmatpush1.msra.mxu0 0.0
    %891 = vmatprep.subr.mxu0 0.0
    %892 = vmatpush1.msra.mxu0 0.0
    %893 = vmatprep.subr.mxu0 0.0
    %894 = vmatpush1.msra.mxu0 0.0
    %895 = vmatprep.subr.mxu0 0.0
    %896 = vmatpush1.msra.mxu0 0.0
    %897 = vmatprep.subr.mxu0 0.0
    %898 = vmatpush1.msra.mxu0 0.0
    %899 = vmatprep.subr.mxu0 0.0
    %900 = vmatpush1.msra.mxu0 0.0
    %901 = vmatprep.subr.mxu0 0.0
    %902 = vmatpush1.msra.mxu0 0.0
    %903 = vmatprep.subr.mxu0 0.0
    %904 = vmatpush1.msra.mxu0 0.0
    %905 = vmatprep.subr.mxu0 0.0
    %906 = vmatpush1.msra.mxu0 0.0
    %907 = vmatprep.subr.mxu0 0.0
    %908 = vmatpush1.msra.mxu0 0.0
    %909 = vmatprep.subr.mxu0 0.0
    %910 = vmatpush1.msra.mxu0 0.0
    %911 = vmatprep.subr.mxu0 0.0
    %912 = vmatpush1.msra.mxu0 0.0
    %913 = vmatprep.mubr.f32.mxu0 0.0
    %914 = vmatmul.mubr.f32.gmra.mrb[0].mxu0 %v826
    %v915 = vpop.f32.mrb[0].mxu0
    %v916 = vadd.f32 0.0, %v915
    %v917 = vpop.f32.mrb[0].mxu0
    %918 = vmatprep.mubr.f32.mxu0 0.0
    %919 = vmatmul.mubr.f32.gmra.mrb[0].mxu0 %v829
    %v920 = vpop.f32.mrb[0].mxu0
    %v921 = vadd.f32 0.0, %v920
    %v922 = vpop.f32.mrb[0].mxu0
    %923 = vmatprep.mubr.f32.mxu0 0.0
    %924 = vmatmul.mubr.f32.gmra.mrb[0].mxu0 %v832
    %v925 = vpop.f32.mrb[0].mxu0
    %v926 = vadd.f32 0.0, %v925
    %v927 = vpop.f32.mrb[0].mxu0
    %928 = vmatprep.mubr.f32.mxu0 0.0
    %929 = vmatmul.mubr.f32.gmra.mrb[0].mxu0 %v835
    %v930 = vpop.f32.mrb[0].mxu0
    %v931 = vadd.f32 0.0, %v930
    %v932 = vpop.f32.mrb[0].mxu0
    %933 = vmatprep.mubr.f32.mxu0 0.0
    %934 = vmatmul.mubr.f32.gmra.mrb[0].mxu0 %v838
    %v935 = vpop.f32.mrb[0].mxu0
    %v936 = vadd.f32 0.0, %v935
    %v937 = vpop.f32.mrb[0].mxu0
    %938 = vmatprep.mubr.f32.mxu0 0.0
    %939 = vmatmul.mubr.f32.gmra.mrb[0].mxu0 %v841
    %v940 = vpop.f32.mrb[0].mxu0
    %v941 = vadd.f32 0.0, %v940
    %v942 = vpop.f32.mrb[0].mxu0
    %943 = vmatprep.mubr.f32.mxu0 0.0
    %944 = vmatmul.mubr.f32.gmra.mrb[0].mxu0 %v844
    %v945 = vpop.f32.mrb[0].mxu0
    %v946 = vadd.f32 0.0, %v945
    %v947 = vpop.f32.mrb[0].mxu0
    %948 = vmatprep.mubr.f32.mxu0 0.0
    %949 = vmatmul.mubr.f32.gmra.mrb[0].mxu0 %v847
    %v950 = vpop.f32.mrb[0].mxu0
    %v951 = vadd.f32 0.0, %v950
    %v952 = vpop.f32.mrb[0].mxu0
    %953 = vdwg.mxu0
    %v954 = vpack.c.bf16 %v921, %v916
    %v955 = vpack.c.bf16 %v931, %v926
    %v956 = vpack.c.bf16 %v941, %v936
    %v957 = vpack.c.bf16 %v951, %v946
    %s958 = scalar_lea.vmem %s4, 64
    %v959 = vld [vmem:[%s958] sm:$0xf]
    %v960 = vld [vmem:[%s958 + $0x4] sm:$0xf]
    %v961 = vld [vmem:[%s958 + $0x8] sm:$0xf]
    %v962 = vld [vmem:[%s958 + $0xc] sm:$0xf]
    %v963 = vld [vmem:[%s958 + $0x10] sm:$0xf]
    %v964 = vld [vmem:[%s958 + $0x14] sm:$0xf]
    %v965 = vld [vmem:[%s958 + $0x18] sm:$0xf]
    %v966 = vld [vmem:[%s958 + $0x1c] sm:$0xf]
    %v975 = vunpack.c.l.b16 %v959
    %v976 = vunpack.c.l.b16 %v960
    %v977 = vunpack.c.l.b16 %v961
    %v978 = vunpack.c.l.b16 %v962
    %v979 = vunpack.c.l.b16 %v963
    %v980 = vunpack.c.l.b16 %v964
    %v981 = vunpack.c.l.b16 %v965
    %v982 = vunpack.c.l.b16 %v966
    %v983 = vpack.c.b16 %v976, %v975
    %v984 = vpack.c.b16 %v978, %v977
    %v985 = vpack.c.b16 %v980, %v979
    %v986 = vpack.c.b16 %v982, %v981
    %v992 = vsel %vm637, %v954, 0
    %v995 = vsel %vm637, %v955, 0
    %v998 = vsel %vm637, %v956, 0
    %v1001 = vsel %vm637, %v957, 0
    %1003 = vmatprep.subr.bf16.mxu0 0
    %1004 = vmatpush1.bf16.msra.mxu0 %v983
    %1005 = vmatprep.subr.bf16.mxu0 0
    %1006 = vmatpush1.bf16.msra.mxu0 %v984
    %1007 = vmatprep.subr.bf16.mxu0 0
    %1008 = vmatpush1.bf16.msra.mxu0 %v985
    %1009 = vmatprep.subr.bf16.mxu0 0
    %1010 = vmatpush1.bf16.msra.mxu0 %v986
    %1011 = vmatprep.subr.bf16.mxu0 0
    %1012 = vmatpush1.bf16.msra.mxu0 0
    %1013 = vmatprep.subr.bf16.mxu0 0
    %1014 = vmatpush1.bf16.msra.mxu0 0
    %1015 = vmatprep.subr.bf16.mxu0 0
    %1016 = vmatpush1.bf16.msra.mxu0 0
    %1017 = vmatprep.subr.bf16.mxu0 0
    %1018 = vmatpush1.bf16.msra.mxu0 0
    %1019 = vmatprep.subr.bf16.mxu0 0
    %1020 = vmatpush1.bf16.msra.mxu0 0
    %1021 = vmatprep.subr.bf16.mxu0 0
    %1022 = vmatpush1.bf16.msra.mxu0 0
    %1023 = vmatprep.subr.bf16.mxu0 0
    %1024 = vmatpush1.bf16.msra.mxu0 0
    %1025 = vmatprep.subr.bf16.mxu0 0
    %1026 = vmatpush1.bf16.msra.mxu0 0
    %1027 = vmatprep.subr.bf16.mxu0 0
    %1028 = vmatpush1.bf16.msra.mxu0 0
    %1029 = vmatprep.subr.bf16.mxu0 0
    %1030 = vmatpush1.bf16.msra.mxu0 0
    %1031 = vmatprep.subr.bf16.mxu0 0
    %1032 = vmatpush1.bf16.msra.mxu0 0
    %1033 = vmatprep.subr.bf16.mxu0 0
    %1034 = vmatpush1.bf16.msra.mxu0 0
    %1035 = vmatprep.mubr.bf16.mxu0 0
    %1036 = vmatmul.mubr.bf16.gmra.mrb[0].mxu0 %v992
    %v1037 = vpop.f32.mrb[0].mxu0
    %v1038 = vadd.f32 0.0, %v1037
    %v1039 = vpop.f32.mrb[0].mxu0
    %v1040 = vpop.f32.mrb[0].mxu0
    %v1041 = vadd.f32 0.0, %v1040
    %v1042 = vpop.f32.mrb[0].mxu0
    %1043 = vmatprep.mubr.bf16.mxu0 0
    %1044 = vmatmul.mubr.bf16.gmra.mrb[0].mxu0 %v995
    %v1045 = vpop.f32.mrb[0].mxu0
    %v1046 = vadd.f32 0.0, %v1045
    %v1047 = vpop.f32.mrb[0].mxu0
    %v1048 = vpop.f32.mrb[0].mxu0
    %v1049 = vadd.f32 0.0, %v1048
    %v1050 = vpop.f32.mrb[0].mxu0
    %1051 = vmatprep.mubr.bf16.mxu0 0
    %1052 = vmatmul.mubr.bf16.gmra.mrb[0].mxu0 %v998
    %v1053 = vpop.f32.mrb[0].mxu0
    %v1054 = vadd.f32 0.0, %v1053
    %v1055 = vpop.f32.mrb[0].mxu0
    %v1056 = vpop.f32.mrb[0].mxu0
    %v1057 = vadd.f32 0.0, %v1056
    %v1058 = vpop.f32.mrb[0].mxu0
    %1059 = vmatprep.mubr.bf16.mxu0 0
    %1060 = vmatmul.mubr.bf16.gmra.mrb[0].mxu0 %v1001
    %v1061 = vpop.f32.mrb[0].mxu0
    %v1062 = vadd.f32 0.0, %v1061
    %v1063 = vpop.f32.mrb[0].mxu0
    %v1064 = vpop.f32.mrb[0].mxu0
    %v1065 = vadd.f32 0.0, %v1064
    %v1066 = vpop.f32.mrb[0].mxu0
    %1067 = vdwg.mxu0
    %v1068 = vadd.f32 %v786, %v1038
    %v1069 = vadd.f32 %v789, %v1041
    %v1070 = vadd.f32 %v794, %v1046
    %v1071 = vadd.f32 %v797, %v1049
    %v1072 = vadd.f32 %v802, %v1054
    %v1073 = vadd.f32 %v805, %v1057
    %v1074 = vadd.f32 %v810, %v1062
    %v1075 = vadd.f32 %v813, %v1065
    %s1076 = scalar_lea.vmem %s3, 192
    %v1077 = vld [vmem:[%s1076] sm:$0xff]
    %v1078 = vld [vmem:[%s1076 + $0x8] sm:$0xff]
    %v1079 = vld [vmem:[%s1076 + $0x10] sm:$0xff]
    %v1080 = vld [vmem:[%s1076 + $0x18] sm:$0xff]
    %v1081 = vld [vmem:[%s1076 + $0x20] sm:$0xff]
    %v1082 = vld [vmem:[%s1076 + $0x28] sm:$0xff]
    %v1083 = vld [vmem:[%s1076 + $0x30] sm:$0xff]
    %v1084 = vld [vmem:[%s1076 + $0x38] sm:$0x3]
    %v1086 = vsel %vm316, %v1077, 0
    %v1089 = vsel %vm316, %v1078, 0
    %v1092 = vsel %vm316, %v1079, 0
    %v1095 = vsel %vm316, %v1080, 0
    %v1098 = vsel %vm316, %v1081, 0
    %v1101 = vsel %vm316, %v1082, 0
    %v1104 = vsel %vm316, %v1083, 0
    %v1107 = vsel %vm316, %v1084, 0
    %1109 = vmatprep.subr.mxu0 0.0
    %1110 = vmatpush1.msra.mxu0 %v292
    %1111 = vmatprep.subr.mxu0 0.0
    %1112 = vmatpush1.msra.mxu0 %v293
    %1113 = vmatprep.subr.mxu0 0.0
    %1114 = vmatpush1.msra.mxu0 %v294
    %1115 = vmatprep.subr.mxu0 0.0
    %1116 = vmatpush1.msra.mxu0 %v295
    %1117 = vmatprep.subr.mxu0 0.0
    %1118 = vmatpush1.msra.mxu0 %v296
    %1119 = vmatprep.subr.mxu0 0.0
    %1120 = vmatpush1.msra.mxu0 %v297
    %1121 = vmatprep.subr.mxu0 0.0
    %1122 = vmatpush1.msra.mxu0 %v298
    %1123 = vmatprep.subr.mxu0 0.0
    %1124 = vmatpush1.msra.mxu0 %v299
    %1125 = vmatprep.subr.mxu0 0.0
    %1126 = vmatpush1.msra.mxu0 %v300
    %1127 = vmatprep.subr.mxu0 0.0
    %1128 = vmatpush1.msra.mxu0 %v301
    %1129 = vmatprep.subr.mxu0 0.0
    %1130 = vmatpush1.msra.mxu0 %v302
    %1131 = vmatprep.subr.mxu0 0.0
    %1132 = vmatpush1.msra.mxu0 %v303
    %1133 = vmatprep.subr.mxu0 0.0
    %1134 = vmatpush1.msra.mxu0 %v304
    %1135 = vmatprep.subr.mxu0 0.0
    %1136 = vmatpush1.msra.mxu0 %v305
    %1137 = vmatprep.subr.mxu0 0.0
    %1138 = vmatpush1.msra.mxu0 %v306
    %1139 = vmatprep.subr.mxu0 0.0
    %1140 = vmatpush1.msra.mxu0 %v343
    %1141 = vmatprep.subr.mxu0 0.0
    %1142 = vmatpush1.msra.mxu0 0.0
    %1143 = vmatprep.subr.mxu0 0.0
    %1144 = vmatpush1.msra.mxu0 0.0
    %1145 = vmatprep.subr.mxu0 0.0
    %1146 = vmatpush1.msra.mxu0 0.0
    %1147 = vmatprep.subr.mxu0 0.0
    %1148 = vmatpush1.msra.mxu0 0.0
    %1149 = vmatprep.subr.mxu0 0.0
    %1150 = vmatpush1.msra.mxu0 0.0
    %1151 = vmatprep.subr.mxu0 0.0
    %1152 = vmatpush1.msra.mxu0 0.0
    %1153 = vmatprep.subr.mxu0 0.0
    %1154 = vmatpush1.msra.mxu0 0.0
    %1155 = vmatprep.subr.mxu0 0.0
    %1156 = vmatpush1.msra.mxu0 0.0
    %1157 = vmatprep.subr.mxu0 0.0
    %1158 = vmatpush1.msra.mxu0 0.0
    %1159 = vmatprep.subr.mxu0 0.0
    %1160 = vmatpush1.msra.mxu0 0.0
    %1161 = vmatprep.subr.mxu0 0.0
    %1162 = vmatpush1.msra.mxu0 0.0
    %1163 = vmatprep.subr.mxu0 0.0
    %1164 = vmatpush1.msra.mxu0 0.0
    %1165 = vmatprep.subr.mxu0 0.0
    %1166 = vmatpush1.msra.mxu0 0.0
    %1167 = vmatprep.subr.mxu0 0.0
    %1168 = vmatpush1.msra.mxu0 0.0
    %1169 = vmatprep.subr.mxu0 0.0
    %1170 = vmatpush1.msra.mxu0 0.0
    %1171 = vmatprep.subr.mxu0 0.0
    %1172 = vmatpush1.msra.mxu0 0.0
    %1173 = vmatprep.mubr.f32.mxu0 0.0
    %1174 = vmatmul.mubr.f32.gmra.mrb[0].mxu0 %v1086
    %v1175 = vpop.f32.mrb[0].mxu0
    %v1176 = vadd.f32 0.0, %v1175
    %v1177 = vpop.f32.mrb[0].mxu0
    %1178 = vmatprep.mubr.f32.mxu0 0.0
    %1179 = vmatmul.mubr.f32.gmra.mrb[0].mxu0 %v1089
    %v1180 = vpop.f32.mrb[0].mxu0
    %v1181 = vadd.f32 0.0, %v1180
    %v1182 = vpop.f32.mrb[0].mxu0
    %1183 = vmatprep.mubr.f32.mxu0 0.0
    %1184 = vmatmul.mubr.f32.gmra.mrb[0].mxu0 %v1092
    %v1185 = vpop.f32.mrb[0].mxu0
    %v1186 = vadd.f32 0.0, %v1185
    %v1187 = vpop.f32.mrb[0].mxu0
    %1188 = vmatprep.mubr.f32.mxu0 0.0
    %1189 = vmatmul.mubr.f32.gmra.mrb[0].mxu0 %v1095
    %v1190 = vpop.f32.mrb[0].mxu0
    %v1191 = vadd.f32 0.0, %v1190
    %v1192 = vpop.f32.mrb[0].mxu0
    %1193 = vmatprep.mubr.f32.mxu0 0.0
    %1194 = vmatmul.mubr.f32.gmra.mrb[0].mxu0 %v1098
    %v1195 = vpop.f32.mrb[0].mxu0
    %v1196 = vadd.f32 0.0, %v1195
    %v1197 = vpop.f32.mrb[0].mxu0
    %1198 = vmatprep.mubr.f32.mxu0 0.0
    %1199 = vmatmul.mubr.f32.gmra.mrb[0].mxu0 %v1101
    %v1200 = vpop.f32.mrb[0].mxu0
    %v1201 = vadd.f32 0.0, %v1200
    %v1202 = vpop.f32.mrb[0].mxu0
    %1203 = vmatprep.mubr.f32.mxu0 0.0
    %1204 = vmatmul.mubr.f32.gmra.mrb[0].mxu0 %v1104
    %v1205 = vpop.f32.mrb[0].mxu0
    %v1206 = vadd.f32 0.0, %v1205
    %v1207 = vpop.f32.mrb[0].mxu0
    %1208 = vmatprep.mubr.f32.mxu0 0.0
    %1209 = vmatmul.mubr.f32.gmra.mrb[0].mxu0 %v1107
    %v1210 = vpop.f32.mrb[0].mxu0
    %v1211 = vadd.f32 0.0, %v1210
    %v1212 = vpop.f32.mrb[0].mxu0
    %1213 = vdwg.mxu0
    %v1214 = vpack.c.bf16 %v1181, %v1176
    %v1215 = vpack.c.bf16 %v1191, %v1186
    %v1216 = vpack.c.bf16 %v1201, %v1196
    %v1217 = vpack.c.bf16 %v1211, %v1206
    %s1218 = scalar_lea.vmem %s4, 96
    %v1219 = vld [vmem:[%s1218] sm:$0xf]
    %v1220 = vld [vmem:[%s1218 + $0x4] sm:$0xf]
    %v1221 = vld [vmem:[%s1218 + $0x8] sm:$0xf]
    %v1222 = vld [vmem:[%s1218 + $0xc] sm:$0xf]
    %v1223 = vld [vmem:[%s1218 + $0x10] sm:$0xf]
    %v1224 = vld [vmem:[%s1218 + $0x14] sm:$0xf]
    %v1225 = vld [vmem:[%s1218 + $0x18] sm:$0xf]
    %v1226 = vld [vmem:[%s1218 + $0x1c] sm:$0xf]
    %v1235 = vunpack.c.l.b16 %v1219
    %v1236 = vunpack.c.l.b16 %v1220
    %v1237 = vunpack.c.l.b16 %v1221
    %v1238 = vunpack.c.l.b16 %v1222
    %v1239 = vunpack.c.l.b16 %v1223
    %v1240 = vunpack.c.l.b16 %v1224
    %v1241 = vunpack.c.l.b16 %v1225
    %v1242 = vunpack.c.l.b16 %v1226
    %v1243 = vpack.c.b16 %v1236, %v1235
    %v1244 = vpack.c.b16 %v1238, %v1237
    %v1245 = vpack.c.b16 %v1240, %v1239
    %v1246 = vpack.c.b16 %v1242, %v1241
    %v1252 = vsel %vm637, %v1214, 0
    %v1255 = vsel %vm637, %v1215, 0
    %v1258 = vsel %vm637, %v1216, 0
    %v1261 = vsel %vm637, %v1217, 0
    %1263 = vmatprep.subr.bf16.mxu0 0
    %1264 = vmatpush1.bf16.msra.mxu0 %v1243
    %1265 = vmatprep.subr.bf16.mxu0 0
    %1266 = vmatpush1.bf16.msra.mxu0 %v1244
    %1267 = vmatprep.subr.bf16.mxu0 0
    %1268 = vmatpush1.bf16.msra.mxu0 %v1245
    %1269 = vmatprep.subr.bf16.mxu0 0
    %1270 = vmatpush1.bf16.msra.mxu0 %v1246
    %1271 = vmatprep.subr.bf16.mxu0 0
    %1272 = vmatpush1.bf16.msra.mxu0 0
    %1273 = vmatprep.subr.bf16.mxu0 0
    %1274 = vmatpush1.bf16.msra.mxu0 0
    %1275 = vmatprep.subr.bf16.mxu0 0
    %1276 = vmatpush1.bf16.msra.mxu0 0
    %1277 = vmatprep.subr.bf16.mxu0 0
    %1278 = vmatpush1.bf16.msra.mxu0 0
    %1279 = vmatprep.subr.bf16.mxu0 0
    %1280 = vmatpush1.bf16.msra.mxu0 0
    %1281 = vmatprep.subr.bf16.mxu0 0
    %1282 = vmatpush1.bf16.msra.mxu0 0
    %1283 = vmatprep.subr.bf16.mxu0 0
    %1284 = vmatpush1.bf16.msra.mxu0 0
    %1285 = vmatprep.subr.bf16.mxu0 0
    %1286 = vmatpush1.bf16.msra.mxu0 0
    %1287 = vmatprep.subr.bf16.mxu0 0
    %1288 = vmatpush1.bf16.msra.mxu0 0
    %1289 = vmatprep.subr.bf16.mxu0 0
    %1290 = vmatpush1.bf16.msra.mxu0 0
    %1291 = vmatprep.subr.bf16.mxu0 0
    %1292 = vmatpush1.bf16.msra.mxu0 0
    %1293 = vmatprep.subr.bf16.mxu0 0
    %1294 = vmatpush1.bf16.msra.mxu0 0
    %1295 = vmatprep.mubr.bf16.mxu0 0
    %1296 = vmatmul.mubr.bf16.gmra.mrb[0].mxu0 %v1252
    %v1297 = vpop.f32.mrb[0].mxu0
    %v1298 = vadd.f32 0.0, %v1297
    %v1299 = vpop.f32.mrb[0].mxu0
    %v1300 = vpop.f32.mrb[0].mxu0
    %v1301 = vadd.f32 0.0, %v1300
    %v1302 = vpop.f32.mrb[0].mxu0
    %1303 = vmatprep.mubr.bf16.mxu0 0
    %1304 = vmatmul.mubr.bf16.gmra.mrb[0].mxu0 %v1255
    %v1305 = vpop.f32.mrb[0].mxu0
    %v1306 = vadd.f32 0.0, %v1305
    %v1307 = vpop.f32.mrb[0].mxu0
    %v1308 = vpop.f32.mrb[0].mxu0
    %v1309 = vadd.f32 0.0, %v1308
    %v1310 = vpop.f32.mrb[0].mxu0
    %1311 = vmatprep.mubr.bf16.mxu0 0
    %1312 = vmatmul.mubr.bf16.gmra.mrb[0].mxu0 %v1258
    %v1313 = vpop.f32.mrb[0].mxu0
    %v1314 = vadd.f32 0.0, %v1313
    %v1315 = vpop.f32.mrb[0].mxu0
    %v1316 = vpop.f32.mrb[0].mxu0
    %v1317 = vadd.f32 0.0, %v1316
    %v1318 = vpop.f32.mrb[0].mxu0
    %1319 = vmatprep.mubr.bf16.mxu0 0
    %1320 = vmatmul.mubr.bf16.gmra.mrb[0].mxu0 %v1261
    %v1321 = vpop.f32.mrb[0].mxu0
    %v1322 = vadd.f32 0.0, %v1321
    %v1323 = vpop.f32.mrb[0].mxu0
    %v1324 = vpop.f32.mrb[0].mxu0
    %v1325 = vadd.f32 0.0, %v1324
    %v1326 = vpop.f32.mrb[0].mxu0
    %1327 = vdwg.mxu0
    %v1328 = vadd.f32 %v1068, %v1298
    %v1329 = vadd.f32 %v1069, %v1301
    %v1330 = vadd.f32 %v1070, %v1306
    %v1331 = vadd.f32 %v1071, %v1309
    %v1332 = vadd.f32 %v1072, %v1314
    %v1333 = vadd.f32 %v1073, %v1317
    %v1334 = vadd.f32 %v1074, %v1322
    %v1335 = vadd.f32 %v1075, %v1325
    %s1336 = scalar_lea.vmem %s3, 256
    %v1337 = vld [vmem:[%s1336] sm:$0xff]
    %v1338 = vld [vmem:[%s1336 + $0x8] sm:$0xff]
    %v1339 = vld [vmem:[%s1336 + $0x10] sm:$0xff]
    %v1340 = vld [vmem:[%s1336 + $0x18] sm:$0xff]
    %v1341 = vld [vmem:[%s1336 + $0x20] sm:$0xff]
    %v1342 = vld [vmem:[%s1336 + $0x28] sm:$0xff]
    %v1343 = vld [vmem:[%s1336 + $0x30] sm:$0xff]
    %v1344 = vld [vmem:[%s1336 + $0x38] sm:$0x3]
    %v1346 = vsel %vm316, %v1337, 0
    %v1349 = vsel %vm316, %v1338, 0
    %v1352 = vsel %vm316, %v1339, 0
    %v1355 = vsel %vm316, %v1340, 0
    %v1358 = vsel %vm316, %v1341, 0
    %v1361 = vsel %vm316, %v1342, 0
    %v1364 = vsel %vm316, %v1343, 0
    %v1367 = vsel %vm316, %v1344, 0
    %1369 = vmatprep.subr.mxu0 0.0
    %1370 = vmatpush1.msra.mxu0 %v292
    %1371 = vmatprep.subr.mxu0 0.0
    %1372 = vmatpush1.msra.mxu0 %v293
    %1373 = vmatprep.subr.mxu0 0.0
    %1374 = vmatpush1.msra.mxu0 %v294
    %1375 = vmatprep.subr.mxu0 0.0
    %1376 = vmatpush1.msra.mxu0 %v295
    %1377 = vmatprep.subr.mxu0 0.0
    %1378 = vmatpush1.msra.mxu0 %v296
    %1379 = vmatprep.subr.mxu0 0.0
    %1380 = vmatpush1.msra.mxu0 %v297
    %1381 = vmatprep.subr.mxu0 0.0
    %1382 = vmatpush1.msra.mxu0 %v298
    %1383 = vmatprep.subr.mxu0 0.0
    %1384 = vmatpush1.msra.mxu0 %v299
    %1385 = vmatprep.subr.mxu0 0.0
    %1386 = vmatpush1.msra.mxu0 %v300
    %1387 = vmatprep.subr.mxu0 0.0
    %1388 = vmatpush1.msra.mxu0 %v301
    %1389 = vmatprep.subr.mxu0 0.0
    %1390 = vmatpush1.msra.mxu0 %v302
    %1391 = vmatprep.subr.mxu0 0.0
    %1392 = vmatpush1.msra.mxu0 %v303
    %1393 = vmatprep.subr.mxu0 0.0
    %1394 = vmatpush1.msra.mxu0 %v304
    %1395 = vmatprep.subr.mxu0 0.0
    %1396 = vmatpush1.msra.mxu0 %v305
    %1397 = vmatprep.subr.mxu0 0.0
    %1398 = vmatpush1.msra.mxu0 %v306
    %1399 = vmatprep.subr.mxu0 0.0
    %1400 = vmatpush1.msra.mxu0 %v343
    %1401 = vmatprep.subr.mxu0 0.0
    %1402 = vmatpush1.msra.mxu0 0.0
    %1403 = vmatprep.subr.mxu0 0.0
    %1404 = vmatpush1.msra.mxu0 0.0
    %1405 = vmatprep.subr.mxu0 0.0
    %1406 = vmatpush1.msra.mxu0 0.0
    %1407 = vmatprep.subr.mxu0 0.0
    %1408 = vmatpush1.msra.mxu0 0.0
    %1409 = vmatprep.subr.mxu0 0.0
    %1410 = vmatpush1.msra.mxu0 0.0
    %1411 = vmatprep.subr.mxu0 0.0
    %1412 = vmatpush1.msra.mxu0 0.0
    %1413 = vmatprep.subr.mxu0 0.0
    %1414 = vmatpush1.msra.mxu0 0.0
    %1415 = vmatprep.subr.mxu0 0.0
    %1416 = vmatpush1.msra.mxu0 0.0
    %1417 = vmatprep.subr.mxu0 0.0
    %1418 = vmatpush1.msra.mxu0 0.0
    %1419 = vmatprep.subr.mxu0 0.0
    %1420 = vmatpush1.msra.mxu0 0.0
    %1421 = vmatprep.subr.mxu0 0.0
    %1422 = vmatpush1.msra.mxu0 0.0
    %1423 = vmatprep.subr.mxu0 0.0
    %1424 = vmatpush1.msra.mxu0 0.0
    %1425 = vmatprep.subr.mxu0 0.0
    %1426 = vmatpush1.msra.mxu0 0.0
    %1427 = vmatprep.subr.mxu0 0.0
    %1428 = vmatpush1.msra.mxu0 0.0
    %1429 = vmatprep.subr.mxu0 0.0
    %1430 = vmatpush1.msra.mxu0 0.0
    %1431 = vmatprep.subr.mxu0 0.0
    %1432 = vmatpush1.msra.mxu0 0.0
    %1433 = vmatprep.mubr.f32.mxu0 0.0
    %1434 = vmatmul.mubr.f32.gmra.mrb[0].mxu0 %v1346
    %v1435 = vpop.f32.mrb[0].mxu0
    %v1436 = vadd.f32 0.0, %v1435
    %v1437 = vpop.f32.mrb[0].mxu0
    %1438 = vmatprep.mubr.f32.mxu0 0.0
    %1439 = vmatmul.mubr.f32.gmra.mrb[0].mxu0 %v1349
    %v1440 = vpop.f32.mrb[0].mxu0
    %v1441 = vadd.f32 0.0, %v1440
    %v1442 = vpop.f32.mrb[0].mxu0
    %1443 = vmatprep.mubr.f32.mxu0 0.0
    %1444 = vmatmul.mubr.f32.gmra.mrb[0].mxu0 %v1352
    %v1445 = vpop.f32.mrb[0].mxu0
    %v1446 = vadd.f32 0.0, %v1445
    %v1447 = vpop.f32.mrb[0].mxu0
    %1448 = vmatprep.mubr.f32.mxu0 0.0
    %1449 = vmatmul.mubr.f32.gmra.mrb[0].mxu0 %v1355
    %v1450 = vpop.f32.mrb[0].mxu0
    %v1451 = vadd.f32 0.0, %v1450
    %v1452 = vpop.f32.mrb[0].mxu0
    %1453 = vmatprep.mubr.f32.mxu0 0.0
    %1454 = vmatmul.mubr.f32.gmra.mrb[0].mxu0 %v1358
    %v1455 = vpop.f32.mrb[0].mxu0
    %v1456 = vadd.f32 0.0, %v1455
    %v1457 = vpop.f32.mrb[0].mxu0
    %1458 = vmatprep.mubr.f32.mxu0 0.0
    %1459 = vmatmul.mubr.f32.gmra.mrb[0].mxu0 %v1361
    %v1460 = vpop.f32.mrb[0].mxu0
    %v1461 = vadd.f32 0.0, %v1460
    %v1462 = vpop.f32.mrb[0].mxu0
    %1463 = vmatprep.mubr.f32.mxu0 0.0
    %1464 = vmatmul.mubr.f32.gmra.mrb[0].mxu0 %v1364
    %v1465 = vpop.f32.mrb[0].mxu0
    %v1466 = vadd.f32 0.0, %v1465
    %v1467 = vpop.f32.mrb[0].mxu0
    %1468 = vmatprep.mubr.f32.mxu0 0.0
    %1469 = vmatmul.mubr.f32.gmra.mrb[0].mxu0 %v1367
    %v1470 = vpop.f32.mrb[0].mxu0
    %v1471 = vadd.f32 0.0, %v1470
    %v1472 = vpop.f32.mrb[0].mxu0
    %1473 = vdwg.mxu0
    %v1474 = vpack.c.bf16 %v1441, %v1436
    %v1475 = vpack.c.bf16 %v1451, %v1446
    %v1476 = vpack.c.bf16 %v1461, %v1456
    %v1477 = vpack.c.bf16 %v1471, %v1466
    %s1478 = scalar_lea.vmem %s4, 128
    %v1479 = vld [vmem:[%s1478] sm:$0xf]
    %v1480 = vld [vmem:[%s1478 + $0x4] sm:$0xf]
    %v1481 = vld [vmem:[%s1478 + $0x8] sm:$0xf]
    %v1482 = vld [vmem:[%s1478 + $0xc] sm:$0xf]
    %v1483 = vld [vmem:[%s1478 + $0x10] sm:$0xf]
    %v1484 = vld [vmem:[%s1478 + $0x14] sm:$0xf]
    %v1485 = vld [vmem:[%s1478 + $0x18] sm:$0xf]
    %v1486 = vld [vmem:[%s1478 + $0x1c] sm:$0xf]
    %v1495 = vunpack.c.l.b16 %v1479
    %v1496 = vunpack.c.l.b16 %v1480
    %v1497 = vunpack.c.l.b16 %v1481
    %v1498 = vunpack.c.l.b16 %v1482
    %v1499 = vunpack.c.l.b16 %v1483
    %v1500 = vunpack.c.l.b16 %v1484
    %v1501 = vunpack.c.l.b16 %v1485
    %v1502 = vunpack.c.l.b16 %v1486
    %v1503 = vpack.c.b16 %v1496, %v1495
    %v1504 = vpack.c.b16 %v1498, %v1497
    %v1505 = vpack.c.b16 %v1500, %v1499
    %v1506 = vpack.c.b16 %v1502, %v1501
    %v1512 = vsel %vm637, %v1474, 0
    %v1515 = vsel %vm637, %v1475, 0
    %v1518 = vsel %vm637, %v1476, 0
    %v1521 = vsel %vm637, %v1477, 0
    %1523 = vmatprep.subr.bf16.mxu0 0
    %1524 = vmatpush1.bf16.msra.mxu0 %v1503
    %1525 = vmatprep.subr.bf16.mxu0 0
    %1526 = vmatpush1.bf16.msra.mxu0 %v1504
    %1527 = vmatprep.subr.bf16.mxu0 0
    %1528 = vmatpush1.bf16.msra.mxu0 %v1505
    %1529 = vmatprep.subr.bf16.mxu0 0
    %1530 = vmatpush1.bf16.msra.mxu0 %v1506
    %1531 = vmatprep.subr.bf16.mxu0 0
    %1532 = vmatpush1.bf16.msra.mxu0 0
    %1533 = vmatprep.subr.bf16.mxu0 0
    %1534 = vmatpush1.bf16.msra.mxu0 0
    %1535 = vmatprep.subr.bf16.mxu0 0
    %1536 = vmatpush1.bf16.msra.mxu0 0
    %1537 = vmatprep.subr.bf16.mxu0 0
    %1538 = vmatpush1.bf16.msra.mxu0 0
    %1539 = vmatprep.subr.bf16.mxu0 0
    %1540 = vmatpush1.bf16.msra.mxu0 0
    %1541 = vmatprep.subr.bf16.mxu0 0
    %1542 = vmatpush1.bf16.msra.mxu0 0
    %1543 = vmatprep.subr.bf16.mxu0 0
    %1544 = vmatpush1.bf16.msra.mxu0 0
    %1545 = vmatprep.subr.bf16.mxu0 0
    %1546 = vmatpush1.bf16.msra.mxu0 0
    %1547 = vmatprep.subr.bf16.mxu0 0
    %1548 = vmatpush1.bf16.msra.mxu0 0
    %1549 = vmatprep.subr.bf16.mxu0 0
    %1550 = vmatpush1.bf16.msra.mxu0 0
    %1551 = vmatprep.subr.bf16.mxu0 0
    %1552 = vmatpush1.bf16.msra.mxu0 0
    %1553 = vmatprep.subr.bf16.mxu0 0
    %1554 = vmatpush1.bf16.msra.mxu0 0
    %1555 = vmatprep.mubr.bf16.mxu0 0
    %1556 = vmatmul.mubr.bf16.gmra.mrb[0].mxu0 %v1512
    %v1557 = vpop.f32.mrb[0].mxu0
    %v1558 = vadd.f32 0.0, %v1557
    %v1559 = vpop.f32.mrb[0].mxu0
    %v1560 = vpop.f32.mrb[0].mxu0
    %v1561 = vadd.f32 0.0, %v1560
    %v1562 = vpop.f32.mrb[0].mxu0
    %1563 = vmatprep.mubr.bf16.mxu0 0
    %1564 = vmatmul.mubr.bf16.gmra.mrb[0].mxu0 %v1515
    %v1565 = vpop.f32.mrb[0].mxu0
    %v1566 = vadd.f32 0.0, %v1565
    %v1567 = vpop.f32.mrb[0].mxu0
    %v1568 = vpop.f32.mrb[0].mxu0
    %v1569 = vadd.f32 0.0, %v1568
    %v1570 = vpop.f32.mrb[0].mxu0
    %1571 = vmatprep.mubr.bf16.mxu0 0
    %1572 = vmatmul.mubr.bf16.gmra.mrb[0].mxu0 %v1518
    %v1573 = vpop.f32.mrb[0].mxu0
    %v1574 = vadd.f32 0.0, %v1573
    %v1575 = vpop.f32.mrb[0].mxu0
    %v1576 = vpop.f32.mrb[0].mxu0
    %v1577 = vadd.f32 0.0, %v1576
    %v1578 = vpop.f32.mrb[0].mxu0
    %1579 = vmatprep.mubr.bf16.mxu0 0
    %1580 = vmatmul.mubr.bf16.gmra.mrb[0].mxu0 %v1521
    %v1581 = vpop.f32.mrb[0].mxu0
    %v1582 = vadd.f32 0.0, %v1581
    %v1583 = vpop.f32.mrb[0].mxu0
    %v1584 = vpop.f32.mrb[0].mxu0
    %v1585 = vadd.f32 0.0, %v1584
    %v1586 = vpop.f32.mrb[0].mxu0
    %1587 = vdwg.mxu0
    %v1588 = vadd.f32 %v1328, %v1558
    %v1589 = vadd.f32 %v1329, %v1561
    %v1590 = vadd.f32 %v1330, %v1566
    %v1591 = vadd.f32 %v1331, %v1569
    %v1592 = vadd.f32 %v1332, %v1574
    %v1593 = vadd.f32 %v1333, %v1577
    %v1594 = vadd.f32 %v1334, %v1582
    %v1595 = vadd.f32 %v1335, %v1585
    %v1596 = vld [vmem:[%s5] sm:$0x1]
    %v1598 = vlaneseq
    %v1599 = vshrl.u32 %v1598, 7
    %v1600 = vsub.s32 0, %v1599
    %v1601 = vrot.slane %v1596, %v1600
    %v1603 = vadd.f32 %v1588, %v1601
    %v1604 = vadd.f32 %v1589, %v1601
    %v1605 = vadd.f32 %v1590, %v1601
    %v1606 = vadd.f32 %v1591, %v1601
    %v1607 = vadd.f32 %v1592, %v1601
    %v1608 = vadd.f32 %v1593, %v1601
    %v1609 = vadd.f32 %v1594, %v1601
    %v1610 = vadd.f32 %v1595, %v1601
    %v1611 = vmax.f32 %v1603, 0.0
    %v1612 = vmax.f32 %v1604, 0.0
    %v1613 = vmax.f32 %v1605, 0.0
    %v1614 = vmax.f32 %v1606, 0.0
    %v1615 = vmax.f32 %v1607, 0.0
    %v1616 = vmax.f32 %v1608, 0.0
    %v1617 = vmax.f32 %v1609, 0.0
    %v1618 = vmax.f32 %v1610, 0.0
    %v1619 = vld [vmem:[#allocation2] sm:$0xff]
    %v1620 = vld [vmem:[#allocation2 + $0x8] sm:$0xff]
    %v1621 = vld [vmem:[#allocation2 + $0x10] sm:$0xff]
    %v1622 = vld [vmem:[#allocation2 + $0x18] sm:$0x3]
    %vm1623 = vcmask 474112
    %v1625 = vsel %vm1623, %v1619, 0
    %v1628 = vsel %vm1623, %v1620, 0
    %v1631 = vsel %vm1623, %v1621, 0
    %v1634 = vsel %vm1623, %v1622, 0
    %vm1636 = vcmask 1041408
    %v1638 = vsel %vm1636, %v1618, 0
    %1640 = vmatprep.subr.mxu0 0.0
    %1641 = vmatpush1.msra.mxu0 %v1611
    %1642 = vmatprep.subr.mxu0 0.0
    %1643 = vmatpush1.msra.mxu0 %v1612
    %1644 = vmatprep.subr.mxu0 0.0
    %1645 = vmatpush1.msra.mxu0 %v1613
    %1646 = vmatprep.subr.mxu0 0.0
    %1647 = vmatpush1.msra.mxu0 %v1614
    %1648 = vmatprep.subr.mxu0 0.0
    %1649 = vmatpush1.msra.mxu0 %v1615
    %1650 = vmatprep.subr.mxu0 0.0
    %1651 = vmatpush1.msra.mxu0 %v1616
    %1652 = vmatprep.subr.mxu0 0.0
    %1653 = vmatpush1.msra.mxu0 %v1617
    %1654 = vmatprep.subr.mxu0 0.0
    %1655 = vmatpush1.msra.mxu0 %v1638
    %1656 = vmatprep.subr.mxu0 0.0
    %1657 = vmatpush1.msra.mxu0 0.0
    %1658 = vmatprep.subr.mxu0 0.0
    %1659 = vmatpush1.msra.mxu0 0.0
    %1660 = vmatprep.subr.mxu0 0.0
    %1661 = vmatpush1.msra.mxu0 0.0
    %1662 = vmatprep.subr.mxu0 0.0
    %1663 = vmatpush1.msra.mxu0 0.0
    %1664 = vmatprep.subr.mxu0 0.0
    %1665 = vmatpush1.msra.mxu0 0.0
    %1666 = vmatprep.subr.mxu0 0.0
    %1667 = vmatpush1.msra.mxu0 0.0
    %1668 = vmatprep.subr.mxu0 0.0
    %1669 = vmatpush1.msra.mxu0 0.0
    %1670 = vmatprep.subr.mxu0 0.0
    %1671 = vmatpush1.msra.mxu0 0.0
    %1672 = vmatprep.subr.mxu0 0.0
    %1673 = vmatpush1.msra.mxu0 0.0
    %1674 = vmatprep.subr.mxu0 0.0
    %1675 = vmatpush1.msra.mxu0 0.0
    %1676 = vmatprep.subr.mxu0 0.0
    %1677 = vmatpush1.msra.mxu0 0.0
    %1678 = vmatprep.subr.mxu0 0.0
    %1679 = vmatpush1.msra.mxu0 0.0
    %1680 = vmatprep.subr.mxu0 0.0
    %1681 = vmatpush1.msra.mxu0 0.0
    %1682 = vmatprep.subr.mxu0 0.0
    %1683 = vmatpush1.msra.mxu0 0.0
    %1684 = vmatprep.subr.mxu0 0.0
    %1685 = vmatpush1.msra.mxu0 0.0
    %1686 = vmatprep.subr.mxu0 0.0
    %1687 = vmatpush1.msra.mxu0 0.0
    %1688 = vmatprep.subr.mxu0 0.0
    %1689 = vmatpush1.msra.mxu0 0.0
    %1690 = vmatprep.subr.mxu0 0.0
    %1691 = vmatpush1.msra.mxu0 0.0
    %1692 = vmatprep.subr.mxu0 0.0
    %1693 = vmatpush1.msra.mxu0 0.0
    %1694 = vmatprep.subr.mxu0 0.0
    %1695 = vmatpush1.msra.mxu0 0.0
    %1696 = vmatprep.subr.mxu0 0.0
    %1697 = vmatpush1.msra.mxu0 0.0
    %1698 = vmatprep.subr.mxu0 0.0
    %1699 = vmatpush1.msra.mxu0 0.0
    %1700 = vmatprep.subr.mxu0 0.0
    %1701 = vmatpush1.msra.mxu0 0.0
    %1702 = vmatprep.subr.mxu0 0.0
    %1703 = vmatpush1.msra.mxu0 0.0
    %1704 = vmatprep.mubr.f32.mxu0 0.0
    %1705 = vmatmul.mubr.f32.gmra.mrb[0].mxu0 %v1625
    %v1706 = vpop.f32.mrb[0].mxu0
    %v1707 = vadd.f32 0.0, %v1706
    %v1708 = vpop.f32.mrb[0].mxu0
    %1709 = vmatprep.mubr.f32.mxu0 0.0
    %1710 = vmatmul.mubr.f32.gmra.mrb[0].mxu0 %v1628
    %v1711 = vpop.f32.mrb[0].mxu0
    %v1712 = vadd.f32 0.0, %v1711
    %v1713 = vpop.f32.mrb[0].mxu0
    %1714 = vmatprep.mubr.f32.mxu0 0.0
    %1715 = vmatmul.mubr.f32.gmra.mrb[0].mxu0 %v1631
    %v1716 = vpop.f32.mrb[0].mxu0
    %v1717 = vadd.f32 0.0, %v1716
    %v1718 = vpop.f32.mrb[0].mxu0
    %1719 = vmatprep.mubr.f32.mxu0 0.0
    %1720 = vmatmul.mubr.f32.gmra.mrb[0].mxu0 %v1634
    %v1721 = vpop.f32.mrb[0].mxu0
    %v1722 = vadd.f32 0.0, %v1721
    %v1723 = vpop.f32.mrb[0].mxu0
    %1724 = vdwg.mxu0
    %v1725 = vpack.c.bf16 %v1712, %v1707
    %v1726 = vpack.c.bf16 %v1722, %v1717
    %v1727 = vld [vmem:[#allocation4] sm:$0xff]
    %v1728 = vld [vmem:[#allocation4 + $0x8] sm:$0xff]
    %v1729 = vld [vmem:[#allocation4 + $0x10] sm:$0xff]
    %v1730 = vld [vmem:[#allocation4 + $0x18] sm:$0xff]
    %v1731 = vld [vmem:[#allocation4 + $0x20] sm:$0xff]
    %v1732 = vld [vmem:[#allocation4 + $0x28] sm:$0xff]
    %v1733 = vld [vmem:[#allocation4 + $0x30] sm:$0xff]
    %v1734 = vld [vmem:[#allocation4 + $0x38] sm:$0xff]
    %v1735 = vld [vmem:[#allocation4 + $0x40] sm:$0xff]
    %v1736 = vld [vmem:[#allocation4 + $0x48] sm:$0xff]
    %v1737 = vld [vmem:[#allocation4 + $0x50] sm:$0xff]
    %v1738 = vld [vmem:[#allocation4 + $0x58] sm:$0xff]
    %v1739 = vld [vmem:[#allocation4 + $0x60] sm:$0xff]
    %v1740 = vld [vmem:[#allocation4 + $0x68] sm:$0xff]
    %v1741 = vld [vmem:[#allocation4 + $0x70] sm:$0xff]
    %v1742 = vld [vmem:[#allocation4 + $0x78] sm:$0xff]
    %s1743 = scalar_lea.vmem [#allocation2], 32
    %v1744 = vld [vmem:[%s1743] sm:$0xff]
    %v1745 = vld [vmem:[%s1743 + $0x8] sm:$0xff]
    %v1746 = vld [vmem:[%s1743 + $0x10] sm:$0xff]
    %v1747 = vld [vmem:[%s1743 + $0x18] sm:$0x3]
    %v1749 = vsel %vm1623, %v1744, 0
    %v1752 = vsel %vm1623, %v1745, 0
    %v1755 = vsel %vm1623, %v1746, 0
    %v1758 = vsel %vm1623, %v1747, 0
    %1760 = vmatprep.subr.mxu0 0.0
    %1761 = vmatpush1.msra.mxu0 %v1611
    %1762 = vmatprep.subr.mxu0 0.0
    %1763 = vmatpush1.msra.mxu0 %v1612
    %1764 = vmatprep.subr.mxu0 0.0
    %1765 = vmatpush1.msra.mxu0 %v1613
    %1766 = vmatprep.subr.mxu0 0.0
    %1767 = vmatpush1.msra.mxu0 %v1614
    %1768 = vmatprep.subr.mxu0 0.0
    %1769 = vmatpush1.msra.mxu0 %v1615
    %1770 = vmatprep.subr.mxu0 0.0
    %1771 = vmatpush1.msra.mxu0 %v1616
    %1772 = vmatprep.subr.mxu0 0.0
    %1773 = vmatpush1.msra.mxu0 %v1617
    %1774 = vmatprep.subr.mxu0 0.0
    %1775 = vmatpush1.msra.mxu0 %v1638
    %1776 = vmatprep.subr.mxu0 0.0
    %1777 = vmatpush1.msra.mxu0 0.0
    %1778 = vmatprep.subr.mxu0 0.0
    %1779 = vmatpush1.msra.mxu0 0.0
    %1780 = vmatprep.subr.mxu0 0.0
    %1781 = vmatpush1.msra.mxu0 0.0
    %1782 = vmatprep.subr.mxu0 0.0
    %1783 = vmatpush1.msra.mxu0 0.0
    %1784 = vmatprep.subr.mxu0 0.0
    %1785 = vmatpush1.msra.mxu0 0.0
    %1786 = vmatprep.subr.mxu0 0.0
    %1787 = vmatpush1.msra.mxu0 0.0
    %1788 = vmatprep.subr.mxu0 0.0
    %1789 = vmatpush1.msra.mxu0 0.0
    %1790 = vmatprep.subr.mxu0 0.0
    %1791 = vmatpush1.msra.mxu0 0.0
    %1792 = vmatprep.subr.mxu0 0.0
    %1793 = vmatpush1.msra.mxu0 0.0
    %1794 = vmatprep.subr.mxu0 0.0
    %1795 = vmatpush1.msra.mxu0 0.0
    %1796 = vmatprep.subr.mxu0 0.0
    %1797 = vmatpush1.msra.mxu0 0.0
    %1798 = vmatprep.subr.mxu0 0.0
    %1799 = vmatpush1.msra.mxu0 0.0
    %1800 = vmatprep.subr.mxu0 0.0
    %1801 = vmatpush1.msra.mxu0 0.0
    %1802 = vmatprep.subr.mxu0 0.0
    %1803 = vmatpush1.msra.mxu0 0.0
    %1804 = vmatprep.subr.mxu0 0.0
    %1805 = vmatpush1.msra.mxu0 0.0
    %1806 = vmatprep.subr.mxu0 0.0
    %1807 = vmatpush1.msra.mxu0 0.0
    %1808 = vmatprep.subr.mxu0 0.0
    %1809 = vmatpush1.msra.mxu0 0.0
    %1810 = vmatprep.subr.mxu0 0.0
    %1811 = vmatpush1.msra.mxu0 0.0
    %1812 = vmatprep.subr.mxu0 0.0
    %1813 = vmatpush1.msra.mxu0 0.0
    %1814 = vmatprep.subr.mxu0 0.0
    %1815 = vmatpush1.msra.mxu0 0.0
    %1816 = vmatprep.subr.mxu0 0.0
    %1817 = vmatpush1.msra.mxu0 0.0
    %1818 = vmatprep.subr.mxu0 0.0
    %1819 = vmatpush1.msra.mxu0 0.0
    %1820 = vmatprep.subr.mxu0 0.0
    %1821 = vmatpush1.msra.mxu0 0.0
    %1822 = vmatprep.subr.mxu0 0.0
    %1823 = vmatpush1.msra.mxu0 0.0
    %1824 = vmatprep.mubr.f32.mxu0 0.0
    %1825 = vmatmul.mubr.f32.gmra.mrb[0].mxu0 %v1749
    %v1826 = vpop.f32.mrb[0].mxu0
    %v1827 = vadd.f32 0.0, %v1826
    %v1828 = vpop.f32.mrb[0].mxu0
    %1829 = vmatprep.mubr.f32.mxu0 0.0
    %1830 = vmatmul.mubr.f32.gmra.mrb[0].mxu0 %v1752
    %v1831 = vpop.f32.mrb[0].mxu0
    %v1832 = vadd.f32 0.0, %v1831
    %v1833 = vpop.f32.mrb[0].mxu0
    %1834 = vmatprep.mubr.f32.mxu0 0.0
    %1835 = vmatmul.mubr.f32.gmra.mrb[0].mxu0 %v1755
    %v1836 = vpop.f32.mrb[0].mxu0
    %v1837 = vadd.f32 0.0, %v1836
    %v1838 = vpop.f32.mrb[0].mxu0
    %1839 = vmatprep.mubr.f32.mxu0 0.0
    %1840 = vmatmul.mubr.f32.gmra.mrb[0].mxu0 %v1758
    %v1841 = vpop.f32.mrb[0].mxu0
    %v1842 = vadd.f32 0.0, %v1841
    %v1843 = vpop.f32.mrb[0].mxu0
    %1844 = vdwg.mxu0
    %v1845 = vpack.c.bf16 %v1832, %v1827
    %v1846 = vpack.c.bf16 %v1842, %v1837
    %s1847 = scalar_lea.vmem [#allocation4], 128
    %v1848 = vld [vmem:[%s1847] sm:$0xff]
    %v1849 = vld [vmem:[%s1847 + $0x8] sm:$0xff]
    %v1850 = vld [vmem:[%s1847 + $0x10] sm:$0xff]
    %v1851 = vld [vmem:[%s1847 + $0x18] sm:$0xff]
    %v1852 = vld [vmem:[%s1847 + $0x20] sm:$0xff]
    %v1853 = vld [vmem:[%s1847 + $0x28] sm:$0xff]
    %v1854 = vld [vmem:[%s1847 + $0x30] sm:$0xff]
    %v1855 = vld [vmem:[%s1847 + $0x38] sm:$0xff]
    %v1856 = vld [vmem:[%s1847 + $0x40] sm:$0xff]
    %v1857 = vld [vmem:[%s1847 + $0x48] sm:$0xff]
    %v1858 = vld [vmem:[%s1847 + $0x50] sm:$0xff]
    %v1859 = vld [vmem:[%s1847 + $0x58] sm:$0xff]
    %v1860 = vld [vmem:[%s1847 + $0x60] sm:$0xff]
    %v1861 = vld [vmem:[%s1847 + $0x68] sm:$0xff]
    %v1862 = vld [vmem:[%s1847 + $0x70] sm:$0xff]
    %v1863 = vld [vmem:[%s1847 + $0x78] sm:$0xff]
    %v1880 = vunpack.c.l.b16 %v1848
    %v1881 = vunpack.c.h.b16 %v1848
    %v1882 = vunpack.c.l.b16 %v1849
    %v1883 = vunpack.c.h.b16 %v1849
    %v1884 = vunpack.c.l.b16 %v1850
    %v1885 = vunpack.c.h.b16 %v1850
    %v1886 = vunpack.c.l.b16 %v1851
    %v1887 = vunpack.c.h.b16 %v1851
    %v1888 = vunpack.c.l.b16 %v1852
    %v1889 = vunpack.c.h.b16 %v1852
    %v1890 = vunpack.c.l.b16 %v1853
    %v1891 = vunpack.c.h.b16 %v1853
    %v1892 = vunpack.c.l.b16 %v1854
    %v1893 = vunpack.c.h.b16 %v1854
    %v1894 = vunpack.c.l.b16 %v1855
    %v1895 = vunpack.c.h.b16 %v1855
    %v1896 = vunpack.c.l.b16 %v1856
    %v1897 = vunpack.c.h.b16 %v1856
    %v1898 = vunpack.c.l.b16 %v1857
    %v1899 = vunpack.c.h.b16 %v1857
    %v1900 = vunpack.c.l.b16 %v1858
    %v1901 = vunpack.c.h.b16 %v1858
    %v1902 = vunpack.c.l.b16 %v1859
    %v1903 = vunpack.c.h.b16 %v1859
    %v1904 = vunpack.c.l.b16 %v1860
    %v1905 = vunpack.c.h.b16 %v1860
    %v1906 = vunpack.c.l.b16 %v1861
    %v1907 = vunpack.c.h.b16 %v1861
    %v1908 = vunpack.c.l.b16 %v1862
    %v1909 = vunpack.c.h.b16 %v1862
    %v1910 = vunpack.c.l.b16 %v1863
    %v1911 = vunpack.c.h.b16 %v1863
    %v1912 = vpack.c.b16 %v1882, %v1880
    %v1913 = vpack.c.b16 %v1883, %v1881
    %v1914 = vpack.c.b16 %v1886, %v1884
    %v1915 = vpack.c.b16 %v1887, %v1885
    %v1916 = vpack.c.b16 %v1890, %v1888
    %v1917 = vpack.c.b16 %v1891, %v1889
    %v1918 = vpack.c.b16 %v1894, %v1892
    %v1919 = vpack.c.b16 %v1895, %v1893
    %v1920 = vpack.c.b16 %v1898, %v1896
    %v1921 = vpack.c.b16 %v1899, %v1897
    %v1922 = vpack.c.b16 %v1902, %v1900
    %v1923 = vpack.c.b16 %v1903, %v1901
    %v1924 = vpack.c.b16 %v1906, %v1904
    %v1925 = vpack.c.b16 %v1907, %v1905
    %v1926 = vpack.c.b16 %v1910, %v1908
    %v1927 = vpack.c.b16 %v1911, %v1909
    %1944 = vmatprep.subr.bf16.mxu0 %v1913
    %1945 = vmatpush1.bf16.msra.mxu0 %v1912
    %1946 = vmatprep.subr.bf16.mxu0 %v1915
    %1947 = vmatpush1.bf16.msra.mxu0 %v1914
    %1948 = vmatprep.subr.bf16.mxu0 %v1917
    %1949 = vmatpush1.bf16.msra.mxu0 %v1916
    %1950 = vmatprep.subr.bf16.mxu0 %v1919
    %1951 = vmatpush1.bf16.msra.mxu0 %v1918
    %1952 = vmatprep.subr.bf16.mxu0 %v1921
    %1953 = vmatpush1.bf16.msra.mxu0 %v1920
    %1954 = vmatprep.subr.bf16.mxu0 %v1923
    %1955 = vmatpush1.bf16.msra.mxu0 %v1922
    %1956 = vmatprep.subr.bf16.mxu0 %v1925
    %1957 = vmatpush1.bf16.msra.mxu0 %v1924
    %1958 = vmatprep.subr.bf16.mxu0 %v1927
    %1959 = vmatpush1.bf16.msra.mxu0 %v1926
    %1960 = vmatprep.subr.bf16.mxu0 0
    %1961 = vmatpush1.bf16.msra.mxu0 0
    %1962 = vmatprep.subr.bf16.mxu0 0
    %1963 = vmatpush1.bf16.msra.mxu0 0
    %1964 = vmatprep.subr.bf16.mxu0 0
    %1965 = vmatpush1.bf16.msra.mxu0 0
    %1966 = vmatprep.subr.bf16.mxu0 0
    %1967 = vmatpush1.bf16.msra.mxu0 0
    %1968 = vmatprep.subr.bf16.mxu0 0
    %1969 = vmatpush1.bf16.msra.mxu0 0
    %1970 = vmatprep.subr.bf16.mxu0 0
    %1971 = vmatpush1.bf16.msra.mxu0 0
    %1972 = vmatprep.subr.bf16.mxu0 0
    %1973 = vmatpush1.bf16.msra.mxu0 0
    %1974 = vmatprep.subr.bf16.mxu0 0
    %1975 = vmatpush1.bf16.msra.mxu0 0
    %1976 = vmatprep.mubr.bf16.mxu0 0
    %1977 = vmatmul.mubr.bf16.gmra.mrb[0].mxu0 %v1845
    %v1978 = vpop.f32.mrb[0].mxu0
    %v1979 = vadd.f32 0.0, %v1978
    %v1980 = vpop.f32.mrb[0].mxu0
    %v1981 = vadd.f32 0.0, %v1980
    %v1982 = vpop.f32.mrb[0].mxu0
    %v1983 = vadd.f32 0.0, %v1982
    %v1984 = vpop.f32.mrb[0].mxu0
    %v1985 = vadd.f32 0.0, %v1984
    %1986 = vmatprep.mubr.bf16.mxu0 0
    %1987 = vmatmul.mubr.bf16.gmra.mrb[0].mxu0 %v1846
    %v1988 = vpop.f32.mrb[0].mxu0
    %v1989 = vadd.f32 0.0, %v1988
    %v1990 = vpop.f32.mrb[0].mxu0
    %v1991 = vadd.f32 0.0, %v1990
    %v1992 = vpop.f32.mrb[0].mxu0
    %v1993 = vadd.f32 0.0, %v1992
    %v1994 = vpop.f32.mrb[0].mxu0
    %v1995 = vadd.f32 0.0, %v1994
    %1996 = vdwg.mxu0
    %v2013 = vunpack.c.l.b16 %v1727
    %v2014 = vunpack.c.h.b16 %v1727
    %v2015 = vunpack.c.l.b16 %v1728
    %v2016 = vunpack.c.h.b16 %v1728
    %v2017 = vunpack.c.l.b16 %v1729
    %v2018 = vunpack.c.h.b16 %v1729
    %v2019 = vunpack.c.l.b16 %v1730
    %v2020 = vunpack.c.h.b16 %v1730
    %v2021 = vunpack.c.l.b16 %v1731
    %v2022 = vunpack.c.h.b16 %v1731
    %v2023 = vunpack.c.l.b16 %v1732
    %v2024 = vunpack.c.h.b16 %v1732
    %v2025 = vunpack.c.l.b16 %v1733
    %v2026 = vunpack.c.h.b16 %v1733
    %v2027 = vunpack.c.l.b16 %v1734
    %v2028 = vunpack.c.h.b16 %v1734
    %v2029 = vunpack.c.l.b16 %v1735
    %v2030 = vunpack.c.h.b16 %v1735
    %v2031 = vunpack.c.l.b16 %v1736
    %v2032 = vunpack.c.h.b16 %v1736
    %v2033 = vunpack.c.l.b16 %v1737
    %v2034 = vunpack.c.h.b16 %v1737
    %v2035 = vunpack.c.l.b16 %v1738
    %v2036 = vunpack.c.h.b16 %v1738
    %v2037 = vunpack.c.l.b16 %v1739
    %v2038 = vunpack.c.h.b16 %v1739
    %v2039 = vunpack.c.l.b16 %v1740
    %v2040 = vunpack.c.h.b16 %v1740
    %v2041 = vunpack.c.l.b16 %v1741
    %v2042 = vunpack.c.h.b16 %v1741
    %v2043 = vunpack.c.l.b16 %v1742
    %v2044 = vunpack.c.h.b16 %v1742
    %v2045 = vpack.c.b16 %v2015, %v2013
    %v2046 = vpack.c.b16 %v2016, %v2014
    %v2047 = vpack.c.b16 %v2019, %v2017
    %v2048 = vpack.c.b16 %v2020, %v2018
    %v2049 = vpack.c.b16 %v2023, %v2021
    %v2050 = vpack.c.b16 %v2024, %v2022
    %v2051 = vpack.c.b16 %v2027, %v2025
    %v2052 = vpack.c.b16 %v2028, %v2026
    %v2053 = vpack.c.b16 %v2031, %v2029
    %v2054 = vpack.c.b16 %v2032, %v2030
    %v2055 = vpack.c.b16 %v2035, %v2033
    %v2056 = vpack.c.b16 %v2036, %v2034
    %v2057 = vpack.c.b16 %v2039, %v2037
    %v2058 = vpack.c.b16 %v2040, %v2038
    %v2059 = vpack.c.b16 %v2043, %v2041
    %v2060 = vpack.c.b16 %v2044, %v2042
    %2077 = vmatprep.subr.bf16.mxu0 %v2046
    %2078 = vmatpush1.bf16.msra.mxu0 %v2045
    %2079 = vmatprep.subr.bf16.mxu0 %v2048
    %2080 = vmatpush1.bf16.msra.mxu0 %v2047
    %2081 = vmatprep.subr.bf16.mxu0 %v2050
    %2082 = vmatpush1.bf16.msra.mxu0 %v2049
    %2083 = vmatprep.subr.bf16.mxu0 %v2052
    %2084 = vmatpush1.bf16.msra.mxu0 %v2051
    %2085 = vmatprep.subr.bf16.mxu0 %v2054
    %2086 = vmatpush1.bf16.msra.mxu0 %v2053
    %2087 = vmatprep.subr.bf16.mxu0 %v2056
    %2088 = vmatpush1.bf16.msra.mxu0 %v2055
    %2089 = vmatprep.subr.bf16.mxu0 %v2058
    %2090 = vmatpush1.bf16.msra.mxu0 %v2057
    %2091 = vmatprep.subr.bf16.mxu0 %v2060
    %2092 = vmatpush1.bf16.msra.mxu0 %v2059
    %2093 = vmatprep.subr.bf16.mxu0 0
    %2094 = vmatpush1.bf16.msra.mxu0 0
    %2095 = vmatprep.subr.bf16.mxu0 0
    %2096 = vmatpush1.bf16.msra.mxu0 0
    %2097 = vmatprep.subr.bf16.mxu0 0
    %2098 = vmatpush1.bf16.msra.mxu0 0
    %2099 = vmatprep.subr.bf16.mxu0 0
    %2100 = vmatpush1.bf16.msra.mxu0 0
    %2101 = vmatprep.subr.bf16.mxu0 0
    %2102 = vmatpush1.bf16.msra.mxu0 0
    %2103 = vmatprep.subr.bf16.mxu0 0
    %2104 = vmatpush1.bf16.msra.mxu0 0
    %2105 = vmatprep.subr.bf16.mxu0 0
    %2106 = vmatpush1.bf16.msra.mxu0 0
    %2107 = vmatprep.subr.bf16.mxu0 0
    %2108 = vmatpush1.bf16.msra.mxu0 0
    %2109 = vmatprep.mubr.bf16.mxu0 0
    %2110 = vmatmul.mubr.bf16.gmra.mrb[0].mxu0 %v1725
    %v2111 = vpop.f32.mrb[0].mxu0
    %v2112 = vadd.f32 %v1979, %v2111
    %v2113 = vpop.f32.mrb[0].mxu0
    %v2114 = vadd.f32 %v1981, %v2113
    %v2115 = vpop.f32.mrb[0].mxu0
    %v2116 = vadd.f32 %v1983, %v2115
    %v2117 = vpop.f32.mrb[0].mxu0
    %v2118 = vadd.f32 %v1985, %v2117
    %2119 = vmatprep.mubr.bf16.mxu0 0
    %2120 = vmatmul.mubr.bf16.gmra.mrb[0].mxu0 %v1726
    %v2121 = vpop.f32.mrb[0].mxu0
    %v2122 = vadd.f32 %v1989, %v2121
    %v2123 = vpop.f32.mrb[0].mxu0
    %v2124 = vadd.f32 %v1991, %v2123
    %v2125 = vpop.f32.mrb[0].mxu0
    %v2126 = vadd.f32 %v1993, %v2125
    %v2127 = vpop.f32.mrb[0].mxu0
    %v2128 = vadd.f32 %v1995, %v2127
    %2129 = vdwg.mxu0
    %s2130 = scalar_lea.vmem [#allocation2], 64
    %v2131 = vld [vmem:[%s2130] sm:$0xff]
    %v2132 = vld [vmem:[%s2130 + $0x8] sm:$0xff]
    %v2133 = vld [vmem:[%s2130 + $0x10] sm:$0xff]
    %v2134 = vld [vmem:[%s2130 + $0x18] sm:$0x3]
    %v2136 = vsel %vm1623, %v2131, 0
    %v2139 = vsel %vm1623, %v2132, 0
    %v2142 = vsel %vm1623, %v2133, 0
    %v2145 = vsel %vm1623, %v2134, 0
    %2147 = vmatprep.subr.mxu0 0.0
    %2148 = vmatpush1.msra.mxu0 %v1611
    %2149 = vmatprep.subr.mxu0 0.0
    %2150 = vmatpush1.msra.mxu0 %v1612
    %2151 = vmatprep.subr.mxu0 0.0
    %2152 = vmatpush1.msra.mxu0 %v1613
    %2153 = vmatprep.subr.mxu0 0.0
    %2154 = vmatpush1.msra.mxu0 %v1614
    %2155 = vmatprep.subr.mxu0 0.0
    %2156 = vmatpush1.msra.mxu0 %v1615
    %2157 = vmatprep.subr.mxu0 0.0
    %2158 = vmatpush1.msra.mxu0 %v1616
    %2159 = vmatprep.subr.mxu0 0.0
    %2160 = vmatpush1.msra.mxu0 %v1617
    %2161 = vmatprep.subr.mxu0 0.0
    %2162 = vmatpush1.msra.mxu0 %v1638
    %2163 = vmatprep.subr.mxu0 0.0
    %2164 = vmatpush1.msra.mxu0 0.0
    %2165 = vmatprep.subr.mxu0 0.0
    %2166 = vmatpush1.msra.mxu0 0.0
    %2167 = vmatprep.subr.mxu0 0.0
    %2168 = vmatpush1.msra.mxu0 0.0
    %2169 = vmatprep.subr.mxu0 0.0
    %2170 = vmatpush1.msra.mxu0 0.0
    %2171 = vmatprep.subr.mxu0 0.0
    %2172 = vmatpush1.msra.mxu0 0.0
    %2173 = vmatprep.subr.mxu0 0.0
    %2174 = vmatpush1.msra.mxu0 0.0
    %2175 = vmatprep.subr.mxu0 0.0
    %2176 = vmatpush1.msra.mxu0 0.0
    %2177 = vmatprep.subr.mxu0 0.0
    %2178 = vmatpush1.msra.mxu0 0.0
    %2179 = vmatprep.subr.mxu0 0.0
    %2180 = vmatpush1.msra.mxu0 0.0
    %2181 = vmatprep.subr.mxu0 0.0
    %2182 = vmatpush1.msra.mxu0 0.0
    %2183 = vmatprep.subr.mxu0 0.0
    %2184 = vmatpush1.msra.mxu0 0.0
    %2185 = vmatprep.subr.mxu0 0.0
    %2186 = vmatpush1.msra.mxu0 0.0
    %2187 = vmatprep.subr.mxu0 0.0
    %2188 = vmatpush1.msra.mxu0 0.0
    %2189 = vmatprep.subr.mxu0 0.0
    %2190 = vmatpush1.msra.mxu0 0.0
    %2191 = vmatprep.subr.mxu0 0.0
    %2192 = vmatpush1.msra.mxu0 0.0
    %2193 = vmatprep.subr.mxu0 0.0
    %2194 = vmatpush1.msra.mxu0 0.0
    %2195 = vmatprep.subr.mxu0 0.0
    %2196 = vmatpush1.msra.mxu0 0.0
    %2197 = vmatprep.subr.mxu0 0.0
    %2198 = vmatpush1.msra.mxu0 0.0
    %2199 = vmatprep.subr.mxu0 0.0
    %2200 = vmatpush1.msra.mxu0 0.0
    %2201 = vmatprep.subr.mxu0 0.0
    %2202 = vmatpush1.msra.mxu0 0.0
    %2203 = vmatprep.subr.mxu0 0.0
    %2204 = vmatpush1.msra.mxu0 0.0
    %2205 = vmatprep.subr.mxu0 0.0
    %2206 = vmatpush1.msra.mxu0 0.0
    %2207 = vmatprep.subr.mxu0 0.0
    %2208 = vmatpush1.msra.mxu0 0.0
    %2209 = vmatprep.subr.mxu0 0.0
    %2210 = vmatpush1.msra.mxu0 0.0
    %2211 = vmatprep.mubr.f32.mxu0 0.0
    %2212 = vmatmul.mubr.f32.gmra.mrb[0].mxu0 %v2136
    %v2213 = vpop.f32.mrb[0].mxu0
    %v2214 = vadd.f32 0.0, %v2213
    %v2215 = vpop.f32.mrb[0].mxu0
    %2216 = vmatprep.mubr.f32.mxu0 0.0
    %2217 = vmatmul.mubr.f32.gmra.mrb[0].mxu0 %v2139
    %v2218 = vpop.f32.mrb[0].mxu0
    %v2219 = vadd.f32 0.0, %v2218
    %v2220 = vpop.f32.mrb[0].mxu0
    %2221 = vmatprep.mubr.f32.mxu0 0.0
    %2222 = vmatmul.mubr.f32.gmra.mrb[0].mxu0 %v2142
    %v2223 = vpop.f32.mrb[0].mxu0
    %v2224 = vadd.f32 0.0, %v2223
    %v2225 = vpop.f32.mrb[0].mxu0
    %2226 = vmatprep.mubr.f32.mxu0 0.0
    %2227 = vmatmul.mubr.f32.gmra.mrb[0].mxu0 %v2145
    %v2228 = vpop.f32.mrb[0].mxu0
    %v2229 = vadd.f32 0.0, %v2228
    %v2230 = vpop.f32.mrb[0].mxu0
    %2231 = vdwg.mxu0
    %v2232 = vpack.c.bf16 %v2219, %v2214
    %v2233 = vpack.c.bf16 %v2229, %v2224
    %s2234 = scalar_lea.vmem [#allocation4], 256
    %v2235 = vld [vmem:[%s2234] sm:$0xff]
    %v2236 = vld [vmem:[%s2234 + $0x8] sm:$0xff]
    %v2237 = vld [vmem:[%s2234 + $0x10] sm:$0xff]
    %v2238 = vld [vmem:[%s2234 + $0x18] sm:$0xff]
    %v2239 = vld [vmem:[%s2234 + $0x20] sm:$0xff]
    %v2240 = vld [vmem:[%s2234 + $0x28] sm:$0xff]
    %v2241 = vld [vmem:[%s2234 + $0x30] sm:$0xff]
    %v2242 = vld [vmem:[%s2234 + $0x38] sm:$0xff]
    %v2243 = vld [vmem:[%s2234 + $0x40] sm:$0xff]
    %v2244 = vld [vmem:[%s2234 + $0x48] sm:$0xff]
    %v2245 = vld [vmem:[%s2234 + $0x50] sm:$0xff]
    %v2246 = vld [vmem:[%s2234 + $0x58] sm:$0xff]
    %v2247 = vld [vmem:[%s2234 + $0x60] sm:$0xff]
    %v2248 = vld [vmem:[%s2234 + $0x68] sm:$0xff]
    %v2249 = vld [vmem:[%s2234 + $0x70] sm:$0xff]
    %v2250 = vld [vmem:[%s2234 + $0x78] sm:$0xff]
    %v2267 = vunpack.c.l.b16 %v2235
    %v2268 = vunpack.c.h.b16 %v2235
    %v2269 = vunpack.c.l.b16 %v2236
    %v2270 = vunpack.c.h.b16 %v2236
    %v2271 = vunpack.c.l.b16 %v2237
    %v2272 = vunpack.c.h.b16 %v2237
    %v2273 = vunpack.c.l.b16 %v2238
    %v2274 = vunpack.c.h.b16 %v2238
    %v2275 = vunpack.c.l.b16 %v2239
    %v2276 = vunpack.c.h.b16 %v2239
    %v2277 = vunpack.c.l.b16 %v2240
    %v2278 = vunpack.c.h.b16 %v2240
    %v2279 = vunpack.c.l.b16 %v2241
    %v2280 = vunpack.c.h.b16 %v2241
    %v2281 = vunpack.c.l.b16 %v2242
    %v2282 = vunpack.c.h.b16 %v2242
    %v2283 = vunpack.c.l.b16 %v2243
    %v2284 = vunpack.c.h.b16 %v2243
    %v2285 = vunpack.c.l.b16 %v2244
    %v2286 = vunpack.c.h.b16 %v2244
    %v2287 = vunpack.c.l.b16 %v2245
    %v2288 = vunpack.c.h.b16 %v2245
    %v2289 = vunpack.c.l.b16 %v2246
    %v2290 = vunpack.c.h.b16 %v2246
    %v2291 = vunpack.c.l.b16 %v2247
    %v2292 = vunpack.c.h.b16 %v2247
    %v2293 = vunpack.c.l.b16 %v2248
    %v2294 = vunpack.c.h.b16 %v2248
    %v2295 = vunpack.c.l.b16 %v2249
    %v2296 = vunpack.c.h.b16 %v2249
    %v2297 = vunpack.c.l.b16 %v2250
    %v2298 = vunpack.c.h.b16 %v2250
    %v2299 = vpack.c.b16 %v2269, %v2267
    %v2300 = vpack.c.b16 %v2270, %v2268
    %v2301 = vpack.c.b16 %v2273, %v2271
    %v2302 = vpack.c.b16 %v2274, %v2272
    %v2303 = vpack.c.b16 %v2277, %v2275
    %v2304 = vpack.c.b16 %v2278, %v2276
    %v2305 = vpack.c.b16 %v2281, %v2279
    %v2306 = vpack.c.b16 %v2282, %v2280
    %v2307 = vpack.c.b16 %v2285, %v2283
    %v2308 = vpack.c.b16 %v2286, %v2284
    %v2309 = vpack.c.b16 %v2289, %v2287
    %v2310 = vpack.c.b16 %v2290, %v2288
    %v2311 = vpack.c.b16 %v2293, %v2291
    %v2312 = vpack.c.b16 %v2294, %v2292
    %v2313 = vpack.c.b16 %v2297, %v2295
    %v2314 = vpack.c.b16 %v2298, %v2296
    %2331 = vmatprep.subr.bf16.mxu0 %v2300
    %2332 = vmatpush1.bf16.msra.mxu0 %v2299
    %2333 = vmatprep.subr.bf16.mxu0 %v2302
    %2334 = vmatpush1.bf16.msra.mxu0 %v2301
    %2335 = vmatprep.subr.bf16.mxu0 %v2304
    %2336 = vmatpush1.bf16.msra.mxu0 %v2303
    %2337 = vmatprep.subr.bf16.mxu0 %v2306
    %2338 = vmatpush1.bf16.msra.mxu0 %v2305
    %2339 = vmatprep.subr.bf16.mxu0 %v2308
    %2340 = vmatpush1.bf16.msra.mxu0 %v2307
    %2341 = vmatprep.subr.bf16.mxu0 %v2310
    %2342 = vmatpush1.bf16.msra.mxu0 %v2309
    %2343 = vmatprep.subr.bf16.mxu0 %v2312
    %2344 = vmatpush1.bf16.msra.mxu0 %v2311
    %2345 = vmatprep.subr.bf16.mxu0 %v2314
    %2346 = vmatpush1.bf16.msra.mxu0 %v2313
    %2347 = vmatprep.subr.bf16.mxu0 0
    %2348 = vmatpush1.bf16.msra.mxu0 0
    %2349 = vmatprep.subr.bf16.mxu0 0
    %2350 = vmatpush1.bf16.msra.mxu0 0
    %2351 = vmatprep.subr.bf16.mxu0 0
    %2352 = vmatpush1.bf16.msra.mxu0 0
    %2353 = vmatprep.subr.bf16.mxu0 0
    %2354 = vmatpush1.bf16.msra.mxu0 0
    %2355 = vmatprep.subr.bf16.mxu0 0
    %2356 = vmatpush1.bf16.msra.mxu0 0
    %2357 = vmatprep.subr.bf16.mxu0 0
    %2358 = vmatpush1.bf16.msra.mxu0 0
    %2359 = vmatprep.subr.bf16.mxu0 0
    %2360 = vmatpush1.bf16.msra.mxu0 0
    %2361 = vmatprep.subr.bf16.mxu0 0
    %2362 = vmatpush1.bf16.msra.mxu0 0
    %2363 = vmatprep.mubr.bf16.mxu0 0
    %2364 = vmatmul.mubr.bf16.gmra.mrb[0].mxu0 %v2232
    %v2365 = vpop.f32.mrb[0].mxu0
    %v2366 = vadd.f32 0.0, %v2365
    %v2367 = vpop.f32.mrb[0].mxu0
    %v2368 = vadd.f32 0.0, %v2367
    %v2369 = vpop.f32.mrb[0].mxu0
    %v2370 = vadd.f32 0.0, %v2369
    %v2371 = vpop.f32.mrb[0].mxu0
    %v2372 = vadd.f32 0.0, %v2371
    %2373 = vmatprep.mubr.bf16.mxu0 0
    %2374 = vmatmul.mubr.bf16.gmra.mrb[0].mxu0 %v2233
    %v2375 = vpop.f32.mrb[0].mxu0
    %v2376 = vadd.f32 0.0, %v2375
    %v2377 = vpop.f32.mrb[0].mxu0
    %v2378 = vadd.f32 0.0, %v2377
    %v2379 = vpop.f32.mrb[0].mxu0
    %v2380 = vadd.f32 0.0, %v2379
    %v2381 = vpop.f32.mrb[0].mxu0
    %v2382 = vadd.f32 0.0, %v2381
    %2383 = vdwg.mxu0
    %v2384 = vadd.f32 %v2112, %v2366
    %v2385 = vadd.f32 %v2114, %v2368
    %v2386 = vadd.f32 %v2116, %v2370
    %v2387 = vadd.f32 %v2118, %v2372
    %v2388 = vadd.f32 %v2122, %v2376
    %v2389 = vadd.f32 %v2124, %v2378
    %v2390 = vadd.f32 %v2126, %v2380
    %v2391 = vadd.f32 %v2128, %v2382
    %s2392 = scalar_lea.vmem [#allocation2], 96
    %v2393 = vld [vmem:[%s2392] sm:$0xff]
    %v2394 = vld [vmem:[%s2392 + $0x8] sm:$0xff]
    %v2395 = vld [vmem:[%s2392 + $0x10] sm:$0xff]
    %v2396 = vld [vmem:[%s2392 + $0x18] sm:$0x3]
    %v2398 = vsel %vm1623, %v2393, 0
    %v2401 = vsel %vm1623, %v2394, 0
    %v2404 = vsel %vm1623, %v2395, 0
    %v2407 = vsel %vm1623, %v2396, 0
    %2409 = vmatprep.subr.mxu0 0.0
    %2410 = vmatpush1.msra.mxu0 %v1611
    %2411 = vmatprep.subr.mxu0 0.0
    %2412 = vmatpush1.msra.mxu0 %v1612
    %2413 = vmatprep.subr.mxu0 0.0
    %2414 = vmatpush1.msra.mxu0 %v1613
    %2415 = vmatprep.subr.mxu0 0.0
    %2416 = vmatpush1.msra.mxu0 %v1614
    %2417 = vmatprep.subr.mxu0 0.0
    %2418 = vmatpush1.msra.mxu0 %v1615
    %2419 = vmatprep.subr.mxu0 0.0
    %2420 = vmatpush1.msra.mxu0 %v1616
    %2421 = vmatprep.subr.mxu0 0.0
    %2422 = vmatpush1.msra.mxu0 %v1617
    %2423 = vmatprep.subr.mxu0 0.0
    %2424 = vmatpush1.msra.mxu0 %v1638
    %2425 = vmatprep.subr.mxu0 0.0
    %2426 = vmatpush1.msra.mxu0 0.0
    %2427 = vmatprep.subr.mxu0 0.0
    %2428 = vmatpush1.msra.mxu0 0.0
    %2429 = vmatprep.subr.mxu0 0.0
    %2430 = vmatpush1.msra.mxu0 0.0
    %2431 = vmatprep.subr.mxu0 0.0
    %2432 = vmatpush1.msra.mxu0 0.0
    %2433 = vmatprep.subr.mxu0 0.0
    %2434 = vmatpush1.msra.mxu0 0.0
    %2435 = vmatprep.subr.mxu0 0.0
    %2436 = vmatpush1.msra.mxu0 0.0
    %2437 = vmatprep.subr.mxu0 0.0
    %2438 = vmatpush1.msra.mxu0 0.0
    %2439 = vmatprep.subr.mxu0 0.0
    %2440 = vmatpush1.msra.mxu0 0.0
    %2441 = vmatprep.subr.mxu0 0.0
    %2442 = vmatpush1.msra.mxu0 0.0
    %2443 = vmatprep.subr.mxu0 0.0
    %2444 = vmatpush1.msra.mxu0 0.0
    %2445 = vmatprep.subr.mxu0 0.0
    %2446 = vmatpush1.msra.mxu0 0.0
    %2447 = vmatprep.subr.mxu0 0.0
    %2448 = vmatpush1.msra.mxu0 0.0
    %2449 = vmatprep.subr.mxu0 0.0
    %2450 = vmatpush1.msra.mxu0 0.0
    %2451 = vmatprep.subr.mxu0 0.0
    %2452 = vmatpush1.msra.mxu0 0.0
    %2453 = vmatprep.subr.mxu0 0.0
    %2454 = vmatpush1.msra.mxu0 0.0
    %2455 = vmatprep.subr.mxu0 0.0
    %2456 = vmatpush1.msra.mxu0 0.0
    %2457 = vmatprep.subr.mxu0 0.0
    %2458 = vmatpush1.msra.mxu0 0.0
    %2459 = vmatprep.subr.mxu0 0.0
    %2460 = vmatpush1.msra.mxu0 0.0
    %2461 = vmatprep.subr.mxu0 0.0
    %2462 = vmatpush1.msra.mxu0 0.0
    %2463 = vmatprep.subr.mxu0 0.0
    %2464 = vmatpush1.msra.mxu0 0.0
    %2465 = vmatprep.subr.mxu0 0.0
    %2466 = vmatpush1.msra.mxu0 0.0
    %2467 = vmatprep.subr.mxu0 0.0
    %2468 = vmatpush1.msra.mxu0 0.0
    %2469 = vmatprep.subr.mxu0 0.0
    %2470 = vmatpush1.msra.mxu0 0.0
    %2471 = vmatprep.subr.mxu0 0.0
    %2472 = vmatpush1.msra.mxu0 0.0
    %2473 = vmatprep.mubr.f32.mxu0 0.0
    %2474 = vmatmul.mubr.f32.gmra.mrb[0].mxu0 %v2398
    %v2475 = vpop.f32.mrb[0].mxu0
    %v2476 = vadd.f32 0.0, %v2475
    %v2477 = vpop.f32.mrb[0].mxu0
    %2478 = vmatprep.mubr.f32.mxu0 0.0
    %2479 = vmatmul.mubr.f32.gmra.mrb[0].mxu0 %v2401
    %v2480 = vpop.f32.mrb[0].mxu0
    %v2481 = vadd.f32 0.0, %v2480
    %v2482 = vpop.f32.mrb[0].mxu0
    %2483 = vmatprep.mubr.f32.mxu0 0.0
    %2484 = vmatmul.mubr.f32.gmra.mrb[0].mxu0 %v2404
    %v2485 = vpop.f32.mrb[0].mxu0
    %v2486 = vadd.f32 0.0, %v2485
    %v2487 = vpop.f32.mrb[0].mxu0
    %2488 = vmatprep.mubr.f32.mxu0 0.0
    %2489 = vmatmul.mubr.f32.gmra.mrb[0].mxu0 %v2407
    %v2490 = vpop.f32.mrb[0].mxu0
    %v2491 = vadd.f32 0.0, %v2490
    %v2492 = vpop.f32.mrb[0].mxu0
    %2493 = vdwg.mxu0
    %v2494 = vpack.c.bf16 %v2481, %v2476
    %v2495 = vpack.c.bf16 %v2491, %v2486
    %s2496 = scalar_lea.vmem [#allocation4], 384
    %v2497 = vld [vmem:[%s2496] sm:$0xff]
    %v2498 = vld [vmem:[%s2496 + $0x8] sm:$0xff]
    %v2499 = vld [vmem:[%s2496 + $0x10] sm:$0xff]
    %v2500 = vld [vmem:[%s2496 + $0x18] sm:$0xff]
    %v2501 = vld [vmem:[%s2496 + $0x20] sm:$0xff]
    %v2502 = vld [vmem:[%s2496 + $0x28] sm:$0xff]
    %v2503 = vld [vmem:[%s2496 + $0x30] sm:$0xff]
    %v2504 = vld [vmem:[%s2496 + $0x38] sm:$0xff]
    %v2505 = vld [vmem:[%s2496 + $0x40] sm:$0xff]
    %v2506 = vld [vmem:[%s2496 + $0x48] sm:$0xff]
    %v2507 = vld [vmem:[%s2496 + $0x50] sm:$0xff]
    %v2508 = vld [vmem:[%s2496 + $0x58] sm:$0xff]
    %v2509 = vld [vmem:[%s2496 + $0x60] sm:$0xff]
    %v2510 = vld [vmem:[%s2496 + $0x68] sm:$0xff]
    %v2511 = vld [vmem:[%s2496 + $0x70] sm:$0xff]
    %v2512 = vld [vmem:[%s2496 + $0x78] sm:$0xff]
    %v2529 = vunpack.c.l.b16 %v2497
    %v2530 = vunpack.c.h.b16 %v2497
    %v2531 = vunpack.c.l.b16 %v2498
    %v2532 = vunpack.c.h.b16 %v2498
    %v2533 = vunpack.c.l.b16 %v2499
    %v2534 = vunpack.c.h.b16 %v2499
    %v2535 = vunpack.c.l.b16 %v2500
    %v2536 = vunpack.c.h.b16 %v2500
    %v2537 = vunpack.c.l.b16 %v2501
    %v2538 = vunpack.c.h.b16 %v2501
    %v2539 = vunpack.c.l.b16 %v2502
    %v2540 = vunpack.c.h.b16 %v2502
    %v2541 = vunpack.c.l.b16 %v2503
    %v2542 = vunpack.c.h.b16 %v2503
    %v2543 = vunpack.c.l.b16 %v2504
    %v2544 = vunpack.c.h.b16 %v2504
    %v2545 = vunpack.c.l.b16 %v2505
    %v2546 = vunpack.c.h.b16 %v2505
    %v2547 = vunpack.c.l.b16 %v2506
    %v2548 = vunpack.c.h.b16 %v2506
    %v2549 = vunpack.c.l.b16 %v2507
    %v2550 = vunpack.c.h.b16 %v2507
    %v2551 = vunpack.c.l.b16 %v2508
    %v2552 = vunpack.c.h.b16 %v2508
    %v2553 = vunpack.c.l.b16 %v2509
    %v2554 = vunpack.c.h.b16 %v2509
    %v2555 = vunpack.c.l.b16 %v2510
    %v2556 = vunpack.c.h.b16 %v2510
    %v2557 = vunpack.c.l.b16 %v2511
    %v2558 = vunpack.c.h.b16 %v2511
    %v2559 = vunpack.c.l.b16 %v2512
    %v2560 = vunpack.c.h.b16 %v2512
    %v2561 = vpack.c.b16 %v2531, %v2529
    %v2562 = vpack.c.b16 %v2532, %v2530
    %v2563 = vpack.c.b16 %v2535, %v2533
    %v2564 = vpack.c.b16 %v2536, %v2534
    %v2565 = vpack.c.b16 %v2539, %v2537
    %v2566 = vpack.c.b16 %v2540, %v2538
    %v2567 = vpack.c.b16 %v2543, %v2541
    %v2568 = vpack.c.b16 %v2544, %v2542
    %v2569 = vpack.c.b16 %v2547, %v2545
    %v2570 = vpack.c.b16 %v2548, %v2546
    %v2571 = vpack.c.b16 %v2551, %v2549
    %v2572 = vpack.c.b16 %v2552, %v2550
    %v2573 = vpack.c.b16 %v2555, %v2553
    %v2574 = vpack.c.b16 %v2556, %v2554
    %v2575 = vpack.c.b16 %v2559, %v2557
    %v2576 = vpack.c.b16 %v2560, %v2558
    %2593 = vmatprep.subr.bf16.mxu0 %v2562
    %2594 = vmatpush1.bf16.msra.mxu0 %v2561
    %2595 = vmatprep.subr.bf16.mxu0 %v2564
    %2596 = vmatpush1.bf16.msra.mxu0 %v2563
    %2597 = vmatprep.subr.bf16.mxu0 %v2566
    %2598 = vmatpush1.bf16.msra.mxu0 %v2565
    %2599 = vmatprep.subr.bf16.mxu0 %v2568
    %2600 = vmatpush1.bf16.msra.mxu0 %v2567
    %2601 = vmatprep.subr.bf16.mxu0 %v2570
    %2602 = vmatpush1.bf16.msra.mxu0 %v2569
    %2603 = vmatprep.subr.bf16.mxu0 %v2572
    %2604 = vmatpush1.bf16.msra.mxu0 %v2571
    %2605 = vmatprep.subr.bf16.mxu0 %v2574
    %2606 = vmatpush1.bf16.msra.mxu0 %v2573
    %2607 = vmatprep.subr.bf16.mxu0 %v2576
    %2608 = vmatpush1.bf16.msra.mxu0 %v2575
    %2609 = vmatprep.subr.bf16.mxu0 0
    %2610 = vmatpush1.bf16.msra.mxu0 0
    %2611 = vmatprep.subr.bf16.mxu0 0
    %2612 = vmatpush1.bf16.msra.mxu0 0
    %2613 = vmatprep.subr.bf16.mxu0 0
    %2614 = vmatpush1.bf16.msra.mxu0 0
    %2615 = vmatprep.subr.bf16.mxu0 0
    %2616 = vmatpush1.bf16.msra.mxu0 0
    %2617 = vmatprep.subr.bf16.mxu0 0
    %2618 = vmatpush1.bf16.msra.mxu0 0
    %2619 = vmatprep.subr.bf16.mxu0 0
    %2620 = vmatpush1.bf16.msra.mxu0 0
    %2621 = vmatprep.subr.bf16.mxu0 0
    %2622 = vmatpush1.bf16.msra.mxu0 0
    %2623 = vmatprep.subr.bf16.mxu0 0
    %2624 = vmatpush1.bf16.msra.mxu0 0
    %2625 = vmatprep.mubr.bf16.mxu0 0
    %2626 = vmatmul.mubr.bf16.gmra.mrb[0].mxu0 %v2494
    %v2627 = vpop.f32.mrb[0].mxu0
    %v2628 = vadd.f32 0.0, %v2627
    %v2629 = vpop.f32.mrb[0].mxu0
    %v2630 = vadd.f32 0.0, %v2629
    %v2631 = vpop.f32.mrb[0].mxu0
    %v2632 = vadd.f32 0.0, %v2631
    %v2633 = vpop.f32.mrb[0].mxu0
    %v2634 = vadd.f32 0.0, %v2633
    %2635 = vmatprep.mubr.bf16.mxu0 0
    %2636 = vmatmul.mubr.bf16.gmra.mrb[0].mxu0 %v2495
    %v2637 = vpop.f32.mrb[0].mxu0
    %v2638 = vadd.f32 0.0, %v2637
    %v2639 = vpop.f32.mrb[0].mxu0
    %v2640 = vadd.f32 0.0, %v2639
    %v2641 = vpop.f32.mrb[0].mxu0
    %v2642 = vadd.f32 0.0, %v2641
    %v2643 = vpop.f32.mrb[0].mxu0
    %v2644 = vadd.f32 0.0, %v2643
    %2645 = vdwg.mxu0
    %v2646 = vadd.f32 %v2384, %v2628
    %v2647 = vadd.f32 %v2385, %v2630
    %v2648 = vadd.f32 %v2386, %v2632
    %v2649 = vadd.f32 %v2387, %v2634
    %v2650 = vadd.f32 %v2388, %v2638
    %v2651 = vadd.f32 %v2389, %v2640
    %v2652 = vadd.f32 %v2390, %v2642
    %v2653 = vadd.f32 %v2391, %v2644
    %s2654 = scalar_lea.vmem [#allocation2], 128
    %v2655 = vld [vmem:[%s2654] sm:$0xff]
    %v2656 = vld [vmem:[%s2654 + $0x8] sm:$0xff]
    %v2657 = vld [vmem:[%s2654 + $0x10] sm:$0xff]
    %v2658 = vld [vmem:[%s2654 + $0x18] sm:$0x3]
    %v2660 = vsel %vm1623, %v2655, 0
    %v2663 = vsel %vm1623, %v2656, 0
    %v2666 = vsel %vm1623, %v2657, 0
    %v2669 = vsel %vm1623, %v2658, 0
    %2671 = vmatprep.subr.mxu0 0.0
    %2672 = vmatpush1.msra.mxu0 %v1611
    %2673 = vmatprep.subr.mxu0 0.0
    %2674 = vmatpush1.msra.mxu0 %v1612
    %2675 = vmatprep.subr.mxu0 0.0
    %2676 = vmatpush1.msra.mxu0 %v1613
    %2677 = vmatprep.subr.mxu0 0.0
    %2678 = vmatpush1.msra.mxu0 %v1614
    %2679 = vmatprep.subr.mxu0 0.0
    %2680 = vmatpush1.msra.mxu0 %v1615
    %2681 = vmatprep.subr.mxu0 0.0
    %2682 = vmatpush1.msra.mxu0 %v1616
    %2683 = vmatprep.subr.mxu0 0.0
    %2684 = vmatpush1.msra.mxu0 %v1617
    %2685 = vmatprep.subr.mxu0 0.0
    %2686 = vmatpush1.msra.mxu0 %v1638
    %2687 = vmatprep.subr.mxu0 0.0
    %2688 = vmatpush1.msra.mxu0 0.0
    %2689 = vmatprep.subr.mxu0 0.0
    %2690 = vmatpush1.msra.mxu0 0.0
    %2691 = vmatprep.subr.mxu0 0.0
    %2692 = vmatpush1.msra.mxu0 0.0
    %2693 = vmatprep.subr.mxu0 0.0
    %2694 = vmatpush1.msra.mxu0 0.0
    %2695 = vmatprep.subr.mxu0 0.0
    %2696 = vmatpush1.msra.mxu0 0.0
    %2697 = vmatprep.subr.mxu0 0.0
    %2698 = vmatpush1.msra.mxu0 0.0
    %2699 = vmatprep.subr.mxu0 0.0
    %2700 = vmatpush1.msra.mxu0 0.0
    %2701 = vmatprep.subr.mxu0 0.0
    %2702 = vmatpush1.msra.mxu0 0.0
    %2703 = vmatprep.subr.mxu0 0.0
    %2704 = vmatpush1.msra.mxu0 0.0
    %2705 = vmatprep.subr.mxu0 0.0
    %2706 = vmatpush1.msra.mxu0 0.0
    %2707 = vmatprep.subr.mxu0 0.0
    %2708 = vmatpush1.msra.mxu0 0.0
    %2709 = vmatprep.subr.mxu0 0.0
    %2710 = vmatpush1.msra.mxu0 0.0
    %2711 = vmatprep.subr.mxu0 0.0
    %2712 = vmatpush1.msra.mxu0 0.0
    %2713 = vmatprep.subr.mxu0 0.0
    %2714 = vmatpush1.msra.mxu0 0.0
    %2715 = vmatprep.subr.mxu0 0.0
    %2716 = vmatpush1.msra.mxu0 0.0
    %2717 = vmatprep.subr.mxu0 0.0
    %2718 = vmatpush1.msra.mxu0 0.0
    %2719 = vmatprep.subr.mxu0 0.0
    %2720 = vmatpush1.msra.mxu0 0.0
    %2721 = vmatprep.subr.mxu0 0.0
    %2722 = vmatpush1.msra.mxu0 0.0
    %2723 = vmatprep.subr.mxu0 0.0
    %2724 = vmatpush1.msra.mxu0 0.0
    %2725 = vmatprep.subr.mxu0 0.0
    %2726 = vmatpush1.msra.mxu0 0.0
    %2727 = vmatprep.subr.mxu0 0.0
    %2728 = vmatpush1.msra.mxu0 0.0
    %2729 = vmatprep.subr.mxu0 0.0
    %2730 = vmatpush1.msra.mxu0 0.0
    %2731 = vmatprep.subr.mxu0 0.0
    %2732 = vmatpush1.msra.mxu0 0.0
    %2733 = vmatprep.subr.mxu0 0.0
    %2734 = vmatpush1.msra.mxu0 0.0
    %2735 = vmatprep.mubr.f32.mxu0 0.0
    %2736 = vmatmul.mubr.f32.gmra.mrb[0].mxu0 %v2660
    %v2737 = vpop.f32.mrb[0].mxu0
    %v2738 = vadd.f32 0.0, %v2737
    %v2739 = vpop.f32.mrb[0].mxu0
    %2740 = vmatprep.mubr.f32.mxu0 0.0
    %2741 = vmatmul.mubr.f32.gmra.mrb[0].mxu0 %v2663
    %v2742 = vpop.f32.mrb[0].mxu0
    %v2743 = vadd.f32 0.0, %v2742
    %v2744 = vpop.f32.mrb[0].mxu0
    %2745 = vmatprep.mubr.f32.mxu0 0.0
    %2746 = vmatmul.mubr.f32.gmra.mrb[0].mxu0 %v2666
    %v2747 = vpop.f32.mrb[0].mxu0
    %v2748 = vadd.f32 0.0, %v2747
    %v2749 = vpop.f32.mrb[0].mxu0
    %2750 = vmatprep.mubr.f32.mxu0 0.0
    %2751 = vmatmul.mubr.f32.gmra.mrb[0].mxu0 %v2669
    %v2752 = vpop.f32.mrb[0].mxu0
    %v2753 = vadd.f32 0.0, %v2752
    %v2754 = vpop.f32.mrb[0].mxu0
    %2755 = vdwg.mxu0
    %v2756 = vpack.c.bf16 %v2743, %v2738
    %v2757 = vpack.c.bf16 %v2753, %v2748
    %s2758 = scalar_lea.vmem [#allocation4], 512
    %v2759 = vld [vmem:[%s2758] sm:$0xff]
    %v2760 = vld [vmem:[%s2758 + $0x8] sm:$0xff]
    %v2761 = vld [vmem:[%s2758 + $0x10] sm:$0xff]
    %v2762 = vld [vmem:[%s2758 + $0x18] sm:$0xff]
    %v2763 = vld [vmem:[%s2758 + $0x20] sm:$0xff]
    %v2764 = vld [vmem:[%s2758 + $0x28] sm:$0xff]
    %v2765 = vld [vmem:[%s2758 + $0x30] sm:$0xff]
    %v2766 = vld [vmem:[%s2758 + $0x38] sm:$0xff]
    %v2767 = vld [vmem:[%s2758 + $0x40] sm:$0xff]
    %v2768 = vld [vmem:[%s2758 + $0x48] sm:$0xff]
    %v2769 = vld [vmem:[%s2758 + $0x50] sm:$0xff]
    %v2770 = vld [vmem:[%s2758 + $0x58] sm:$0xff]
    %v2771 = vld [vmem:[%s2758 + $0x60] sm:$0xff]
    %v2772 = vld [vmem:[%s2758 + $0x68] sm:$0xff]
    %v2773 = vld [vmem:[%s2758 + $0x70] sm:$0xff]
    %v2774 = vld [vmem:[%s2758 + $0x78] sm:$0xff]
    %v2791 = vunpack.c.l.b16 %v2759
    %v2792 = vunpack.c.h.b16 %v2759
    %v2793 = vunpack.c.l.b16 %v2760
    %v2794 = vunpack.c.h.b16 %v2760
    %v2795 = vunpack.c.l.b16 %v2761
    %v2796 = vunpack.c.h.b16 %v2761
    %v2797 = vunpack.c.l.b16 %v2762
    %v2798 = vunpack.c.h.b16 %v2762
    %v2799 = vunpack.c.l.b16 %v2763
    %v2800 = vunpack.c.h.b16 %v2763
    %v2801 = vunpack.c.l.b16 %v2764
    %v2802 = vunpack.c.h.b16 %v2764
    %v2803 = vunpack.c.l.b16 %v2765
    %v2804 = vunpack.c.h.b16 %v2765
    %v2805 = vunpack.c.l.b16 %v2766
    %v2806 = vunpack.c.h.b16 %v2766
    %v2807 = vunpack.c.l.b16 %v2767
    %v2808 = vunpack.c.h.b16 %v2767
    %v2809 = vunpack.c.l.b16 %v2768
    %v2810 = vunpack.c.h.b16 %v2768
    %v2811 = vunpack.c.l.b16 %v2769
    %v2812 = vunpack.c.h.b16 %v2769
    %v2813 = vunpack.c.l.b16 %v2770
    %v2814 = vunpack.c.h.b16 %v2770
    %v2815 = vunpack.c.l.b16 %v2771
    %v2816 = vunpack.c.h.b16 %v2771
    %v2817 = vunpack.c.l.b16 %v2772
    %v2818 = vunpack.c.h.b16 %v2772
    %v2819 = vunpack.c.l.b16 %v2773
    %v2820 = vunpack.c.h.b16 %v2773
    %v2821 = vunpack.c.l.b16 %v2774
    %v2822 = vunpack.c.h.b16 %v2774
    %v2823 = vpack.c.b16 %v2793, %v2791
    %v2824 = vpack.c.b16 %v2794, %v2792
    %v2825 = vpack.c.b16 %v2797, %v2795
    %v2826 = vpack.c.b16 %v2798, %v2796
    %v2827 = vpack.c.b16 %v2801, %v2799
    %v2828 = vpack.c.b16 %v2802, %v2800
    %v2829 = vpack.c.b16 %v2805, %v2803
    %v2830 = vpack.c.b16 %v2806, %v2804
    %v2831 = vpack.c.b16 %v2809, %v2807
    %v2832 = vpack.c.b16 %v2810, %v2808
    %v2833 = vpack.c.b16 %v2813, %v2811
    %v2834 = vpack.c.b16 %v2814, %v2812
    %v2835 = vpack.c.b16 %v2817, %v2815
    %v2836 = vpack.c.b16 %v2818, %v2816
    %v2837 = vpack.c.b16 %v2821, %v2819
    %v2838 = vpack.c.b16 %v2822, %v2820
    %2855 = vmatprep.subr.bf16.mxu0 %v2824
    %2856 = vmatpush1.bf16.msra.mxu0 %v2823
    %2857 = vmatprep.subr.bf16.mxu0 %v2826
    %2858 = vmatpush1.bf16.msra.mxu0 %v2825
    %2859 = vmatprep.subr.bf16.mxu0 %v2828
    %2860 = vmatpush1.bf16.msra.mxu0 %v2827
    %2861 = vmatprep.subr.bf16.mxu0 %v2830
    %2862 = vmatpush1.bf16.msra.mxu0 %v2829
    %2863 = vmatprep.subr.bf16.mxu0 %v2832
    %2864 = vmatpush1.bf16.msra.mxu0 %v2831
    %2865 = vmatprep.subr.bf16.mxu0 %v2834
    %2866 = vmatpush1.bf16.msra.mxu0 %v2833
    %2867 = vmatprep.subr.bf16.mxu0 %v2836
    %2868 = vmatpush1.bf16.msra.mxu0 %v2835
    %2869 = vmatprep.subr.bf16.mxu0 %v2838
    %2870 = vmatpush1.bf16.msra.mxu0 %v2837
    %2871 = vmatprep.subr.bf16.mxu0 0
    %2872 = vmatpush1.bf16.msra.mxu0 0
    %2873 = vmatprep.subr.bf16.mxu0 0
    %2874 = vmatpush1.bf16.msra.mxu0 0
    %2875 = vmatprep.subr.bf16.mxu0 0
    %2876 = vmatpush1.bf16.msra.mxu0 0
    %2877 = vmatprep.subr.bf16.mxu0 0
    %2878 = vmatpush1.bf16.msra.mxu0 0
    %2879 = vmatprep.subr.bf16.mxu0 0
    %2880 = vmatpush1.bf16.msra.mxu0 0
    %2881 = vmatprep.subr.bf16.mxu0 0
    %2882 = vmatpush1.bf16.msra.mxu0 0
    %2883 = vmatprep.subr.bf16.mxu0 0
    %2884 = vmatpush1.bf16.msra.mxu0 0
    %2885 = vmatprep.subr.bf16.mxu0 0
    %2886 = vmatpush1.bf16.msra.mxu0 0
    %2887 = vmatprep.mubr.bf16.mxu0 0
    %2888 = vmatmul.mubr.bf16.gmra.mrb[0].mxu0 %v2756
    %v2889 = vpop.f32.mrb[0].mxu0
    %v2890 = vadd.f32 0.0, %v2889
    %v2891 = vpop.f32.mrb[0].mxu0
    %v2892 = vadd.f32 0.0, %v2891
    %v2893 = vpop.f32.mrb[0].mxu0
    %v2894 = vadd.f32 0.0, %v2893
    %v2895 = vpop.f32.mrb[0].mxu0
    %v2896 = vadd.f32 0.0, %v2895
    %2897 = vmatprep.mubr.bf16.mxu0 0
    %2898 = vmatmul.mubr.bf16.gmra.mrb[0].mxu0 %v2757
    %v2899 = vpop.f32.mrb[0].mxu0
    %v2900 = vadd.f32 0.0, %v2899
    %v2901 = vpop.f32.mrb[0].mxu0
    %v2902 = vadd.f32 0.0, %v2901
    %v2903 = vpop.f32.mrb[0].mxu0
    %v2904 = vadd.f32 0.0, %v2903
    %v2905 = vpop.f32.mrb[0].mxu0
    %v2906 = vadd.f32 0.0, %v2905
    %2907 = vdwg.mxu0
    %v2908 = vadd.f32 %v2646, %v2890
    %v2909 = vadd.f32 %v2647, %v2892
    %v2910 = vadd.f32 %v2648, %v2894
    %v2911 = vadd.f32 %v2649, %v2896
    %v2912 = vadd.f32 %v2650, %v2900
    %v2913 = vadd.f32 %v2651, %v2902
    %v2914 = vadd.f32 %v2652, %v2904
    %v2915 = vadd.f32 %v2653, %v2906
    %v2916 = vld [vmem:[%s8] sm:$0x3]
    %v2918 = vlaneseq
    %v2919 = vshrl.u32 %v2918, 7
    %v2920 = vsub.s32 0, %v2919
    %v2921 = vrot.slane %v2916, %v2920
    %v2922 = vlaneseq
    %v2923 = vshrl.u32 %v2922, 7
    %v2924 = vsub.s32 1, %v2923
    %v2925 = vrot.slane %v2916, %v2924
    %v2928 = vadd.f32 %v2908, %v2921
    %v2929 = vadd.f32 %v2909, %v2925
    %v2930 = vadd.f32 %v2910, %v2921
    %v2931 = vadd.f32 %v2911, %v2925
    %v2932 = vadd.f32 %v2912, %v2921
    %v2933 = vadd.f32 %v2913, %v2925
    %v2934 = vadd.f32 %v2914, %v2921
    %v2935 = vadd.f32 %v2915, %v2925
    %v2936 = vmax.f32 %v2928, 0.0
    %v2937 = vmax.f32 %v2929, 0.0
    %v2938 = vmax.f32 %v2930, 0.0
    %v2939 = vmax.f32 %v2931, 0.0
    %v2940 = vmax.f32 %v2932, 0.0
    %v2941 = vmax.f32 %v2933, 0.0
    %v2942 = vmax.f32 %v2934, 0.0
    %v2943 = vmax.f32 %v2935, 0.0
    %v2944 = vld [vmem:[%s9] sm:$0x3]
    %vm2945 = vcmask 211968
    %v2947 = vsel %vm2945, %v2944, 0
    %v2950 = vsel %vm1636, %v2942, 0
    %v2953 = vsel %vm1636, %v2943, 0
    %2955 = vmatprep.subr.mxu0 %v2937
    %2956 = vmatpush1.msra.mxu0 %v2936
    %2957 = vmatprep.subr.mxu0 %v2939
    %2958 = vmatpush1.msra.mxu0 %v2938
    %2959 = vmatprep.subr.mxu0 %v2941
    %2960 = vmatpush1.msra.mxu0 %v2940
    %2961 = vmatprep.subr.mxu0 %v2953
    %2962 = vmatpush1.msra.mxu0 %v2950
    %2963 = vmatprep.subr.mxu0 0.0
    %2964 = vmatpush1.msra.mxu0 0.0
    %2965 = vmatprep.subr.mxu0 0.0
    %2966 = vmatpush1.msra.mxu0 0.0
    %2967 = vmatprep.subr.mxu0 0.0
    %2968 = vmatpush1.msra.mxu0 0.0
    %2969 = vmatprep.subr.mxu0 0.0
    %2970 = vmatpush1.msra.mxu0 0.0
    %2971 = vmatprep.subr.mxu0 0.0
    %2972 = vmatpush1.msra.mxu0 0.0
    %2973 = vmatprep.subr.mxu0 0.0
    %2974 = vmatpush1.msra.mxu0 0.0
    %2975 = vmatprep.subr.mxu0 0.0
    %2976 = vmatpush1.msra.mxu0 0.0
    %2977 = vmatprep.subr.mxu0 0.0
    %2978 = vmatpush1.msra.mxu0 0.0
    %2979 = vmatprep.subr.mxu0 0.0
    %2980 = vmatpush1.msra.mxu0 0.0
    %2981 = vmatprep.subr.mxu0 0.0
    %2982 = vmatpush1.msra.mxu0 0.0
    %2983 = vmatprep.subr.mxu0 0.0
    %2984 = vmatpush1.msra.mxu0 0.0
    %2985 = vmatprep.subr.mxu0 0.0
    %2986 = vmatpush1.msra.mxu0 0.0
    %2987 = vmatprep.subr.mxu0 0.0
    %2988 = vmatpush1.msra.mxu0 0.0
    %2989 = vmatprep.subr.mxu0 0.0
    %2990 = vmatpush1.msra.mxu0 0.0
    %2991 = vmatprep.subr.mxu0 0.0
    %2992 = vmatpush1.msra.mxu0 0.0
    %2993 = vmatprep.subr.mxu0 0.0
    %2994 = vmatpush1.msra.mxu0 0.0
    %2995 = vmatprep.subr.mxu0 0.0
    %2996 = vmatpush1.msra.mxu0 0.0
    %2997 = vmatprep.subr.mxu0 0.0
    %2998 = vmatpush1.msra.mxu0 0.0
    %2999 = vmatprep.subr.mxu0 0.0
    %3000 = vmatpush1.msra.mxu0 0.0
    %3001 = vmatprep.subr.mxu0 0.0
    %3002 = vmatpush1.msra.mxu0 0.0
    %3003 = vmatprep.subr.mxu0 0.0
    %3004 = vmatpush1.msra.mxu0 0.0
    %3005 = vmatprep.subr.mxu0 0.0
    %3006 = vmatpush1.msra.mxu0 0.0
    %3007 = vmatprep.subr.mxu0 0.0
    %3008 = vmatpush1.msra.mxu0 0.0
    %3009 = vmatprep.subr.mxu0 0.0
    %3010 = vmatpush1.msra.mxu0 0.0
    %3011 = vmatprep.subr.mxu0 0.0
    %3012 = vmatpush1.msra.mxu0 0.0
    %3013 = vmatprep.subr.mxu0 0.0
    %3014 = vmatpush1.msra.mxu0 0.0
    %3015 = vmatprep.subr.mxu0 0.0
    %3016 = vmatpush1.msra.mxu0 0.0
    %3017 = vmatprep.subr.mxu0 0.0
    %3018 = vmatpush1.msra.mxu0 0.0
    %3019 = vmatprep.mubr.f32.mxu0 0.0
    %3020 = vmatmul.mubr.f32.gmra.mrb[0].mxu0 %v2947
    %v3021 = vpop.f32.mrb[0].mxu0
    %v3022 = vadd.f32 0.0, %v3021
    %v3023 = vpop.f32.mrb[0].mxu0
    %v3024 = vadd.f32 0.0, %v3023
    %3025 = vdwg.mxu0
    %v3026 = vld [vmem:[%s10] sm:$0xff]
    %v3027 = vld [vmem:[%s10 + $0x8] sm:$0xff]
    %v3028 = vld [vmem:[%s10 + $0x10] sm:$0xff]
    %v3029 = vld [vmem:[%s10 + $0x18] sm:$0xff]
    %v3030 = vld [vmem:[%s10 + $0x20] sm:$0xff]
    %v3031 = vld [vmem:[%s10 + $0x28] sm:$0xff]
    %v3032 = vld [vmem:[%s10 + $0x30] sm:$0xff]
    %v3033 = vld [vmem:[%s10 + $0x38] sm:$0xff]
    %v3034 = vld [vmem:[%s10 + $0x40] sm:$0xff]
    %v3035 = vld [vmem:[%s10 + $0x48] sm:$0xff]
    %v3036 = vld [vmem:[%s10 + $0x50] sm:$0xff]
    %v3037 = vld [vmem:[%s10 + $0x58] sm:$0xff]
    %v3038 = vld [vmem:[%s10 + $0x60] sm:$0xff]
    %v3039 = vld [vmem:[%s10 + $0x68] sm:$0xff]
    %v3040 = vld [vmem:[%s10 + $0x70] sm:$0xff]
    %v3041 = vld [vmem:[%s10 + $0x78] sm:$0xff]
    %v3042 = vld [vmem:[%s10 + $0x80] sm:$0xff]
    %v3043 = vld [vmem:[%s10 + $0x88] sm:$0xff]
    %v3044 = vld [vmem:[%s10 + $0x90] sm:$0xff]
    %v3045 = vld [vmem:[%s10 + $0x98] sm:$0xff]
    %v3046 = vld [vmem:[%s10 + $0xa0] sm:$0xff]
    %v3047 = vld [vmem:[%s10 + $0xa8] sm:$0xff]
    %v3048 = vld [vmem:[%s10 + $0xb0] sm:$0xff]
    %v3049 = vld [vmem:[%s10 + $0xb8] sm:$0xff]
    %v3050 = vld [vmem:[%s10 + $0xc0] sm:$0xff]
    %v3051 = vld [vmem:[%s10 + $0xc8] sm:$0xff]
    %v3052 = vld [vmem:[%s10 + $0xd0] sm:$0xff]
    %v3053 = vld [vmem:[%s10 + $0xd8] sm:$0xff]
    %v3054 = vld [vmem:[%s10 + $0xe0] sm:$0xff]
    %v3055 = vld [vmem:[%s10 + $0xe8] sm:$0xff]
    %v3056 = vld [vmem:[%s10 + $0xf0] sm:$0xff]
    %v3057 = vld [vmem:[%s10 + $0xf8] sm:$0xff]
    %v3058 = vld [vmem:[%s11] sm:$0x1]
    %v3060 = vlaneseq
    %v3061 = vshrl.u32 %v3060, 7
    %v3062 = vsub.s32 0, %v3061
    %v3063 = vrot.slane %v3058, %v3062
    %3065 = vmatprep.subr.mxu0 0.0
    %3066 = vmatpush1.msra.mxu0 %v3026
    %3067 = vmatprep.subr.mxu0 0.0
    %3068 = vmatpush1.msra.mxu0 %v3027
    %3069 = vmatprep.subr.mxu0 0.0
    %3070 = vmatpush1.msra.mxu0 %v3028
    %3071 = vmatprep.subr.mxu0 0.0
    %3072 = vmatpush1.msra.mxu0 %v3029
    %3073 = vmatprep.subr.mxu0 0.0
    %3074 = vmatpush1.msra.mxu0 %v3030
    %3075 = vmatprep.subr.mxu0 0.0
    %3076 = vmatpush1.msra.mxu0 %v3031
    %3077 = vmatprep.subr.mxu0 0.0
    %3078 = vmatpush1.msra.mxu0 %v3032
    %3079 = vmatprep.subr.mxu0 0.0
    %3080 = vmatpush1.msra.mxu0 %v3033
    %3081 = vmatprep.subr.mxu0 0.0
    %3082 = vmatpush1.msra.mxu0 %v3034
    %3083 = vmatprep.subr.mxu0 0.0
    %3084 = vmatpush1.msra.mxu0 %v3035
    %3085 = vmatprep.subr.mxu0 0.0
    %3086 = vmatpush1.msra.mxu0 %v3036
    %3087 = vmatprep.subr.mxu0 0.0
    %3088 = vmatpush1.msra.mxu0 %v3037
    %3089 = vmatprep.subr.mxu0 0.0
    %3090 = vmatpush1.msra.mxu0 %v3038
    %3091 = vmatprep.subr.mxu0 0.0
    %3092 = vmatpush1.msra.mxu0 %v3039
    %3093 = vmatprep.subr.mxu0 0.0
    %3094 = vmatpush1.msra.mxu0 %v3040
    %3095 = vmatprep.subr.mxu0 0.0
    %3096 = vmatpush1.msra.mxu0 %v3041
    %3097 = vmatprep.subr.mxu0 0.0
    %3098 = vmatpush1.msra.mxu0 %v3042
    %3099 = vmatprep.subr.mxu0 0.0
    %3100 = vmatpush1.msra.mxu0 %v3043
    %3101 = vmatprep.subr.mxu0 0.0
    %3102 = vmatpush1.msra.mxu0 %v3044
    %3103 = vmatprep.subr.mxu0 0.0
    %3104 = vmatpush1.msra.mxu0 %v3045
    %3105 = vmatprep.subr.mxu0 0.0
    %3106 = vmatpush1.msra.mxu0 %v3046
    %3107 = vmatprep.subr.mxu0 0.0
    %3108 = vmatpush1.msra.mxu0 %v3047
    %3109 = vmatprep.subr.mxu0 0.0
    %3110 = vmatpush1.msra.mxu0 %v3048
    %3111 = vmatprep.subr.mxu0 0.0
    %3112 = vmatpush1.msra.mxu0 %v3049
    %3113 = vmatprep.subr.mxu0 0.0
    %3114 = vmatpush1.msra.mxu0 %v3050
    %3115 = vmatprep.subr.mxu0 0.0
    %3116 = vmatpush1.msra.mxu0 %v3051
    %3117 = vmatprep.subr.mxu0 0.0
    %3118 = vmatpush1.msra.mxu0 %v3052
    %3119 = vmatprep.subr.mxu0 0.0
    %3120 = vmatpush1.msra.mxu0 %v3053
    %3121 = vmatprep.subr.mxu0 0.0
    %3122 = vmatpush1.msra.mxu0 %v3054
    %3123 = vmatprep.subr.mxu0 0.0
    %3124 = vmatpush1.msra.mxu0 %v3055
    %3125 = vmatprep.subr.mxu0 0.0
    %3126 = vmatpush1.msra.mxu0 %v3056
    %3127 = vmatprep.subr.mxu0 0.0
    %3128 = vmatpush1.msra.mxu0 %v3057
    %3129 = vmatprep.mubr.f32.mxu0 %v3024
    %3130 = vmatmul.mubr.f32.gmra.mrb[0].mxu0 %v3022
    %v3131 = vpop.f32.mrb[0].mxu0
    %v3132 = vadd.f32 %v3063, %v3131
    %v3133 = vpop.f32.mrb[0].mxu0
    %3134 = vdwg.mxu0
    %vm3135 = vcmask 254976
    %3136 = vst.msk [vmem:[%s12] sm:$0x3] %vm3135, %v3132
    // Predicated region
    $region58: #{cross_sensory_forward.5} parent=1 // pred_check
      _
    $region59: #{cross_sensory_forward.5} parent=1 // pred_check_branch
      %3138 = sbr.rel (0) target = $region61
    $region60: #{cross_sensory_forward.5} parent=1 // pred_region
      _
    $region61: #{cross_sensory_forward.5} parent=1 // pred_fallthru
      _
    // Predicated region
    $region62: #{cross_sensory_forward.5} parent=1 // pred_check
      _
    $region63: #{cross_sensory_forward.5} parent=1 // pred_check_branch
      %3140 = sbr.rel (0) target = $region65
    $region64: #{cross_sensory_forward.5} parent=1 // pred_region
      _
    $region65: #{cross_sensory_forward.5} parent=1 // pred_fallthru
      _
    %3141 = vsyncpa [#allocation3], 1
    %3142 = vsyncpa [#allocation5], 1

</llo_original>
